<compile_context>
chip_gen: v7x
topology: tpu7x:2x2x1
jax: 0.10.0
libtpu: 0.0.40
codegen_flags: <defaults>
</compile_context>

<pallas_src>
import math
import numpy as np
import jax
import jax.numpy as jnp
from jax import lax
from jax.experimental import pallas as pl
from jax.experimental.pallas import tpu as pltpu

P = 4                       # patch_size; img_size = (P, P, P)
N = P * P * P               # 64 tokens; also in_channel of the head
DH = P // 2 + 1             # rfft half-length along the last spatial dim
NF = P * P * DH             # 48 retained frequency bins
NF4 = 4 * NF                # 192 = width of the fused real-operator frequency block
C = 32                      # dim (embedding channels)
HID = 16                    # head hidden width
NUM_CLASSES = 10
B = 2
EPS = 1e-5                  # torch.nn.LayerNorm default eps

# Row offsets inside the two coalesced parameter slabs (all 8-sublane aligned).
WIDE_ROWS = N + C           # wide slab:  rows [0,N)=AT_big, [N,N+C)=W_big ; width NF4
R_W1 = NF4                  # narrow slab: rows [0,NF4)=BT_big
R_B1 = R_W1 + N             # head1 weight rows [R_W1,R_B1), bias in row R_B1
R_W2 = R_B1 + 8
R_B2 = R_W2 + HID
NARROW_ROWS = R_B2 + 8      # narrow slab width = N


def build_fft_operators(p):
    """Real matrices implementing ortho rfftn / irfftn over a (p,p,p) grid, built by
    probing numpy's pocketfft (same conventions as torch.fft, including the discarded
    imaginary DC/Nyquist components).  Returns (Re(F), Im(F), inv_r, inv_i)."""
    n = p ** 3
    dh = p // 2 + 1
    nf = p * p * dh
    eye = np.eye(n, dtype=np.float64).reshape(n, p, p, p)
    fwd = np.fft.rfftn(eye, axes=(1, 2, 3), norm="ortho").reshape(n, nf)     # tokens -> freqs
    eyec = np.eye(nf, dtype=np.complex128).reshape(nf, p, p, dh)
    inv_r = np.fft.irfftn(eyec, s=(p, p, p), axes=(1, 2, 3), norm="ortho").reshape(nf, n)
    inv_i = np.fft.irfftn(1j * eyec, s=(p, p, p), axes=(1, 2, 3), norm="ortho").reshape(nf, n)
    return (fwd.real.astype(np.float32), fwd.imag.astype(np.float32),
            inv_r.astype(np.float32), inv_i.astype(np.float32))


def _erf(v):
    # Abramowitz & Stegun 7.1.26, |abs error| <= 1.5e-7.
    # TODO(synk): lax.erf lowering availability varies on Mosaic; use a guaranteed-lowerable polynomial.
    a = jnp.abs(v)
    t = 1.0 / (1.0 + 0.3275911 * a)
    poly = t * (0.254829592 + t * (-0.284496736 + t * (1.421413741 + t * (-1.453152027 + t * 1.061405429))))
    y = 1.0 - poly * jnp.exp(-a * a)
    return jnp.where(v >= 0.0, y, -y)


def _gelu_exact(v):
    # matches torch.nn.GELU() default (approximate='none'): x * 0.5 * (1 + erf(x / sqrt(2)))
    return 0.5 * v * (1.0 + _erf(v * np.float32(1.0 / math.sqrt(2.0))))


def tiny_gf_kernel(x_ref, ln_ref, wide_ref, narrow_ref, out_ref):
    b, c, n = x_ref.shape
    x3 = x_ref[...]                                        # (B, C, N) f32, whole batch

    def layernorm_c(v, g_row, b_row):
        # LayerNorm over the channel axis (axis=1); affines stored natively as (C,1)
        # slices of a (4, C, 1) slab -> broadcast straight across lanes, no extraction.
        g = ln_ref[g_row:g_row + 1]                        # (1, C, 1)
        beta = ln_ref[b_row:b_row + 1]                     # (1, C, 1)
        mu = jnp.mean(v, axis=1, keepdims=True)
        var = jnp.mean((v - mu) ** 2, axis=1, keepdims=True)
        return (v - mu) * lax.rsqrt(var + EPS) * g + beta

    # --- norm1; fold batch into sublane rows (B*C, N) ---
    xn = layernorm_c(x3, 0, 1).reshape(b * c, n)

    # --- Global_Filter as dot -> broadcast multiply -> dot (no lane slicing / concat) ---
    at_big = wide_ref[0:N, :]                              # (N, 4*NF) = [Re|Im|Re|Im]
    w_big = wide_ref[N:N + C, :]                           # (C, 4*NF) = [wr|wr|wi|-wi]
    bt_big = narrow_ref[0:NF4, :]                          # (4*NF, N) = [inv_r;inv_i;inv_i;inv_r]

    xf = jnp.dot(xn, at_big, precision=lax.Precision.HIGHEST,
                 preferred_element_type=jnp.float32)       # (B*C, 4*NF) = [xr|xi|xr|xi]
    # broadcast the per-channel complex weight over the batch (no batch-tiled params)
    y = (xf.reshape(b, c, NF4) * w_big[None]).reshape(b * c, NF4)
    filt = jnp.dot(y, bt_big, precision=lax.Precision.HIGHEST,
                   preferred_element_type=jnp.float32)     # (B*C, N)

    # --- norm2 + residual, then channel mean (VPU/XLU reductions, no MXU) ---
    z = x3 + layernorm_c(filt.reshape(b, c, n), 2, 3)      # (B, C, N)
    m = jnp.mean(z, axis=1)                                # (B, N)

    # --- head: Linear(N,16) -> GELU -> Linear(16,num_classes), lane-dense row-major out ---
    w1 = narrow_ref[R_W1:R_B1, 0:HID]                      # (N, 16)
    b1 = narrow_ref[R_B1:R_B1 + 1, 0:HID]                  # (1, 16)
    w2 = narrow_ref[R_W2:R_W2 + HID, 0:NUM_CLASSES]        # (16, NUM_CLASSES)
    b2 = narrow_ref[R_B2:R_B2 + 1, 0:NUM_CLASSES]          # (1, NUM_CLASSES)
    h = _gelu_exact(jnp.dot(m, w1, precision=lax.Precision.HIGHEST,
                            preferred_element_type=jnp.float32) + b1)
    out_ref[...] = (jnp.dot(h, w2, precision=lax.Precision.HIGHEST,
                            preferred_element_type=jnp.float32) + b2)


def pack_params(cw, g1, be1, g2, be2, w1, bh1, w2, bh2):
    """Pack module parameters + precomputed DFT operators into 3 kernel buffers
    (batch-size independent)."""
    fwd_r, fwd_i, inv_r, inv_i = build_fft_operators(P)

    # wide slab: AT_big over W_big, width 4*NF
    at = np.concatenate([fwd_r, fwd_i], axis=1)                        # (N, 2*NF)
    at_big = np.concatenate([at, at], axis=1)                          # (N, 4*NF)
    cw_np = np.asarray(cw, np.float32)
    wrT = cw_np[..., 0].reshape(NF, C).T                               # (C, NF)
    wiT = cw_np[..., 1].reshape(NF, C).T                               # (C, NF)
    w_big = np.concatenate([wrT, wrT, wiT, -wiT], axis=1)              # (C, 4*NF)
    wide = np.zeros((WIDE_ROWS, NF4), np.float32)
    wide[:N] = at_big
    wide[N:N + C] = w_big

    # narrow slab: BT_big + head layers, width N
    bt_big = np.concatenate([inv_r, inv_i, inv_i, inv_r], axis=0)      # (4*NF, N)
    narrow = np.zeros((NARROW_ROWS, N), np.float32)
    narrow[:NF4] = bt_big
    narrow[R_W1:R_B1, :HID] = np.asarray(w1, np.float32)
    narrow[R_B1, :HID] = np.asarray(bh1, np.float32)
    narrow[R_W2:R_W2 + HID, :NUM_CLASSES] = np.asarray(w2, np.float32)
    narrow[R_B2, :NUM_CLASSES] = np.asarray(bh2, np.float32)

    # LN affines: (4, C, 1) so a static row index gives a (1, C, 1) broadcast operand.
    ln_pack = np.stack([np.asarray(g1, np.float32), np.asarray(be1, np.float32),
                        np.asarray(g2, np.float32), np.asarray(be2, np.float32)],
                       axis=0).reshape(4, C, 1)

    return (jnp.asarray(ln_pack), jnp.asarray(wide), jnp.asarray(narrow))


def tiny_gf_forward(x, params):
    """x: (B, dim, in_channel) = (B, C, N) float32 -- same layout as the PyTorch module
    input; no host-side transpose.  Gridless single-invocation call (everything fits
    comfortably in VMEM at these shapes).
    # NOTE(batch scaling): once B grows, reintroduce a batch grid with
    # dimension_semantics=("parallel",) (fills both v7x TensorCores), use >=8 batch
    # elements per step so M=B*C>=256 fills the 256-wide MXU on v6e/v7x, and budget
    # blocks against v7x's 64 MiB VMEM (raise vmem_limit_bytes if needed)."""
    ln_pack, wide, narrow = params
    bsz = x.shape[0]
    vmem = pl.BlockSpec(memory_space=pltpu.MemorySpace.VMEM)
    args = (x.astype(jnp.float32), ln_pack, wide, narrow)
    return pl.pallas_call(
        tiny_gf_kernel,
        out_shape=jax.ShapeDtypeStruct((bsz, NUM_CLASSES), jnp.float32),
        in_specs=[vmem] * len(args),
        out_specs=vmem,
    )(*args)


def reference_forward(x, g1, be1, cw, g2, be2, w1, bh1, w2, bh2):
    """Pure host-side numpy float64 reference (pocketfft == torch.fft conventions)."""
    x = np.asarray(x, np.float64)
    g1, be1, g2, be2 = [np.asarray(a, np.float64) for a in (g1, be1, g2, be2)]
    cw = np.asarray(cw, np.float64)
    w1, bh1, w2, bh2 = [np.asarray(a, np.float64) for a in (w1, bh1, w2, bh2)]
    xt = np.transpose(x, (0, 2, 1))                          # (B, N, C)

    def ln(v, g, b):
        mu = v.mean(-1, keepdims=True)
        var = ((v - mu) ** 2).mean(-1, keepdims=True)
        return (v - mu) / np.sqrt(var + EPS) * g + b

    xn = ln(xt, g1, be1)
    x5 = xn.reshape(-1, P, P, P, C)
    X = np.fft.rfftn(x5, axes=(1, 2, 3), norm="ortho")
    W = cw[..., 0] + 1j * cw[..., 1]                         # (P, P, DH, C) complex
    y5 = np.fft.irfftn(X * W, s=(P, P, P), axes=(1, 2, 3), norm="ortho")
    filt = y5.reshape(-1, N, C)
    z = xt + ln(filt, g2, be2)
    m = z.mean(-1)                                           # (B, N)
    h = m @ w1 + bh1
    h = 0.5 * h * (1.0 + np.vectorize(math.erf)(h / math.sqrt(2.0)))
    return (h @ w2 + bh2).astype(np.float32)


if __name__ == "__main__":
    key = jax.random.PRNGKey(0)
    kx, kw, kg1, kb1, kg2, kb2, k1, k2, k3, k4 = jax.random.split(key, 10)

    # Input matches the PyTorch module: (B, dim, in_channel) with in_channel = p^3
    x = jax.random.normal(kx, (B, C, N), dtype=jnp.float32)

    # Parameters (deterministic).  LayerNorm affines are randomized so that the filter
    # path actually contributes to the channel mean feeding the head (with the torch
    # default weight=1/bias=0 the LN2 output would average to exactly zero).
    cw = jax.random.normal(kw, (P, P, DH, C, 2), dtype=jnp.float32) * 1.5       # complex_weight
    g1 = 1.0 + 0.5 * jax.random.normal(kg1, (C,), jnp.float32)
    be1 = 0.2 * jax.random.normal(kb1, (C,), jnp.float32)
    g2 = 1.0 + 0.5 * jax.random.normal(kg2, (C,), jnp.float32)
    be2 = 0.2 * jax.random.normal(kb2, (C,), jnp.float32)
    w1 = jax.random.normal(k1, (N, HID), jnp.float32) / np.sqrt(N)              # Linear(in_channel,16).weight.T
    bh1 = 0.1 * jax.random.normal(k2, (HID,), jnp.float32)
    w2 = jax.random.normal(k3, (HID, NUM_CLASSES), jnp.float32) / np.sqrt(HID)
    bh2 = 0.1 * jax.random.normal(k4, (NUM_CLASSES,), jnp.float32)

    params = pack_params(cw, g1, be1, g2, be2, w1, bh1, w2, bh2)
    out = jax.block_until_ready(tiny_gf_forward(x, params))

    ref = reference_forward(np.asarray(x), np.asarray(g1), np.asarray(be1), np.asarray(cw),
                            np.asarray(g2), np.asarray(be2), np.asarray(w1), np.asarray(bh1),
                            np.asarray(w2), np.asarray(bh2))
    # HIGHEST-precision MXU dots -> near-f32 accuracy vs the f64 reference.
    np.testing.assert_allclose(np.asarray(out), ref, rtol=1e-3, atol=1e-3)
    print("KERNEL_OK")
</pallas_src>

<mosaic_0001>
module attributes {stable_mosaic.version = 11 : i64} {
  func.func @tiny_gf_kernel(%arg0: memref<2x32x64xf32, #tpu.memory_space<vmem>>, %arg1: memref<4x32x1xf32, #tpu.memory_space<vmem>>, %arg2: memref<96x192xf32, #tpu.memory_space<vmem>>, %arg3: memref<288x64xf32, #tpu.memory_space<vmem>>, %arg4: memref<2x10xf32, #tpu.memory_space<vmem>>) attributes {dimension_semantics = [], scalar_prefetch = 0 : i64, scratch_operands = 0 : i64, tpu.core_type = #tpu.core_type<tc>} {
    %c0 = arith.constant 0 : index
    %c0_0 = arith.constant 0 : index
    %c0_1 = arith.constant 0 : index
    %0 = vector.load %arg0[%c0, %c0_0, %c0_1] : memref<2x32x64xf32, #tpu.memory_space<vmem>>, vector<2x32x64xf32>
    %c0_2 = arith.constant 0 : index
    %c0_3 = arith.constant 0 : index
    %c0_4 = arith.constant 0 : index
    %1 = vector.load %arg1[%c0_2, %c0_3, %c0_4] : memref<4x32x1xf32, #tpu.memory_space<vmem>>, vector<1x32x1xf32>
    %c1 = arith.constant 1 : index
    %c0_5 = arith.constant 0 : index
    %c0_6 = arith.constant 0 : index
    %2 = vector.load %arg1[%c1, %c0_5, %c0_6] : memref<4x32x1xf32, #tpu.memory_space<vmem>>, vector<1x32x1xf32>
    %cst = arith.constant dense<0.000000e+00> : vector<2x64xf32>
    %3 = vector.multi_reduction <add>, %0, %cst [1] : vector<2x32x64xf32> to vector<2x64xf32>
    %4 = vector.shape_cast %3 : vector<2x64xf32> to vector<2x1x64xf32>
    %cst_7 = arith.constant 3.200000e+01 : f32
    %5 = vector.broadcast %cst_7 : f32 to vector<2x1x64xf32>
    %6 = arith.divf %4, %5 : vector<2x1x64xf32>
    %7 = vector.broadcast %6 : vector<2x1x64xf32> to vector<2x32x64xf32>
    %8 = arith.subf %0, %7 : vector<2x32x64xf32>
    %9 = arith.mulf %8, %8 : vector<2x32x64xf32>
    %cst_8 = arith.constant dense<0.000000e+00> : vector<2x64xf32>
    %10 = vector.multi_reduction <add>, %9, %cst_8 [1] : vector<2x32x64xf32> to vector<2x64xf32>
    %11 = vector.shape_cast %10 : vector<2x64xf32> to vector<2x1x64xf32>
    %cst_9 = arith.constant 3.200000e+01 : f32
    %12 = vector.broadcast %cst_9 : f32 to vector<2x1x64xf32>
    %13 = arith.divf %11, %12 : vector<2x1x64xf32>
    %14 = vector.broadcast %6 : vector<2x1x64xf32> to vector<2x32x64xf32>
    %15 = arith.subf %0, %14 : vector<2x32x64xf32>
    %cst_10 = arith.constant 9.99999974E-6 : f32
    %16 = vector.broadcast %cst_10 : f32 to vector<2x1x64xf32>
    %17 = arith.addf %13, %16 : vector<2x1x64xf32>
    %18 = math.rsqrt %17 : vector<2x1x64xf32>
    %19 = vector.broadcast %18 : vector<2x1x64xf32> to vector<2x32x64xf32>
    %20 = arith.mulf %15, %19 : vector<2x32x64xf32>
    %21 = vector.broadcast %1 : vector<1x32x1xf32> to vector<2x32x64xf32>
    %22 = arith.mulf %20, %21 : vector<2x32x64xf32>
    %23 = vector.broadcast %2 : vector<1x32x1xf32> to vector<2x32x64xf32>
    %24 = arith.addf %22, %23 : vector<2x32x64xf32>
    %25 = vector.shape_cast %24 : vector<2x32x64xf32> to vector<64x64xf32>
    %c0_11 = arith.constant 0 : index
    %c0_12 = arith.constant 0 : index
    %26 = vector.load %arg2[%c0_11, %c0_12] : memref<96x192xf32, #tpu.memory_space<vmem>>, vector<64x192xf32>
    %c64 = arith.constant 64 : index
    %c0_13 = arith.constant 0 : index
    %27 = vector.load %arg2[%c64, %c0_13] : memref<96x192xf32, #tpu.memory_space<vmem>>, vector<32x192xf32>
    %c0_14 = arith.constant 0 : index
    %c0_15 = arith.constant 0 : index
    %28 = vector.load %arg3[%c0_14, %c0_15] : memref<288x64xf32, #tpu.memory_space<vmem>>, vector<192x64xf32>
    %cst_16 = arith.constant dense<0.000000e+00> : vector<64x192xf32>
    %29 = tpu.matmul %25, %26, %cst_16 {dimension_numbers = #tpu.dot_dimension_numbers<[1], [0], [0], [1], [0, 0, 1, 1], [], []>, precision = #tpu.contract_precision<fp32>} : vector<64x64xf32>, vector<64x192xf32>, vector<64x192xf32> -> vector<64x192xf32>
    %30 = vector.shape_cast %29 : vector<64x192xf32> to vector<2x32x192xf32>
    %31 = vector.shape_cast %27 : vector<32x192xf32> to vector<1x32x192xf32>
    %32 = vector.broadcast %31 : vector<1x32x192xf32> to vector<2x32x192xf32>
    %33 = arith.mulf %30, %32 : vector<2x32x192xf32>
    %34 = vector.shape_cast %33 : vector<2x32x192xf32> to vector<64x192xf32>
    %cst_17 = arith.constant dense<0.000000e+00> : vector<64x64xf32>
    %35 = tpu.matmul %34, %28, %cst_17 {dimension_numbers = #tpu.dot_dimension_numbers<[1], [0], [0], [1], [0, 0, 1, 1], [], []>, precision = #tpu.contract_precision<fp32>} : vector<64x192xf32>, vector<192x64xf32>, vector<64x64xf32> -> vector<64x64xf32>
    %36 = vector.shape_cast %35 : vector<64x64xf32> to vector<2x32x64xf32>
    %c2 = arith.constant 2 : index
    %c0_18 = arith.constant 0 : index
    %c0_19 = arith.constant 0 : index
    %37 = vector.load %arg1[%c2, %c0_18, %c0_19] : memref<4x32x1xf32, #tpu.memory_space<vmem>>, vector<1x32x1xf32>
    %c3 = arith.constant 3 : index
    %c0_20 = arith.constant 0 : index
    %c0_21 = arith.constant 0 : index
    %38 = vector.load %arg1[%c3, %c0_20, %c0_21] : memref<4x32x1xf32, #tpu.memory_space<vmem>>, vector<1x32x1xf32>
    %cst_22 = arith.constant dense<0.000000e+00> : vector<2x64xf32>
    %39 = vector.multi_reduction <add>, %36, %cst_22 [1] : vector<2x32x64xf32> to vector<2x64xf32>
    %40 = vector.shape_cast %39 : vector<2x64xf32> to vector<2x1x64xf32>
    %cst_23 = arith.constant 3.200000e+01 : f32
    %41 = vector.broadcast %cst_23 : f32 to vector<2x1x64xf32>
    %42 = arith.divf %40, %41 : vector<2x1x64xf32>
    %43 = vector.broadcast %42 : vector<2x1x64xf32> to vector<2x32x64xf32>
    %44 = arith.subf %36, %43 : vector<2x32x64xf32>
    %45 = arith.mulf %44, %44 : vector<2x32x64xf32>
    %cst_24 = arith.constant dense<0.000000e+00> : vector<2x64xf32>
    %46 = vector.multi_reduction <add>, %45, %cst_24 [1] : vector<2x32x64xf32> to vector<2x64xf32>
    %47 = vector.shape_cast %46 : vector<2x64xf32> to vector<2x1x64xf32>
    %cst_25 = arith.constant 3.200000e+01 : f32
    %48 = vector.broadcast %cst_25 : f32 to vector<2x1x64xf32>
    %49 = arith.divf %47, %48 : vector<2x1x64xf32>
    %50 = vector.broadcast %42 : vector<2x1x64xf32> to vector<2x32x64xf32>
    %51 = arith.subf %36, %50 : vector<2x32x64xf32>
    %cst_26 = arith.constant 9.99999974E-6 : f32
    %52 = vector.broadcast %cst_26 : f32 to vector<2x1x64xf32>
    %53 = arith.addf %49, %52 : vector<2x1x64xf32>
    %54 = math.rsqrt %53 : vector<2x1x64xf32>
    %55 = vector.broadcast %54 : vector<2x1x64xf32> to vector<2x32x64xf32>
    %56 = arith.mulf %51, %55 : vector<2x32x64xf32>
    %57 = vector.broadcast %37 : vector<1x32x1xf32> to vector<2x32x64xf32>
    %58 = arith.mulf %56, %57 : vector<2x32x64xf32>
    %59 = vector.broadcast %38 : vector<1x32x1xf32> to vector<2x32x64xf32>
    %60 = arith.addf %58, %59 : vector<2x32x64xf32>
    %61 = arith.addf %0, %60 : vector<2x32x64xf32>
    %cst_27 = arith.constant dense<0.000000e+00> : vector<2x64xf32>
    %62 = vector.multi_reduction <add>, %61, %cst_27 [1] : vector<2x32x64xf32> to vector<2x64xf32>
    %cst_28 = arith.constant 3.200000e+01 : f32
    %63 = vector.broadcast %cst_28 : f32 to vector<2x64xf32>
    %64 = arith.divf %62, %63 : vector<2x64xf32>
    %c192 = arith.constant 192 : index
    %c0_29 = arith.constant 0 : index
    %65 = vector.load %arg3[%c192, %c0_29] : memref<288x64xf32, #tpu.memory_space<vmem>>, vector<64x16xf32>
    %c256 = arith.constant 256 : index
    %c0_30 = arith.constant 0 : index
    %66 = vector.load %arg3[%c256, %c0_30] : memref<288x64xf32, #tpu.memory_space<vmem>>, vector<1x16xf32>
    %c264 = arith.constant 264 : index
    %c0_31 = arith.constant 0 : index
    %67 = vector.load %arg3[%c264, %c0_31] : memref<288x64xf32, #tpu.memory_space<vmem>>, vector<16x10xf32>
    %c280 = arith.constant 280 : index
    %c0_32 = arith.constant 0 : index
    %68 = vector.load %arg3[%c280, %c0_32] : memref<288x64xf32, #tpu.memory_space<vmem>>, vector<1x10xf32>
    %cst_33 = arith.constant dense<0.000000e+00> : vector<2x16xf32>
    %69 = tpu.matmul %64, %65, %cst_33 {dimension_numbers = #tpu.dot_dimension_numbers<[1], [0], [0], [1], [0, 0, 1, 1], [], []>, precision = #tpu.contract_precision<fp32>} : vector<2x64xf32>, vector<64x16xf32>, vector<2x16xf32> -> vector<2x16xf32>
    %70 = vector.broadcast %66 : vector<1x16xf32> to vector<2x16xf32>
    %71 = arith.addf %69, %70 : vector<2x16xf32>
    %cst_34 = arith.constant 5.000000e-01 : f32
    %72 = vector.broadcast %cst_34 : f32 to vector<2x16xf32>
    %73 = arith.mulf %72, %71 : vector<2x16xf32>
    %cst_35 = arith.constant 0.707106769 : f32
    %74 = vector.broadcast %cst_35 : f32 to vector<2x16xf32>
    %75 = arith.mulf %71, %74 : vector<2x16xf32>
    %76 = math.absf %75 : vector<2x16xf32>
    %cst_36 = arith.constant 0.327591091 : f32
    %77 = vector.broadcast %cst_36 : f32 to vector<2x16xf32>
    %78 = arith.mulf %77, %76 : vector<2x16xf32>
    %cst_37 = arith.constant 1.000000e+00 : f32
    %79 = vector.broadcast %cst_37 : f32 to vector<2x16xf32>
    %80 = arith.addf %79, %78 : vector<2x16xf32>
    %cst_38 = arith.constant 1.000000e+00 : f32
    %81 = vector.broadcast %cst_38 : f32 to vector<2x16xf32>
    %82 = arith.divf %81, %80 : vector<2x16xf32>
    %cst_39 = arith.constant 1.06140542 : f32
    %83 = vector.broadcast %cst_39 : f32 to vector<2x16xf32>
    %84 = arith.mulf %82, %83 : vector<2x16xf32>
    %cst_40 = arith.constant -1.45315206 : f32
    %85 = vector.broadcast %cst_40 : f32 to vector<2x16xf32>
    %86 = arith.addf %85, %84 : vector<2x16xf32>
    %87 = arith.mulf %82, %86 : vector<2x16xf32>
    %cst_41 = arith.constant 1.42141378 : f32
    %88 = vector.broadcast %cst_41 : f32 to vector<2x16xf32>
    %89 = arith.addf %88, %87 : vector<2x16xf32>
    %90 = arith.mulf %82, %89 : vector<2x16xf32>
    %cst_42 = arith.constant -0.284496725 : f32
    %91 = vector.broadcast %cst_42 : f32 to vector<2x16xf32>
    %92 = arith.addf %91, %90 : vector<2x16xf32>
    %93 = arith.mulf %82, %92 : vector<2x16xf32>
    %cst_43 = arith.constant 0.254829586 : f32
    %94 = vector.broadcast %cst_43 : f32 to vector<2x16xf32>
    %95 = arith.addf %94, %93 : vector<2x16xf32>
    %96 = arith.mulf %82, %95 : vector<2x16xf32>
    %cst_44 = arith.constant 0.000000e+00 : f32
    %97 = vector.broadcast %cst_44 : f32 to vector<2x16xf32>
    %98 = arith.subf %97, %76 : vector<2x16xf32>
    %99 = arith.mulf %98, %76 : vector<2x16xf32>
    %100 = math.exp %99 : vector<2x16xf32>
    %101 = arith.mulf %96, %100 : vector<2x16xf32>
    %cst_45 = arith.constant 1.000000e+00 : f32
    %102 = vector.broadcast %cst_45 : f32 to vector<2x16xf32>
    %103 = arith.subf %102, %101 : vector<2x16xf32>
    %cst_46 = arith.constant 0.000000e+00 : f32
    %104 = vector.broadcast %cst_46 : f32 to vector<2x16xf32>
    %105 = arith.cmpf oge, %75, %104 : vector<2x16xf32>
    %cst_47 = arith.constant 0.000000e+00 : f32
    %106 = vector.broadcast %cst_47 : f32 to vector<2x16xf32>
    %107 = arith.subf %106, %103 : vector<2x16xf32>
    %108 = arith.select %105, %103, %107 : vector<2x16xi1>, vector<2x16xf32>
    %cst_48 = arith.constant 1.000000e+00 : f32
    %109 = vector.broadcast %cst_48 : f32 to vector<2x16xf32>
    %110 = arith.addf %109, %108 : vector<2x16xf32>
    %111 = arith.mulf %73, %110 : vector<2x16xf32>
    %cst_49 = arith.constant dense<0.000000e+00> : vector<2x10xf32>
    %112 = tpu.matmul %111, %67, %cst_49 {dimension_numbers = #tpu.dot_dimension_numbers<[1], [0], [0], [1], [0, 0, 1, 1], [], []>, precision = #tpu.contract_precision<fp32>} : vector<2x16xf32>, vector<16x10xf32>, vector<2x10xf32> -> vector<2x10xf32>
    %113 = vector.broadcast %68 : vector<1x10xf32> to vector<2x10xf32>
    %114 = arith.addf %112, %113 : vector<2x10xf32>
    %c0_50 = arith.constant 0 : index
    %c0_51 = arith.constant 0 : index
    %115 = vector.load %arg4[%c0_50, %c0_51] : memref<2x10xf32, #tpu.memory_space<vmem>>, vector<2x10xf32>
    tpu.vector_store %arg4[%c0_50, %c0_51], %114 {strides = array<i32>} : memref<2x10xf32, #tpu.memory_space<vmem>>, vector<2x10xf32>,
    return
  }
}

</mosaic_0001>

<llo_original>
// kernel: tpu_custom_call.1
$region0: #{tpu_custom_call.1}
  #allocation0 [shape = 'u32[]', space=smem, size = 0x4, offset = 0x4, fixed_abs, tag = 'smem constant byte address 0x4 - core index']
  #allocation1 [shape = 'u32[144,128]{1,0:T(1,128)}', space=vmem, size = 0x12000, scoped, tag = 'internal scratch']
  %s0 = inlined_call_operand.vmem [shape: f32[2,32,64], index: 0, kind: input, shape index: {}]
  %s1 = inlined_call_operand.vmem [shape: f32[4,32,1], index: 1, kind: input, shape index: {}]
  %s2 = inlined_call_operand.vmem [shape: f32[96,192], index: 2, kind: input, shape index: {}]
  %s3 = inlined_call_operand.vmem [shape: f32[288,64], index: 3, kind: input, shape index: {}]
  %s4 = inlined_call_operand.hbm [shape: f32[2,10], index: 4, kind: output, shape index: {}]
  %s5 = sld [smem:[#allocation0]]
  $region26: #{tpu_custom_call.1} parent=0
    _
  %s7 = ssub.s32 1, %s5
  %s8 = scalar_select 0, %s7, %s5
  $region1: #{tpu_custom_call.1} parent=0
    #allocation2 [shape = 'u8[1024]{0}', space=vmem, size = 0x400, scoped, tag = 'output window, operand 0, single buffered']
    #allocation3 [shape = 's32[1]{0}', space=sflag, size = 0x4, scoped, tag = 'scoped memory for tpu_custom_call.1']
    %9 = vsyncpa [#allocation3], 0
    // Predicated region
    $region2: #{tpu_custom_call.1} parent=1 // pred_check
      _
    $region3: #{tpu_custom_call.1} parent=1 // pred_check_branch
      %11 = sbr.rel (0) target = $region5
    $region4: #{tpu_custom_call.1} parent=1 // pred_region
      _
    $region5: #{tpu_custom_call.1} parent=1 // pred_fallthru
      _
    // Predicated region
    $region6: #{tpu_custom_call.1} parent=1 // pred_check
      _
    $region7: #{tpu_custom_call.1} parent=1 // pred_check_branch
      %13 = sbr.rel (0) target = $region9
    $region8: #{tpu_custom_call.1} parent=1 // pred_region
      _
    $region9: #{tpu_custom_call.1} parent=1 // pred_fallthru
      _
    // Predicated region
    $region10: #{tpu_custom_call.1} parent=1 // pred_check
      _
    $region11: #{tpu_custom_call.1} parent=1 // pred_check_branch
      %15 = sbr.rel (0) target = $region13
    $region12: #{tpu_custom_call.1} parent=1 // pred_region
      _
    $region13: #{tpu_custom_call.1} parent=1 // pred_fallthru
      _
    // Predicated region
    $region14: #{tpu_custom_call.1} parent=1 // pred_check
      _
    $region15: #{tpu_custom_call.1} parent=1 // pred_check_branch
      %17 = sbr.rel (0) target = $region17
    $region16: #{tpu_custom_call.1} parent=1 // pred_region
      _
    $region17: #{tpu_custom_call.1} parent=1 // pred_fallthru
      _
    %v18 = vld [vmem:[%s0] sm:$0xff]
    %v19 = vld [vmem:[%s0 + $0x8] sm:$0xff]
    %v20 = vld [vmem:[%s0 + $0x10] sm:$0xff]
    %v21 = vld [vmem:[%s0 + $0x18] sm:$0xff]
    %v22 = vld [vmem:[%s0 + $0x20] sm:$0xff]
    %v23 = vld [vmem:[%s0 + $0x28] sm:$0xff]
    %v24 = vld [vmem:[%s0 + $0x30] sm:$0xff]
    %v25 = vld [vmem:[%s0 + $0x38] sm:$0xff]
    %v26 = vld [vmem:[%s1] sm:$0xff]
    %v27 = vld [vmem:[%s1 + $0x8] sm:$0xff]
    %v28 = vld [vmem:[%s1 + $0x10] sm:$0xff]
    %v29 = vld [vmem:[%s1 + $0x18] sm:$0xff]
    %s30 = scalar_lea.vmem %s1, 32
    %v31 = vld [vmem:[%s30] sm:$0xff]
    %v32 = vld [vmem:[%s30 + $0x8] sm:$0xff]
    %v33 = vld [vmem:[%s30 + $0x10] sm:$0xff]
    %v34 = vld [vmem:[%s30 + $0x18] sm:$0xff]
    %vm35 = vcmask 523264
    %v36 = vsel %vm35, %v18, 0.0
    %v37 = vsel %vm35, %v19, 0.0
    %v38 = vadd.f32 %v36, %v37
    %v39 = vsel %vm35, %v20, 0.0
    %v40 = vadd.f32 %v38, %v39
    %v41 = vsel %vm35, %v21, 0.0
    %v42 = vadd.f32 %v40, %v41
    %v43 = vrot.slane %v42, 4
    %v44 = vadd.f32 %v42, %v43
    %v45 = vrot.slane %v44, 2
    %v46 = vadd.f32 %v44, %v45
    %v47 = vrot.slane %v46, 1
    %v48 = vadd.f32 %v46, %v47
    %v49 = vsel %vm35, %v22, 0.0
    %v50 = vsel %vm35, %v23, 0.0
    %v51 = vadd.f32 %v49, %v50
    %v52 = vsel %vm35, %v24, 0.0
    %v53 = vadd.f32 %v51, %v52
    %v54 = vsel %vm35, %v25, 0.0
    %v55 = vadd.f32 %v53, %v54
    %v56 = vrot.slane %v55, 4
    %v57 = vadd.f32 %v55, %v56
    %v58 = vrot.slane %v57, 2
    %v59 = vadd.f32 %v57, %v58
    %v60 = vrot.slane %v59, 1
    %v61 = vadd.f32 %v59, %v60
    %v62 = vrcp.pop 32.0
    %v63 = vmul.f32 %v48, %v62
    %v64 = vmul.f32 %v61, %v62
    %v65 = vsub.f32 %v18, %v63
    %v66 = vsub.f32 %v19, %v63
    %v67 = vsub.f32 %v20, %v63
    %v68 = vsub.f32 %v21, %v63
    %v69 = vsub.f32 %v22, %v64
    %v70 = vsub.f32 %v23, %v64
    %v71 = vsub.f32 %v24, %v64
    %v72 = vsub.f32 %v25, %v64
    %v73 = vmul.f32 %v65, %v65
    %v74 = vmul.f32 %v66, %v66
    %v75 = vmul.f32 %v67, %v67
    %v76 = vmul.f32 %v68, %v68
    %v77 = vmul.f32 %v69, %v69
    %v78 = vmul.f32 %v70, %v70
    %v79 = vmul.f32 %v71, %v71
    %v80 = vmul.f32 %v72, %v72
    %v81 = vsel %vm35, %v73, 0.0
    %v82 = vsel %vm35, %v74, 0.0
    %v83 = vadd.f32 %v81, %v82
    %v84 = vsel %vm35, %v75, 0.0
    %v85 = vadd.f32 %v83, %v84
    %v86 = vsel %vm35, %v76, 0.0
    %v87 = vadd.f32 %v85, %v86
    %v88 = vrot.slane %v87, 4
    %v89 = vadd.f32 %v87, %v88
    %v90 = vrot.slane %v89, 2
    %v91 = vadd.f32 %v89, %v90
    %v92 = vrot.slane %v91, 1
    %v93 = vadd.f32 %v91, %v92
    %v94 = vsel %vm35, %v77, 0.0
    %v95 = vsel %vm35, %v78, 0.0
    %v96 = vadd.f32 %v94, %v95
    %v97 = vsel %vm35, %v79, 0.0
    %v98 = vadd.f32 %v96, %v97
    %v99 = vsel %vm35, %v80, 0.0
    %v100 = vadd.f32 %v98, %v99
    %v101 = vrot.slane %v100, 4
    %v102 = vadd.f32 %v100, %v101
    %v103 = vrot.slane %v102, 2
    %v104 = vadd.f32 %v102, %v103
    %v105 = vrot.slane %v104, 1
    %v106 = vadd.f32 %v104, %v105
    %v107 = vmul.f32 %v93, %v62
    %v108 = vmul.f32 %v106, %v62
    %v109 = vadd.f32 %v107, 1e-05
    %v110 = vadd.f32 %v108, 1e-05
    %v111 = vrsqrt.pop %v109
    %v112 = vrsqrt.pop %v110
    %v113 = vmul.f32 %v65, %v111
    %v114 = vmul.f32 %v66, %v111
    %v115 = vmul.f32 %v67, %v111
    %v116 = vmul.f32 %v68, %v111
    %v117 = vmul.f32 %v69, %v112
    %v118 = vmul.f32 %v70, %v112
    %v119 = vmul.f32 %v71, %v112
    %v120 = vmul.f32 %v72, %v112
    %122 = vset.pattern.permute.xlu0 0
    %123 = vperm.xlu0 %122, %v26
    %v124 = vpop.permute.xlu0 %123
    %127 = vset.pattern.permute.xlu0 0
    %128 = vperm.xlu0 %127, %v27
    %v129 = vpop.permute.xlu0 %128
    %132 = vset.pattern.permute.xlu0 0
    %133 = vperm.xlu0 %132, %v28
    %v134 = vpop.permute.xlu0 %133
    %137 = vset.pattern.permute.xlu0 0
    %138 = vperm.xlu0 %137, %v29
    %v139 = vpop.permute.xlu0 %138
    %v141 = vmul.f32 %v113, %v124
    %v142 = vmul.f32 %v114, %v129
    %v143 = vmul.f32 %v115, %v134
    %v144 = vmul.f32 %v116, %v139
    %v145 = vmul.f32 %v117, %v124
    %v146 = vmul.f32 %v118, %v129
    %v147 = vmul.f32 %v119, %v134
    %v148 = vmul.f32 %v120, %v139
    %150 = vset.pattern.permute.xlu0 0
    %151 = vperm.xlu0 %150, %v31
    %v152 = vpop.permute.xlu0 %151
    %155 = vset.pattern.permute.xlu0 0
    %156 = vperm.xlu0 %155, %v32
    %v157 = vpop.permute.xlu0 %156
    %160 = vset.pattern.permute.xlu0 0
    %161 = vperm.xlu0 %160, %v33
    %v162 = vpop.permute.xlu0 %161
    %165 = vset.pattern.permute.xlu0 0
    %166 = vperm.xlu0 %165, %v34
    %v167 = vpop.permute.xlu0 %166
    %v169 = vadd.f32 %v141, %v152
    %v170 = vadd.f32 %v142, %v157
    %v171 = vadd.f32 %v143, %v162
    %v172 = vadd.f32 %v144, %v167
    %v173 = vadd.f32 %v145, %v152
    %v174 = vadd.f32 %v146, %v157
    %v175 = vadd.f32 %v147, %v162
    %v176 = vadd.f32 %v148, %v167
    %v177 = vld [vmem:[%s2] sm:$0xff]
    %v178 = vld [vmem:[%s2 + $0x8] sm:$0xff]
    %v179 = vld [vmem:[%s2 + $0x10] sm:$0xff]
    %v180 = vld [vmem:[%s2 + $0x18] sm:$0xff]
    %v181 = vld [vmem:[%s2 + $0x20] sm:$0xff]
    %v182 = vld [vmem:[%s2 + $0x28] sm:$0xff]
    %v183 = vld [vmem:[%s2 + $0x30] sm:$0xff]
    %v184 = vld [vmem:[%s2 + $0x38] sm:$0xff]
    %v185 = vld [vmem:[%s2 + $0x40] sm:$0xff]
    %v186 = vld [vmem:[%s2 + $0x48] sm:$0xff]
    %v187 = vld [vmem:[%s2 + $0x50] sm:$0xff]
    %v188 = vld [vmem:[%s2 + $0x58] sm:$0xff]
    %v189 = vld [vmem:[%s2 + $0x60] sm:$0xff]
    %v190 = vld [vmem:[%s2 + $0x68] sm:$0xff]
    %v191 = vld [vmem:[%s2 + $0x70] sm:$0xff]
    %v192 = vld [vmem:[%s2 + $0x78] sm:$0xff]
    %v193 = vld [vmem:[%s2 + $0x80] sm:$0xff]
    %v194 = vld [vmem:[%s2 + $0x88] sm:$0xff]
    %v195 = vld [vmem:[%s2 + $0x90] sm:$0xff]
    %v196 = vld [vmem:[%s2 + $0x98] sm:$0xff]
    %v197 = vld [vmem:[%s2 + $0xa0] sm:$0xff]
    %v198 = vld [vmem:[%s2 + $0xa8] sm:$0xff]
    %v199 = vld [vmem:[%s2 + $0xb0] sm:$0xff]
    %v200 = vld [vmem:[%s2 + $0xb8] sm:$0xff]
    %v201 = vld [vmem:[%s3] sm:$0xff]
    %v202 = vld [vmem:[%s3 + $0x8] sm:$0xff]
    %v203 = vld [vmem:[%s3 + $0x10] sm:$0xff]
    %v204 = vld [vmem:[%s3 + $0x18] sm:$0xff]
    %v205 = vld [vmem:[%s3 + $0x20] sm:$0xff]
    %v206 = vld [vmem:[%s3 + $0x28] sm:$0xff]
    %v207 = vld [vmem:[%s3 + $0x30] sm:$0xff]
    %v208 = vld [vmem:[%s3 + $0x38] sm:$0xff]
    %v209 = vld [vmem:[%s3 + $0x40] sm:$0xff]
    %v210 = vld [vmem:[%s3 + $0x48] sm:$0xff]
    %v211 = vld [vmem:[%s3 + $0x50] sm:$0xff]
    %v212 = vld [vmem:[%s3 + $0x58] sm:$0xff]
    %v213 = vld [vmem:[%s3 + $0x60] sm:$0xff]
    %v214 = vld [vmem:[%s3 + $0x68] sm:$0xff]
    %v215 = vld [vmem:[%s3 + $0x70] sm:$0xff]
    %v216 = vld [vmem:[%s3 + $0x78] sm:$0xff]
    %v217 = vld [vmem:[%s3 + $0x80] sm:$0xff]
    %v218 = vld [vmem:[%s3 + $0x88] sm:$0xff]
    %v219 = vld [vmem:[%s3 + $0x90] sm:$0xff]
    %v220 = vld [vmem:[%s3 + $0x98] sm:$0xff]
    %v221 = vld [vmem:[%s3 + $0xa0] sm:$0xff]
    %v222 = vld [vmem:[%s3 + $0xa8] sm:$0xff]
    %v223 = vld [vmem:[%s3 + $0xb0] sm:$0xff]
    %v224 = vld [vmem:[%s3 + $0xb8] sm:$0xff]
    %v226 = vsel %vm35, %v169, 0
    %v229 = vsel %vm35, %v170, 0
    %v232 = vsel %vm35, %v171, 0
    %v235 = vsel %vm35, %v172, 0
    %v238 = vsel %vm35, %v173, 0
    %v241 = vsel %vm35, %v174, 0
    %v244 = vsel %vm35, %v175, 0
    %v247 = vsel %vm35, %v176, 0
    %v249 = vand.u32 %v178, 4294901760
    %250 = vmatprep.subr.mxu0 %v249
    %v251 = vand.u32 %v177, 4294901760
    %252 = vmatpush1.msra.mxu0 %v251
    %v253 = vand.u32 %v180, 4294901760
    %254 = vmatprep.subr.mxu0 %v253
    %v255 = vand.u32 %v179, 4294901760
    %256 = vmatpush1.msra.mxu0 %v255
    %v257 = vand.u32 %v182, 4294901760
    %258 = vmatprep.subr.mxu0 %v257
    %v259 = vand.u32 %v181, 4294901760
    %260 = vmatpush1.msra.mxu0 %v259
    %v261 = vand.u32 %v184, 4294901760
    %262 = vmatprep.subr.mxu0 %v261
    %v263 = vand.u32 %v183, 4294901760
    %264 = vmatpush1.msra.mxu0 %v263
    %v265 = vand.u32 %v186, 4294901760
    %266 = vmatprep.subr.mxu0 %v265
    %v267 = vand.u32 %v185, 4294901760
    %268 = vmatpush1.msra.mxu0 %v267
    %v269 = vand.u32 %v188, 4294901760
    %270 = vmatprep.subr.mxu0 %v269
    %v271 = vand.u32 %v187, 4294901760
    %272 = vmatpush1.msra.mxu0 %v271
    %v273 = vand.u32 %v190, 4294901760
    %274 = vmatprep.subr.mxu0 %v273
    %v275 = vand.u32 %v189, 4294901760
    %276 = vmatpush1.msra.mxu0 %v275
    %v277 = vand.u32 %v192, 4294901760
    %278 = vmatprep.subr.mxu0 %v277
    %v279 = vand.u32 %v191, 4294901760
    %280 = vmatpush1.msra.mxu0 %v279
    %281 = vmatprep.subr.mxu0 0.0
    %282 = vmatpush1.msra.mxu0 0.0
    %283 = vmatprep.subr.mxu0 0.0
    %284 = vmatpush1.msra.mxu0 0.0
    %285 = vmatprep.subr.mxu0 0.0
    %286 = vmatpush1.msra.mxu0 0.0
    %287 = vmatprep.subr.mxu0 0.0
    %288 = vmatpush1.msra.mxu0 0.0
    %289 = vmatprep.subr.mxu0 0.0
    %290 = vmatpush1.msra.mxu0 0.0
    %291 = vmatprep.subr.mxu0 0.0
    %292 = vmatpush1.msra.mxu0 0.0
    %293 = vmatprep.subr.mxu0 0.0
    %294 = vmatpush1.msra.mxu0 0.0
    %295 = vmatprep.subr.mxu0 0.0
    %296 = vmatpush1.msra.mxu0 0.0
    %297 = vmatprep.subr.mxu0 0.0
    %298 = vmatpush1.msra.mxu0 0.0
    %299 = vmatprep.subr.mxu0 0.0
    %300 = vmatpush1.msra.mxu0 0.0
    %301 = vmatprep.subr.mxu0 0.0
    %302 = vmatpush1.msra.mxu0 0.0
    %303 = vmatprep.subr.mxu0 0.0
    %304 = vmatpush1.msra.mxu0 0.0
    %305 = vmatprep.subr.mxu0 0.0
    %306 = vmatpush1.msra.mxu0 0.0
    %307 = vmatprep.subr.mxu0 0.0
    %308 = vmatpush1.msra.mxu0 0.0
    %309 = vmatprep.subr.mxu0 0.0
    %310 = vmatpush1.msra.mxu0 0.0
    %311 = vmatprep.subr.mxu0 0.0
    %312 = vmatpush1.msra.mxu0 0.0
    %313 = vmatprep.subr.mxu0 0.0
    %314 = vmatpush1.msra.mxu0 0.0
    %315 = vmatprep.subr.mxu0 0.0
    %316 = vmatpush1.msra.mxu0 0.0
    %317 = vmatprep.subr.mxu0 0.0
    %318 = vmatpush1.msra.mxu0 0.0
    %319 = vmatprep.subr.mxu0 0.0
    %320 = vmatpush1.msra.mxu0 0.0
    %321 = vmatprep.subr.mxu0 0.0
    %322 = vmatpush1.msra.mxu0 0.0
    %323 = vmatprep.subr.mxu0 0.0
    %324 = vmatpush1.msra.mxu0 0.0
    %325 = vmatprep.subr.mxu0 0.0
    %326 = vmatpush1.msra.mxu0 0.0
    %327 = vmatprep.subr.mxu0 0.0
    %328 = vmatpush1.msra.mxu0 0.0
    %329 = vmatprep.mubr.f32.mxu0 0.0
    %v330 = vand.u32 %v226, 4294901760
    %v331 = vsub.f32 %v226, %v330
    %v332 = vand.u32 %v331, 4294901760
    %v333 = vsub.f32 %v331, %v332
    %v334 = vand.u32 %v333, 4294901760
    %335 = vmatmul.mubr.f32.gmra.mrb[0].mxu0 %v334
    %v336 = vpop.f32.mrb[0].mxu0
    %v337 = vadd.f32 0.0, %v336
    %v338 = vpop.f32.mrb[0].mxu0
    %v339 = vadd.f32 0.0, %v338
    %340 = vmatprep.mubr.f32.mxu0 0.0
    %v341 = vand.u32 %v229, 4294901760
    %v342 = vsub.f32 %v229, %v341
    %v343 = vand.u32 %v342, 4294901760
    %v344 = vsub.f32 %v342, %v343
    %v345 = vand.u32 %v344, 4294901760
    %346 = vmatmul.mubr.f32.gmra.mrb[0].mxu0 %v345
    %v347 = vpop.f32.mrb[0].mxu0
    %v348 = vadd.f32 0.0, %v347
    %v349 = vpop.f32.mrb[0].mxu0
    %v350 = vadd.f32 0.0, %v349
    %351 = vmatprep.mubr.f32.mxu0 0.0
    %v352 = vand.u32 %v232, 4294901760
    %v353 = vsub.f32 %v232, %v352
    %v354 = vand.u32 %v353, 4294901760
    %v355 = vsub.f32 %v353, %v354
    %v356 = vand.u32 %v355, 4294901760
    %357 = vmatmul.mubr.f32.gmra.mrb[0].mxu0 %v356
    %v358 = vpop.f32.mrb[0].mxu0
    %v359 = vadd.f32 0.0, %v358
    %v360 = vpop.f32.mrb[0].mxu0
    %v361 = vadd.f32 0.0, %v360
    %362 = vmatprep.mubr.f32.mxu0 0.0
    %v363 = vand.u32 %v235, 4294901760
    %v364 = vsub.f32 %v235, %v363
    %v365 = vand.u32 %v364, 4294901760
    %v366 = vsub.f32 %v364, %v365
    %v367 = vand.u32 %v366, 4294901760
    %368 = vmatmul.mubr.f32.gmra.mrb[0].mxu0 %v367
    %v369 = vpop.f32.mrb[0].mxu0
    %v370 = vadd.f32 0.0, %v369
    %v371 = vpop.f32.mrb[0].mxu0
    %v372 = vadd.f32 0.0, %v371
    %373 = vmatprep.mubr.f32.mxu0 0.0
    %v374 = vand.u32 %v238, 4294901760
    %v375 = vsub.f32 %v238, %v374
    %v376 = vand.u32 %v375, 4294901760
    %v377 = vsub.f32 %v375, %v376
    %v378 = vand.u32 %v377, 4294901760
    %379 = vmatmul.mubr.f32.gmra.mrb[0].mxu0 %v378
    %v380 = vpop.f32.mrb[0].mxu0
    %v381 = vadd.f32 0.0, %v380
    %v382 = vpop.f32.mrb[0].mxu0
    %v383 = vadd.f32 0.0, %v382
    %384 = vmatprep.mubr.f32.mxu0 0.0
    %v385 = vand.u32 %v241, 4294901760
    %v386 = vsub.f32 %v241, %v385
    %v387 = vand.u32 %v386, 4294901760
    %v388 = vsub.f32 %v386, %v387
    %v389 = vand.u32 %v388, 4294901760
    %390 = vmatmul.mubr.f32.gmra.mrb[0].mxu0 %v389
    %v391 = vpop.f32.mrb[0].mxu0
    %v392 = vadd.f32 0.0, %v391
    %v393 = vpop.f32.mrb[0].mxu0
    %v394 = vadd.f32 0.0, %v393
    %395 = vmatprep.mubr.f32.mxu0 0.0
    %v396 = vand.u32 %v244, 4294901760
    %v397 = vsub.f32 %v244, %v396
    %v398 = vand.u32 %v397, 4294901760
    %v399 = vsub.f32 %v397, %v398
    %v400 = vand.u32 %v399, 4294901760
    %401 = vmatmul.mubr.f32.gmra.mrb[0].mxu0 %v400
    %v402 = vpop.f32.mrb[0].mxu0
    %v403 = vadd.f32 0.0, %v402
    %v404 = vpop.f32.mrb[0].mxu0
    %v405 = vadd.f32 0.0, %v404
    %406 = vmatprep.mubr.f32.mxu0 0.0
    %v407 = vand.u32 %v247, 4294901760
    %v408 = vsub.f32 %v247, %v407
    %v409 = vand.u32 %v408, 4294901760
    %v410 = vsub.f32 %v408, %v409
    %v411 = vand.u32 %v410, 4294901760
    %412 = vmatmul.mubr.f32.gmra.mrb[0].mxu0 %v411
    %v413 = vpop.f32.mrb[0].mxu0
    %v414 = vadd.f32 0.0, %v413
    %v415 = vpop.f32.mrb[0].mxu0
    %v416 = vadd.f32 0.0, %v415
    %417 = vdwg.mxu0
    %v418 = vand.u32 %v178, 4294901760
    %v419 = vsub.f32 %v178, %v418
    %v420 = vand.u32 %v419, 4294901760
    %v421 = vsub.f32 %v419, %v420
    %v422 = vand.u32 %v421, 4294901760
    %423 = vmatprep.subr.mxu0 %v422
    %v424 = vand.u32 %v177, 4294901760
    %v425 = vsub.f32 %v177, %v424
    %v426 = vand.u32 %v425, 4294901760
    %v427 = vsub.f32 %v425, %v426
    %v428 = vand.u32 %v427, 4294901760
    %429 = vmatpush1.msra.mxu0 %v428
    %v430 = vand.u32 %v180, 4294901760
    %v431 = vsub.f32 %v180, %v430
    %v432 = vand.u32 %v431, 4294901760
    %v433 = vsub.f32 %v431, %v432
    %v434 = vand.u32 %v433, 4294901760
    %435 = vmatprep.subr.mxu0 %v434
    %v436 = vand.u32 %v179, 4294901760
    %v437 = vsub.f32 %v179, %v436
    %v438 = vand.u32 %v437, 4294901760
    %v439 = vsub.f32 %v437, %v438
    %v440 = vand.u32 %v439, 4294901760
    %441 = vmatpush1.msra.mxu0 %v440
    %v442 = vand.u32 %v182, 4294901760
    %v443 = vsub.f32 %v182, %v442
    %v444 = vand.u32 %v443, 4294901760
    %v445 = vsub.f32 %v443, %v444
    %v446 = vand.u32 %v445, 4294901760
    %447 = vmatprep.subr.mxu0 %v446
    %v448 = vand.u32 %v181, 4294901760
    %v449 = vsub.f32 %v181, %v448
    %v450 = vand.u32 %v449, 4294901760
    %v451 = vsub.f32 %v449, %v450
    %v452 = vand.u32 %v451, 4294901760
    %453 = vmatpush1.msra.mxu0 %v452
    %v454 = vand.u32 %v184, 4294901760
    %v455 = vsub.f32 %v184, %v454
    %v456 = vand.u32 %v455, 4294901760
    %v457 = vsub.f32 %v455, %v456
    %v458 = vand.u32 %v457, 4294901760
    %459 = vmatprep.subr.mxu0 %v458
    %v460 = vand.u32 %v183, 4294901760
    %v461 = vsub.f32 %v183, %v460
    %v462 = vand.u32 %v461, 4294901760
    %v463 = vsub.f32 %v461, %v462
    %v464 = vand.u32 %v463, 4294901760
    %465 = vmatpush1.msra.mxu0 %v464
    %v466 = vand.u32 %v186, 4294901760
    %v467 = vsub.f32 %v186, %v466
    %v468 = vand.u32 %v467, 4294901760
    %v469 = vsub.f32 %v467, %v468
    %v470 = vand.u32 %v469, 4294901760
    %471 = vmatprep.subr.mxu0 %v470
    %v472 = vand.u32 %v185, 4294901760
    %v473 = vsub.f32 %v185, %v472
    %v474 = vand.u32 %v473, 4294901760
    %v475 = vsub.f32 %v473, %v474
    %v476 = vand.u32 %v475, 4294901760
    %477 = vmatpush1.msra.mxu0 %v476
    %v478 = vand.u32 %v188, 4294901760
    %v479 = vsub.f32 %v188, %v478
    %v480 = vand.u32 %v479, 4294901760
    %v481 = vsub.f32 %v479, %v480
    %v482 = vand.u32 %v481, 4294901760
    %483 = vmatprep.subr.mxu0 %v482
    %v484 = vand.u32 %v187, 4294901760
    %v485 = vsub.f32 %v187, %v484
    %v486 = vand.u32 %v485, 4294901760
    %v487 = vsub.f32 %v485, %v486
    %v488 = vand.u32 %v487, 4294901760
    %489 = vmatpush1.msra.mxu0 %v488
    %v490 = vand.u32 %v190, 4294901760
    %v491 = vsub.f32 %v190, %v490
    %v492 = vand.u32 %v491, 4294901760
    %v493 = vsub.f32 %v491, %v492
    %v494 = vand.u32 %v493, 4294901760
    %495 = vmatprep.subr.mxu0 %v494
    %v496 = vand.u32 %v189, 4294901760
    %v497 = vsub.f32 %v189, %v496
    %v498 = vand.u32 %v497, 4294901760
    %v499 = vsub.f32 %v497, %v498
    %v500 = vand.u32 %v499, 4294901760
    %501 = vmatpush1.msra.mxu0 %v500
    %v502 = vand.u32 %v192, 4294901760
    %v503 = vsub.f32 %v192, %v502
    %v504 = vand.u32 %v503, 4294901760
    %v505 = vsub.f32 %v503, %v504
    %v506 = vand.u32 %v505, 4294901760
    %507 = vmatprep.subr.mxu0 %v506
    %v508 = vand.u32 %v191, 4294901760
    %v509 = vsub.f32 %v191, %v508
    %v510 = vand.u32 %v509, 4294901760
    %v511 = vsub.f32 %v509, %v510
    %v512 = vand.u32 %v511, 4294901760
    %513 = vmatpush1.msra.mxu0 %v512
    %514 = vmatprep.subr.mxu0 0.0
    %515 = vmatpush1.msra.mxu0 0.0
    %516 = vmatprep.subr.mxu0 0.0
    %517 = vmatpush1.msra.mxu0 0.0
    %518 = vmatprep.subr.mxu0 0.0
    %519 = vmatpush1.msra.mxu0 0.0
    %520 = vmatprep.subr.mxu0 0.0
    %521 = vmatpush1.msra.mxu0 0.0
    %522 = vmatprep.subr.mxu0 0.0
    %523 = vmatpush1.msra.mxu0 0.0
    %524 = vmatprep.subr.mxu0 0.0
    %525 = vmatpush1.msra.mxu0 0.0
    %526 = vmatprep.subr.mxu0 0.0
    %527 = vmatpush1.msra.mxu0 0.0
    %528 = vmatprep.subr.mxu0 0.0
    %529 = vmatpush1.msra.mxu0 0.0
    %530 = vmatprep.subr.mxu0 0.0
    %531 = vmatpush1.msra.mxu0 0.0
    %532 = vmatprep.subr.mxu0 0.0
    %533 = vmatpush1.msra.mxu0 0.0
    %534 = vmatprep.subr.mxu0 0.0
    %535 = vmatpush1.msra.mxu0 0.0
    %536 = vmatprep.subr.mxu0 0.0
    %537 = vmatpush1.msra.mxu0 0.0
    %538 = vmatprep.subr.mxu0 0.0
    %539 = vmatpush1.msra.mxu0 0.0
    %540 = vmatprep.subr.mxu0 0.0
    %541 = vmatpush1.msra.mxu0 0.0
    %542 = vmatprep.subr.mxu0 0.0
    %543 = vmatpush1.msra.mxu0 0.0
    %544 = vmatprep.subr.mxu0 0.0
    %545 = vmatpush1.msra.mxu0 0.0
    %546 = vmatprep.subr.mxu0 0.0
    %547 = vmatpush1.msra.mxu0 0.0
    %548 = vmatprep.subr.mxu0 0.0
    %549 = vmatpush1.msra.mxu0 0.0
    %550 = vmatprep.subr.mxu0 0.0
    %551 = vmatpush1.msra.mxu0 0.0
    %552 = vmatprep.subr.mxu0 0.0
    %553 = vmatpush1.msra.mxu0 0.0
    %554 = vmatprep.subr.mxu0 0.0
    %555 = vmatpush1.msra.mxu0 0.0
    %556 = vmatprep.subr.mxu0 0.0
    %557 = vmatpush1.msra.mxu0 0.0
    %558 = vmatprep.subr.mxu0 0.0
    %559 = vmatpush1.msra.mxu0 0.0
    %560 = vmatprep.subr.mxu0 0.0
    %561 = vmatpush1.msra.mxu0 0.0
    %562 = vmatprep.mubr.f32.mxu0 0.0
    %v563 = vand.u32 %v226, 4294901760
    %564 = vmatmul.mubr.f32.gmra.mrb[0].mxu0 %v563
    %v565 = vpop.f32.mrb[0].mxu0
    %v566 = vadd.f32 %v337, %v565
    %v567 = vpop.f32.mrb[0].mxu0
    %v568 = vadd.f32 %v339, %v567
    %569 = vmatprep.mubr.f32.mxu0 0.0
    %v570 = vand.u32 %v229, 4294901760
    %571 = vmatmul.mubr.f32.gmra.mrb[0].mxu0 %v570
    %v572 = vpop.f32.mrb[0].mxu0
    %v573 = vadd.f32 %v348, %v572
    %v574 = vpop.f32.mrb[0].mxu0
    %v575 = vadd.f32 %v350, %v574
    %576 = vmatprep.mubr.f32.mxu0 0.0
    %v577 = vand.u32 %v232, 4294901760
    %578 = vmatmul.mubr.f32.gmra.mrb[0].mxu0 %v577
    %v579 = vpop.f32.mrb[0].mxu0
    %v580 = vadd.f32 %v359, %v579
    %v581 = vpop.f32.mrb[0].mxu0
    %v582 = vadd.f32 %v361, %v581
    %583 = vmatprep.mubr.f32.mxu0 0.0
    %v584 = vand.u32 %v235, 4294901760
    %585 = vmatmul.mubr.f32.gmra.mrb[0].mxu0 %v584
    %v586 = vpop.f32.mrb[0].mxu0
    %v587 = vadd.f32 %v370, %v586
    %v588 = vpop.f32.mrb[0].mxu0
    %v589 = vadd.f32 %v372, %v588
    %590 = vmatprep.mubr.f32.mxu0 0.0
    %v591 = vand.u32 %v238, 4294901760
    %592 = vmatmul.mubr.f32.gmra.mrb[0].mxu0 %v591
    %v593 = vpop.f32.mrb[0].mxu0
    %v594 = vadd.f32 %v381, %v593
    %v595 = vpop.f32.mrb[0].mxu0
    %v596 = vadd.f32 %v383, %v595
    %597 = vmatprep.mubr.f32.mxu0 0.0
    %v598 = vand.u32 %v241, 4294901760
    %599 = vmatmul.mubr.f32.gmra.mrb[0].mxu0 %v598
    %v600 = vpop.f32.mrb[0].mxu0
    %v601 = vadd.f32 %v392, %v600
    %v602 = vpop.f32.mrb[0].mxu0
    %v603 = vadd.f32 %v394, %v602
    %604 = vmatprep.mubr.f32.mxu0 0.0
    %v605 = vand.u32 %v244, 4294901760
    %606 = vmatmul.mubr.f32.gmra.mrb[0].mxu0 %v605
    %v607 = vpop.f32.mrb[0].mxu0
    %v608 = vadd.f32 %v403, %v607
    %v609 = vpop.f32.mrb[0].mxu0
    %v610 = vadd.f32 %v405, %v609
    %611 = vmatprep.mubr.f32.mxu0 0.0
    %v612 = vand.u32 %v247, 4294901760
    %613 = vmatmul.mubr.f32.gmra.mrb[0].mxu0 %v612
    %v614 = vpop.f32.mrb[0].mxu0
    %v615 = vadd.f32 %v414, %v614
    %v616 = vpop.f32.mrb[0].mxu0
    %v617 = vadd.f32 %v416, %v616
    %618 = vdwg.mxu0
    %v619 = vand.u32 %v178, 4294901760
    %v620 = vsub.f32 %v178, %v619
    %621 = vmatprep.subr.mxu0 %v620
    %v622 = vand.u32 %v177, 4294901760
    %v623 = vsub.f32 %v177, %v622
    %624 = vmatpush1.msra.mxu0 %v623
    %v625 = vand.u32 %v180, 4294901760
    %v626 = vsub.f32 %v180, %v625
    %627 = vmatprep.subr.mxu0 %v626
    %v628 = vand.u32 %v179, 4294901760
    %v629 = vsub.f32 %v179, %v628
    %630 = vmatpush1.msra.mxu0 %v629
    %v631 = vand.u32 %v182, 4294901760
    %v632 = vsub.f32 %v182, %v631
    %633 = vmatprep.subr.mxu0 %v632
    %v634 = vand.u32 %v181, 4294901760
    %v635 = vsub.f32 %v181, %v634
    %636 = vmatpush1.msra.mxu0 %v635
    %v637 = vand.u32 %v184, 4294901760
    %v638 = vsub.f32 %v184, %v637
    %639 = vmatprep.subr.mxu0 %v638
    %v640 = vand.u32 %v183, 4294901760
    %v641 = vsub.f32 %v183, %v640
    %642 = vmatpush1.msra.mxu0 %v641
    %v643 = vand.u32 %v186, 4294901760
    %v644 = vsub.f32 %v186, %v643
    %645 = vmatprep.subr.mxu0 %v644
    %v646 = vand.u32 %v185, 4294901760
    %v647 = vsub.f32 %v185, %v646
    %648 = vmatpush1.msra.mxu0 %v647
    %v649 = vand.u32 %v188, 4294901760
    %v650 = vsub.f32 %v188, %v649
    %651 = vmatprep.subr.mxu0 %v650
    %v652 = vand.u32 %v187, 4294901760
    %v653 = vsub.f32 %v187, %v652
    %654 = vmatpush1.msra.mxu0 %v653
    %v655 = vand.u32 %v190, 4294901760
    %v656 = vsub.f32 %v190, %v655
    %657 = vmatprep.subr.mxu0 %v656
    %v658 = vand.u32 %v189, 4294901760
    %v659 = vsub.f32 %v189, %v658
    %660 = vmatpush1.msra.mxu0 %v659
    %v661 = vand.u32 %v192, 4294901760
    %v662 = vsub.f32 %v192, %v661
    %663 = vmatprep.subr.mxu0 %v662
    %v664 = vand.u32 %v191, 4294901760
    %v665 = vsub.f32 %v191, %v664
    %666 = vmatpush1.msra.mxu0 %v665
    %667 = vmatprep.subr.mxu0 0.0
    %668 = vmatpush1.msra.mxu0 0.0
    %669 = vmatprep.subr.mxu0 0.0
    %670 = vmatpush1.msra.mxu0 0.0
    %671 = vmatprep.subr.mxu0 0.0
    %672 = vmatpush1.msra.mxu0 0.0
    %673 = vmatprep.subr.mxu0 0.0
    %674 = vmatpush1.msra.mxu0 0.0
    %675 = vmatprep.subr.mxu0 0.0
    %676 = vmatpush1.msra.mxu0 0.0
    %677 = vmatprep.subr.mxu0 0.0
    %678 = vmatpush1.msra.mxu0 0.0
    %679 = vmatprep.subr.mxu0 0.0
    %680 = vmatpush1.msra.mxu0 0.0
    %681 = vmatprep.subr.mxu0 0.0
    %682 = vmatpush1.msra.mxu0 0.0
    %683 = vmatprep.subr.mxu0 0.0
    %684 = vmatpush1.msra.mxu0 0.0
    %685 = vmatprep.subr.mxu0 0.0
    %686 = vmatpush1.msra.mxu0 0.0
    %687 = vmatprep.subr.mxu0 0.0
    %688 = vmatpush1.msra.mxu0 0.0
    %689 = vmatprep.subr.mxu0 0.0
    %690 = vmatpush1.msra.mxu0 0.0
    %691 = vmatprep.subr.mxu0 0.0
    %692 = vmatpush1.msra.mxu0 0.0
    %693 = vmatprep.subr.mxu0 0.0
    %694 = vmatpush1.msra.mxu0 0.0
    %695 = vmatprep.subr.mxu0 0.0
    %696 = vmatpush1.msra.mxu0 0.0
    %697 = vmatprep.subr.mxu0 0.0
    %698 = vmatpush1.msra.mxu0 0.0
    %699 = vmatprep.subr.mxu0 0.0
    %700 = vmatpush1.msra.mxu0 0.0
    %701 = vmatprep.subr.mxu0 0.0
    %702 = vmatpush1.msra.mxu0 0.0
    %703 = vmatprep.subr.mxu0 0.0
    %704 = vmatpush1.msra.mxu0 0.0
    %705 = vmatprep.subr.mxu0 0.0
    %706 = vmatpush1.msra.mxu0 0.0
    %707 = vmatprep.subr.mxu0 0.0
    %708 = vmatpush1.msra.mxu0 0.0
    %709 = vmatprep.subr.mxu0 0.0
    %710 = vmatpush1.msra.mxu0 0.0
    %711 = vmatprep.subr.mxu0 0.0
    %712 = vmatpush1.msra.mxu0 0.0
    %713 = vmatprep.subr.mxu0 0.0
    %714 = vmatpush1.msra.mxu0 0.0
    %715 = vmatprep.mubr.f32.mxu0 0.0
    %v716 = vand.u32 %v226, 4294901760
    %v717 = vsub.f32 %v226, %v716
    %718 = vmatmul.mubr.f32.gmra.mrb[0].mxu0 %v717
    %v719 = vpop.f32.mrb[0].mxu0
    %v720 = vadd.f32 %v566, %v719
    %v721 = vpop.f32.mrb[0].mxu0
    %v722 = vadd.f32 %v568, %v721
    %723 = vmatprep.mubr.f32.mxu0 0.0
    %v724 = vand.u32 %v229, 4294901760
    %v725 = vsub.f32 %v229, %v724
    %726 = vmatmul.mubr.f32.gmra.mrb[0].mxu0 %v725
    %v727 = vpop.f32.mrb[0].mxu0
    %v728 = vadd.f32 %v573, %v727
    %v729 = vpop.f32.mrb[0].mxu0
    %v730 = vadd.f32 %v575, %v729
    %731 = vmatprep.mubr.f32.mxu0 0.0
    %v732 = vand.u32 %v232, 4294901760
    %v733 = vsub.f32 %v232, %v732
    %734 = vmatmul.mubr.f32.gmra.mrb[0].mxu0 %v733
    %v735 = vpop.f32.mrb[0].mxu0
    %v736 = vadd.f32 %v580, %v735
    %v737 = vpop.f32.mrb[0].mxu0
    %v738 = vadd.f32 %v582, %v737
    %739 = vmatprep.mubr.f32.mxu0 0.0
    %v740 = vand.u32 %v235, 4294901760
    %v741 = vsub.f32 %v235, %v740
    %742 = vmatmul.mubr.f32.gmra.mrb[0].mxu0 %v741
    %v743 = vpop.f32.mrb[0].mxu0
    %v744 = vadd.f32 %v587, %v743
    %v745 = vpop.f32.mrb[0].mxu0
    %v746 = vadd.f32 %v589, %v745
    %747 = vmatprep.mubr.f32.mxu0 0.0
    %v748 = vand.u32 %v238, 4294901760
    %v749 = vsub.f32 %v238, %v748
    %750 = vmatmul.mubr.f32.gmra.mrb[0].mxu0 %v749
    %v751 = vpop.f32.mrb[0].mxu0
    %v752 = vadd.f32 %v594, %v751
    %v753 = vpop.f32.mrb[0].mxu0
    %v754 = vadd.f32 %v596, %v753
    %755 = vmatprep.mubr.f32.mxu0 0.0
    %v756 = vand.u32 %v241, 4294901760
    %v757 = vsub.f32 %v241, %v756
    %758 = vmatmul.mubr.f32.gmra.mrb[0].mxu0 %v757
    %v759 = vpop.f32.mrb[0].mxu0
    %v760 = vadd.f32 %v601, %v759
    %v761 = vpop.f32.mrb[0].mxu0
    %v762 = vadd.f32 %v603, %v761
    %763 = vmatprep.mubr.f32.mxu0 0.0
    %v764 = vand.u32 %v244, 4294901760
    %v765 = vsub.f32 %v244, %v764
    %766 = vmatmul.mubr.f32.gmra.mrb[0].mxu0 %v765
    %v767 = vpop.f32.mrb[0].mxu0
    %v768 = vadd.f32 %v608, %v767
    %v769 = vpop.f32.mrb[0].mxu0
    %v770 = vadd.f32 %v610, %v769
    %771 = vmatprep.mubr.f32.mxu0 0.0
    %v772 = vand.u32 %v247, 4294901760
    %v773 = vsub.f32 %v247, %v772
    %774 = vmatmul.mubr.f32.gmra.mrb[0].mxu0 %v773
    %v775 = vpop.f32.mrb[0].mxu0
    %v776 = vadd.f32 %v615, %v775
    %v777 = vpop.f32.mrb[0].mxu0
    %v778 = vadd.f32 %v617, %v777
    %779 = vdwg.mxu0
    %v780 = vand.u32 %v178, 4294901760
    %781 = vmatprep.subr.mxu0 %v780
    %v782 = vand.u32 %v177, 4294901760
    %783 = vmatpush1.msra.mxu0 %v782
    %v784 = vand.u32 %v180, 4294901760
    %785 = vmatprep.subr.mxu0 %v784
    %v786 = vand.u32 %v179, 4294901760
    %787 = vmatpush1.msra.mxu0 %v786
    %v788 = vand.u32 %v182, 4294901760
    %789 = vmatprep.subr.mxu0 %v788
    %v790 = vand.u32 %v181, 4294901760
    %791 = vmatpush1.msra.mxu0 %v790
    %v792 = vand.u32 %v184, 4294901760
    %793 = vmatprep.subr.mxu0 %v792
    %v794 = vand.u32 %v183, 4294901760
    %795 = vmatpush1.msra.mxu0 %v794
    %v796 = vand.u32 %v186, 4294901760
    %797 = vmatprep.subr.mxu0 %v796
    %v798 = vand.u32 %v185, 4294901760
    %799 = vmatpush1.msra.mxu0 %v798
    %v800 = vand.u32 %v188, 4294901760
    %801 = vmatprep.subr.mxu0 %v800
    %v802 = vand.u32 %v187, 4294901760
    %803 = vmatpush1.msra.mxu0 %v802
    %v804 = vand.u32 %v190, 4294901760
    %805 = vmatprep.subr.mxu0 %v804
    %v806 = vand.u32 %v189, 4294901760
    %807 = vmatpush1.msra.mxu0 %v806
    %v808 = vand.u32 %v192, 4294901760
    %809 = vmatprep.subr.mxu0 %v808
    %v810 = vand.u32 %v191, 4294901760
    %811 = vmatpush1.msra.mxu0 %v810
    %812 = vmatprep.subr.mxu0 0.0
    %813 = vmatpush1.msra.mxu0 0.0
    %814 = vmatprep.subr.mxu0 0.0
    %815 = vmatpush1.msra.mxu0 0.0
    %816 = vmatprep.subr.mxu0 0.0
    %817 = vmatpush1.msra.mxu0 0.0
    %818 = vmatprep.subr.mxu0 0.0
    %819 = vmatpush1.msra.mxu0 0.0
    %820 = vmatprep.subr.mxu0 0.0
    %821 = vmatpush1.msra.mxu0 0.0
    %822 = vmatprep.subr.mxu0 0.0
    %823 = vmatpush1.msra.mxu0 0.0
    %824 = vmatprep.subr.mxu0 0.0
    %825 = vmatpush1.msra.mxu0 0.0
    %826 = vmatprep.subr.mxu0 0.0
    %827 = vmatpush1.msra.mxu0 0.0
    %828 = vmatprep.subr.mxu0 0.0
    %829 = vmatpush1.msra.mxu0 0.0
    %830 = vmatprep.subr.mxu0 0.0
    %831 = vmatpush1.msra.mxu0 0.0
    %832 = vmatprep.subr.mxu0 0.0
    %833 = vmatpush1.msra.mxu0 0.0
    %834 = vmatprep.subr.mxu0 0.0
    %835 = vmatpush1.msra.mxu0 0.0
    %836 = vmatprep.subr.mxu0 0.0
    %837 = vmatpush1.msra.mxu0 0.0
    %838 = vmatprep.subr.mxu0 0.0
    %839 = vmatpush1.msra.mxu0 0.0
    %840 = vmatprep.subr.mxu0 0.0
    %841 = vmatpush1.msra.mxu0 0.0
    %842 = vmatprep.subr.mxu0 0.0
    %843 = vmatpush1.msra.mxu0 0.0
    %844 = vmatprep.subr.mxu0 0.0
    %845 = vmatpush1.msra.mxu0 0.0
    %846 = vmatprep.subr.mxu0 0.0
    %847 = vmatpush1.msra.mxu0 0.0
    %848 = vmatprep.subr.mxu0 0.0
    %849 = vmatpush1.msra.mxu0 0.0
    %850 = vmatprep.subr.mxu0 0.0
    %851 = vmatpush1.msra.mxu0 0.0
    %852 = vmatprep.subr.mxu0 0.0
    %853 = vmatpush1.msra.mxu0 0.0
    %854 = vmatprep.subr.mxu0 0.0
    %855 = vmatpush1.msra.mxu0 0.0
    %856 = vmatprep.subr.mxu0 0.0
    %857 = vmatpush1.msra.mxu0 0.0
    %858 = vmatprep.subr.mxu0 0.0
    %859 = vmatpush1.msra.mxu0 0.0
    %860 = vmatprep.mubr.f32.mxu0 0.0
    %v861 = vand.u32 %v226, 4294901760
    %v862 = vsub.f32 %v226, %v861
    %v863 = vand.u32 %v862, 4294901760
    %864 = vmatmul.mubr.f32.gmra.mrb[0].mxu0 %v863
    %v865 = vpop.f32.mrb[0].mxu0
    %v866 = vadd.f32 %v720, %v865
    %v867 = vpop.f32.mrb[0].mxu0
    %v868 = vadd.f32 %v722, %v867
    %869 = vmatprep.mubr.f32.mxu0 0.0
    %v870 = vand.u32 %v229, 4294901760
    %v871 = vsub.f32 %v229, %v870
    %v872 = vand.u32 %v871, 4294901760
    %873 = vmatmul.mubr.f32.gmra.mrb[0].mxu0 %v872
    %v874 = vpop.f32.mrb[0].mxu0
    %v875 = vadd.f32 %v728, %v874
    %v876 = vpop.f32.mrb[0].mxu0
    %v877 = vadd.f32 %v730, %v876
    %878 = vmatprep.mubr.f32.mxu0 0.0
    %v879 = vand.u32 %v232, 4294901760
    %v880 = vsub.f32 %v232, %v879
    %v881 = vand.u32 %v880, 4294901760
    %882 = vmatmul.mubr.f32.gmra.mrb[0].mxu0 %v881
    %v883 = vpop.f32.mrb[0].mxu0
    %v884 = vadd.f32 %v736, %v883
    %v885 = vpop.f32.mrb[0].mxu0
    %v886 = vadd.f32 %v738, %v885
    %887 = vmatprep.mubr.f32.mxu0 0.0
    %v888 = vand.u32 %v235, 4294901760
    %v889 = vsub.f32 %v235, %v888
    %v890 = vand.u32 %v889, 4294901760
    %891 = vmatmul.mubr.f32.gmra.mrb[0].mxu0 %v890
    %v892 = vpop.f32.mrb[0].mxu0
    %v893 = vadd.f32 %v744, %v892
    %v894 = vpop.f32.mrb[0].mxu0
    %v895 = vadd.f32 %v746, %v894
    %896 = vmatprep.mubr.f32.mxu0 0.0
    %v897 = vand.u32 %v238, 4294901760
    %v898 = vsub.f32 %v238, %v897
    %v899 = vand.u32 %v898, 4294901760
    %900 = vmatmul.mubr.f32.gmra.mrb[0].mxu0 %v899
    %v901 = vpop.f32.mrb[0].mxu0
    %v902 = vadd.f32 %v752, %v901
    %v903 = vpop.f32.mrb[0].mxu0
    %v904 = vadd.f32 %v754, %v903
    %905 = vmatprep.mubr.f32.mxu0 0.0
    %v906 = vand.u32 %v241, 4294901760
    %v907 = vsub.f32 %v241, %v906
    %v908 = vand.u32 %v907, 4294901760
    %909 = vmatmul.mubr.f32.gmra.mrb[0].mxu0 %v908
    %v910 = vpop.f32.mrb[0].mxu0
    %v911 = vadd.f32 %v760, %v910
    %v912 = vpop.f32.mrb[0].mxu0
    %v913 = vadd.f32 %v762, %v912
    %914 = vmatprep.mubr.f32.mxu0 0.0
    %v915 = vand.u32 %v244, 4294901760
    %v916 = vsub.f32 %v244, %v915
    %v917 = vand.u32 %v916, 4294901760
    %918 = vmatmul.mubr.f32.gmra.mrb[0].mxu0 %v917
    %v919 = vpop.f32.mrb[0].mxu0
    %v920 = vadd.f32 %v768, %v919
    %v921 = vpop.f32.mrb[0].mxu0
    %v922 = vadd.f32 %v770, %v921
    %923 = vmatprep.mubr.f32.mxu0 0.0
    %v924 = vand.u32 %v247, 4294901760
    %v925 = vsub.f32 %v247, %v924
    %v926 = vand.u32 %v925, 4294901760
    %927 = vmatmul.mubr.f32.gmra.mrb[0].mxu0 %v926
    %v928 = vpop.f32.mrb[0].mxu0
    %v929 = vadd.f32 %v776, %v928
    %v930 = vpop.f32.mrb[0].mxu0
    %v931 = vadd.f32 %v778, %v930
    %932 = vdwg.mxu0
    %v933 = vand.u32 %v178, 4294901760
    %v934 = vsub.f32 %v178, %v933
    %v935 = vand.u32 %v934, 4294901760
    %936 = vmatprep.subr.mxu0 %v935
    %v937 = vand.u32 %v177, 4294901760
    %v938 = vsub.f32 %v177, %v937
    %v939 = vand.u32 %v938, 4294901760
    %940 = vmatpush1.msra.mxu0 %v939
    %v941 = vand.u32 %v180, 4294901760
    %v942 = vsub.f32 %v180, %v941
    %v943 = vand.u32 %v942, 4294901760
    %944 = vmatprep.subr.mxu0 %v943
    %v945 = vand.u32 %v179, 4294901760
    %v946 = vsub.f32 %v179, %v945
    %v947 = vand.u32 %v946, 4294901760
    %948 = vmatpush1.msra.mxu0 %v947
    %v949 = vand.u32 %v182, 4294901760
    %v950 = vsub.f32 %v182, %v949
    %v951 = vand.u32 %v950, 4294901760
    %952 = vmatprep.subr.mxu0 %v951
    %v953 = vand.u32 %v181, 4294901760
    %v954 = vsub.f32 %v181, %v953
    %v955 = vand.u32 %v954, 4294901760
    %956 = vmatpush1.msra.mxu0 %v955
    %v957 = vand.u32 %v184, 4294901760
    %v958 = vsub.f32 %v184, %v957
    %v959 = vand.u32 %v958, 4294901760
    %960 = vmatprep.subr.mxu0 %v959
    %v961 = vand.u32 %v183, 4294901760
    %v962 = vsub.f32 %v183, %v961
    %v963 = vand.u32 %v962, 4294901760
    %964 = vmatpush1.msra.mxu0 %v963
    %v965 = vand.u32 %v186, 4294901760
    %v966 = vsub.f32 %v186, %v965
    %v967 = vand.u32 %v966, 4294901760
    %968 = vmatprep.subr.mxu0 %v967
    %v969 = vand.u32 %v185, 4294901760
    %v970 = vsub.f32 %v185, %v969
    %v971 = vand.u32 %v970, 4294901760
    %972 = vmatpush1.msra.mxu0 %v971
    %v973 = vand.u32 %v188, 4294901760
    %v974 = vsub.f32 %v188, %v973
    %v975 = vand.u32 %v974, 4294901760
    %976 = vmatprep.subr.mxu0 %v975
    %v977 = vand.u32 %v187, 4294901760
    %v978 = vsub.f32 %v187, %v977
    %v979 = vand.u32 %v978, 4294901760
    %980 = vmatpush1.msra.mxu0 %v979
    %v981 = vand.u32 %v190, 4294901760
    %v982 = vsub.f32 %v190, %v981
    %v983 = vand.u32 %v982, 4294901760
    %984 = vmatprep.subr.mxu0 %v983
    %v985 = vand.u32 %v189, 4294901760
    %v986 = vsub.f32 %v189, %v985
    %v987 = vand.u32 %v986, 4294901760
    %988 = vmatpush1.msra.mxu0 %v987
    %v989 = vand.u32 %v192, 4294901760
    %v990 = vsub.f32 %v192, %v989
    %v991 = vand.u32 %v990, 4294901760
    %992 = vmatprep.subr.mxu0 %v991
    %v993 = vand.u32 %v191, 4294901760
    %v994 = vsub.f32 %v191, %v993
    %v995 = vand.u32 %v994, 4294901760
    %996 = vmatpush1.msra.mxu0 %v995
    %997 = vmatprep.subr.mxu0 0.0
    %998 = vmatpush1.msra.mxu0 0.0
    %999 = vmatprep.subr.mxu0 0.0
    %1000 = vmatpush1.msra.mxu0 0.0
    %1001 = vmatprep.subr.mxu0 0.0
    %1002 = vmatpush1.msra.mxu0 0.0
    %1003 = vmatprep.subr.mxu0 0.0
    %1004 = vmatpush1.msra.mxu0 0.0
    %1005 = vmatprep.subr.mxu0 0.0
    %1006 = vmatpush1.msra.mxu0 0.0
    %1007 = vmatprep.subr.mxu0 0.0
    %1008 = vmatpush1.msra.mxu0 0.0
    %1009 = vmatprep.subr.mxu0 0.0
    %1010 = vmatpush1.msra.mxu0 0.0
    %1011 = vmatprep.subr.mxu0 0.0
    %1012 = vmatpush1.msra.mxu0 0.0
    %1013 = vmatprep.subr.mxu0 0.0
    %1014 = vmatpush1.msra.mxu0 0.0
    %1015 = vmatprep.subr.mxu0 0.0
    %1016 = vmatpush1.msra.mxu0 0.0
    %1017 = vmatprep.subr.mxu0 0.0
    %1018 = vmatpush1.msra.mxu0 0.0
    %1019 = vmatprep.subr.mxu0 0.0
    %1020 = vmatpush1.msra.mxu0 0.0
    %1021 = vmatprep.subr.mxu0 0.0
    %1022 = vmatpush1.msra.mxu0 0.0
    %1023 = vmatprep.subr.mxu0 0.0
    %1024 = vmatpush1.msra.mxu0 0.0
    %1025 = vmatprep.subr.mxu0 0.0
    %1026 = vmatpush1.msra.mxu0 0.0
    %1027 = vmatprep.subr.mxu0 0.0
    %1028 = vmatpush1.msra.mxu0 0.0
    %1029 = vmatprep.subr.mxu0 0.0
    %1030 = vmatpush1.msra.mxu0 0.0
    %1031 = vmatprep.subr.mxu0 0.0
    %1032 = vmatpush1.msra.mxu0 0.0
    %1033 = vmatprep.subr.mxu0 0.0
    %1034 = vmatpush1.msra.mxu0 0.0
    %1035 = vmatprep.subr.mxu0 0.0
    %1036 = vmatpush1.msra.mxu0 0.0
    %1037 = vmatprep.subr.mxu0 0.0
    %1038 = vmatpush1.msra.mxu0 0.0
    %1039 = vmatprep.subr.mxu0 0.0
    %1040 = vmatpush1.msra.mxu0 0.0
    %1041 = vmatprep.subr.mxu0 0.0
    %1042 = vmatpush1.msra.mxu0 0.0
    %1043 = vmatprep.subr.mxu0 0.0
    %1044 = vmatpush1.msra.mxu0 0.0
    %1045 = vmatprep.mubr.f32.mxu0 0.0
    %v1046 = vand.u32 %v226, 4294901760
    %1047 = vmatmul.mubr.f32.gmra.mrb[0].mxu0 %v1046
    %v1048 = vpop.f32.mrb[0].mxu0
    %v1049 = vadd.f32 %v866, %v1048
    %v1050 = vpop.f32.mrb[0].mxu0
    %v1051 = vadd.f32 %v868, %v1050
    %1052 = vmatprep.mubr.f32.mxu0 0.0
    %v1053 = vand.u32 %v229, 4294901760
    %1054 = vmatmul.mubr.f32.gmra.mrb[0].mxu0 %v1053
    %v1055 = vpop.f32.mrb[0].mxu0
    %v1056 = vadd.f32 %v875, %v1055
    %v1057 = vpop.f32.mrb[0].mxu0
    %v1058 = vadd.f32 %v877, %v1057
    %1059 = vmatprep.mubr.f32.mxu0 0.0
    %v1060 = vand.u32 %v232, 4294901760
    %1061 = vmatmul.mubr.f32.gmra.mrb[0].mxu0 %v1060
    %v1062 = vpop.f32.mrb[0].mxu0
    %v1063 = vadd.f32 %v884, %v1062
    %v1064 = vpop.f32.mrb[0].mxu0
    %v1065 = vadd.f32 %v886, %v1064
    %1066 = vmatprep.mubr.f32.mxu0 0.0
    %v1067 = vand.u32 %v235, 4294901760
    %1068 = vmatmul.mubr.f32.gmra.mrb[0].mxu0 %v1067
    %v1069 = vpop.f32.mrb[0].mxu0
    %v1070 = vadd.f32 %v893, %v1069
    %v1071 = vpop.f32.mrb[0].mxu0
    %v1072 = vadd.f32 %v895, %v1071
    %1073 = vmatprep.mubr.f32.mxu0 0.0
    %v1074 = vand.u32 %v238, 4294901760
    %1075 = vmatmul.mubr.f32.gmra.mrb[0].mxu0 %v1074
    %v1076 = vpop.f32.mrb[0].mxu0
    %v1077 = vadd.f32 %v902, %v1076
    %v1078 = vpop.f32.mrb[0].mxu0
    %v1079 = vadd.f32 %v904, %v1078
    %1080 = vmatprep.mubr.f32.mxu0 0.0
    %v1081 = vand.u32 %v241, 4294901760
    %1082 = vmatmul.mubr.f32.gmra.mrb[0].mxu0 %v1081
    %v1083 = vpop.f32.mrb[0].mxu0
    %v1084 = vadd.f32 %v911, %v1083
    %v1085 = vpop.f32.mrb[0].mxu0
    %v1086 = vadd.f32 %v913, %v1085
    %1087 = vmatprep.mubr.f32.mxu0 0.0
    %v1088 = vand.u32 %v244, 4294901760
    %1089 = vmatmul.mubr.f32.gmra.mrb[0].mxu0 %v1088
    %v1090 = vpop.f32.mrb[0].mxu0
    %v1091 = vadd.f32 %v920, %v1090
    %v1092 = vpop.f32.mrb[0].mxu0
    %v1093 = vadd.f32 %v922, %v1092
    %1094 = vmatprep.mubr.f32.mxu0 0.0
    %v1095 = vand.u32 %v247, 4294901760
    %1096 = vmatmul.mubr.f32.gmra.mrb[0].mxu0 %v1095
    %v1097 = vpop.f32.mrb[0].mxu0
    %v1098 = vadd.f32 %v929, %v1097
    %v1099 = vpop.f32.mrb[0].mxu0
    %v1100 = vadd.f32 %v931, %v1099
    %1101 = vdwg.mxu0
    %v1102 = vand.u32 %v178, 4294901760
    %1103 = vmatprep.subr.mxu0 %v1102
    %v1104 = vand.u32 %v177, 4294901760
    %1105 = vmatpush1.msra.mxu0 %v1104
    %v1106 = vand.u32 %v180, 4294901760
    %1107 = vmatprep.subr.mxu0 %v1106
    %v1108 = vand.u32 %v179, 4294901760
    %1109 = vmatpush1.msra.mxu0 %v1108
    %v1110 = vand.u32 %v182, 4294901760
    %1111 = vmatprep.subr.mxu0 %v1110
    %v1112 = vand.u32 %v181, 4294901760
    %1113 = vmatpush1.msra.mxu0 %v1112
    %v1114 = vand.u32 %v184, 4294901760
    %1115 = vmatprep.subr.mxu0 %v1114
    %v1116 = vand.u32 %v183, 4294901760
    %1117 = vmatpush1.msra.mxu0 %v1116
    %v1118 = vand.u32 %v186, 4294901760
    %1119 = vmatprep.subr.mxu0 %v1118
    %v1120 = vand.u32 %v185, 4294901760
    %1121 = vmatpush1.msra.mxu0 %v1120
    %v1122 = vand.u32 %v188, 4294901760
    %1123 = vmatprep.subr.mxu0 %v1122
    %v1124 = vand.u32 %v187, 4294901760
    %1125 = vmatpush1.msra.mxu0 %v1124
    %v1126 = vand.u32 %v190, 4294901760
    %1127 = vmatprep.subr.mxu0 %v1126
    %v1128 = vand.u32 %v189, 4294901760
    %1129 = vmatpush1.msra.mxu0 %v1128
    %v1130 = vand.u32 %v192, 4294901760
    %1131 = vmatprep.subr.mxu0 %v1130
    %v1132 = vand.u32 %v191, 4294901760
    %1133 = vmatpush1.msra.mxu0 %v1132
    %1134 = vmatprep.subr.mxu0 0.0
    %1135 = vmatpush1.msra.mxu0 0.0
    %1136 = vmatprep.subr.mxu0 0.0
    %1137 = vmatpush1.msra.mxu0 0.0
    %1138 = vmatprep.subr.mxu0 0.0
    %1139 = vmatpush1.msra.mxu0 0.0
    %1140 = vmatprep.subr.mxu0 0.0
    %1141 = vmatpush1.msra.mxu0 0.0
    %1142 = vmatprep.subr.mxu0 0.0
    %1143 = vmatpush1.msra.mxu0 0.0
    %1144 = vmatprep.subr.mxu0 0.0
    %1145 = vmatpush1.msra.mxu0 0.0
    %1146 = vmatprep.subr.mxu0 0.0
    %1147 = vmatpush1.msra.mxu0 0.0
    %1148 = vmatprep.subr.mxu0 0.0
    %1149 = vmatpush1.msra.mxu0 0.0
    %1150 = vmatprep.subr.mxu0 0.0
    %1151 = vmatpush1.msra.mxu0 0.0
    %1152 = vmatprep.subr.mxu0 0.0
    %1153 = vmatpush1.msra.mxu0 0.0
    %1154 = vmatprep.subr.mxu0 0.0
    %1155 = vmatpush1.msra.mxu0 0.0
    %1156 = vmatprep.subr.mxu0 0.0
    %1157 = vmatpush1.msra.mxu0 0.0
    %1158 = vmatprep.subr.mxu0 0.0
    %1159 = vmatpush1.msra.mxu0 0.0
    %1160 = vmatprep.subr.mxu0 0.0
    %1161 = vmatpush1.msra.mxu0 0.0
    %1162 = vmatprep.subr.mxu0 0.0
    %1163 = vmatpush1.msra.mxu0 0.0
    %1164 = vmatprep.subr.mxu0 0.0
    %1165 = vmatpush1.msra.mxu0 0.0
    %1166 = vmatprep.subr.mxu0 0.0
    %1167 = vmatpush1.msra.mxu0 0.0
    %1168 = vmatprep.subr.mxu0 0.0
    %1169 = vmatpush1.msra.mxu0 0.0
    %1170 = vmatprep.subr.mxu0 0.0
    %1171 = vmatpush1.msra.mxu0 0.0
    %1172 = vmatprep.subr.mxu0 0.0
    %1173 = vmatpush1.msra.mxu0 0.0
    %1174 = vmatprep.subr.mxu0 0.0
    %1175 = vmatpush1.msra.mxu0 0.0
    %1176 = vmatprep.subr.mxu0 0.0
    %1177 = vmatpush1.msra.mxu0 0.0
    %1178 = vmatprep.subr.mxu0 0.0
    %1179 = vmatpush1.msra.mxu0 0.0
    %1180 = vmatprep.subr.mxu0 0.0
    %1181 = vmatpush1.msra.mxu0 0.0
    %1182 = vmatprep.mubr.f32.mxu0 0.0
    %v1183 = vand.u32 %v226, 4294901760
    %1184 = vmatmul.mubr.f32.gmra.mrb[0].mxu0 %v1183
    %v1185 = vpop.f32.mrb[0].mxu0
    %v1186 = vadd.f32 %v1049, %v1185
    %v1187 = vpop.f32.mrb[0].mxu0
    %v1188 = vadd.f32 %v1051, %v1187
    %1189 = vmatprep.mubr.f32.mxu0 0.0
    %v1190 = vand.u32 %v229, 4294901760
    %1191 = vmatmul.mubr.f32.gmra.mrb[0].mxu0 %v1190
    %v1192 = vpop.f32.mrb[0].mxu0
    %v1193 = vadd.f32 %v1056, %v1192
    %v1194 = vpop.f32.mrb[0].mxu0
    %v1195 = vadd.f32 %v1058, %v1194
    %1196 = vmatprep.mubr.f32.mxu0 0.0
    %v1197 = vand.u32 %v232, 4294901760
    %1198 = vmatmul.mubr.f32.gmra.mrb[0].mxu0 %v1197
    %v1199 = vpop.f32.mrb[0].mxu0
    %v1200 = vadd.f32 %v1063, %v1199
    %v1201 = vpop.f32.mrb[0].mxu0
    %v1202 = vadd.f32 %v1065, %v1201
    %1203 = vmatprep.mubr.f32.mxu0 0.0
    %v1204 = vand.u32 %v235, 4294901760
    %1205 = vmatmul.mubr.f32.gmra.mrb[0].mxu0 %v1204
    %v1206 = vpop.f32.mrb[0].mxu0
    %v1207 = vadd.f32 %v1070, %v1206
    %v1208 = vpop.f32.mrb[0].mxu0
    %v1209 = vadd.f32 %v1072, %v1208
    %1210 = vmatprep.mubr.f32.mxu0 0.0
    %v1211 = vand.u32 %v238, 4294901760
    %1212 = vmatmul.mubr.f32.gmra.mrb[0].mxu0 %v1211
    %v1213 = vpop.f32.mrb[0].mxu0
    %v1214 = vadd.f32 %v1077, %v1213
    %v1215 = vpop.f32.mrb[0].mxu0
    %v1216 = vadd.f32 %v1079, %v1215
    %1217 = vmatprep.mubr.f32.mxu0 0.0
    %v1218 = vand.u32 %v241, 4294901760
    %1219 = vmatmul.mubr.f32.gmra.mrb[0].mxu0 %v1218
    %v1220 = vpop.f32.mrb[0].mxu0
    %v1221 = vadd.f32 %v1084, %v1220
    %v1222 = vpop.f32.mrb[0].mxu0
    %v1223 = vadd.f32 %v1086, %v1222
    %1224 = vmatprep.mubr.f32.mxu0 0.0
    %v1225 = vand.u32 %v244, 4294901760
    %1226 = vmatmul.mubr.f32.gmra.mrb[0].mxu0 %v1225
    %v1227 = vpop.f32.mrb[0].mxu0
    %v1228 = vadd.f32 %v1091, %v1227
    %v1229 = vpop.f32.mrb[0].mxu0
    %v1230 = vadd.f32 %v1093, %v1229
    %1231 = vmatprep.mubr.f32.mxu0 0.0
    %v1232 = vand.u32 %v247, 4294901760
    %1233 = vmatmul.mubr.f32.gmra.mrb[0].mxu0 %v1232
    %v1234 = vpop.f32.mrb[0].mxu0
    %v1235 = vadd.f32 %v1098, %v1234
    %v1236 = vpop.f32.mrb[0].mxu0
    %v1237 = vadd.f32 %v1100, %v1236
    %1238 = vdwg.mxu0
    %v1239 = vmul.f32 %v1186, %v193
    %v1240 = vmul.f32 %v1188, %v194
    %v1241 = vmul.f32 %v1193, %v195
    %v1242 = vmul.f32 %v1195, %v196
    %v1243 = vmul.f32 %v1200, %v197
    %v1244 = vmul.f32 %v1202, %v198
    %v1245 = vmul.f32 %v1207, %v199
    %v1246 = vmul.f32 %v1209, %v200
    %v1247 = vmul.f32 %v1214, %v193
    %v1248 = vmul.f32 %v1216, %v194
    %v1249 = vmul.f32 %v1221, %v195
    %v1250 = vmul.f32 %v1223, %v196
    %v1251 = vmul.f32 %v1228, %v197
    %v1252 = vmul.f32 %v1230, %v198
    %v1253 = vmul.f32 %v1235, %v199
    %v1254 = vmul.f32 %v1237, %v200
    %v1256 = vsel %vm35, %v1240, 0
    %v1259 = vsel %vm35, %v1242, 0
    %v1262 = vsel %vm35, %v1244, 0
    %v1265 = vsel %vm35, %v1246, 0
    %v1268 = vsel %vm35, %v1248, 0
    %v1271 = vsel %vm35, %v1250, 0
    %v1274 = vsel %vm35, %v1252, 0
    %v1277 = vsel %vm35, %v1254, 0
    %1279 = vmatprep.subr.mxu0 0.0
    %v1280 = vand.u32 %v201, 4294901760
    %1281 = vmatpush1.msra.mxu0 %v1280
    %1282 = vmatprep.subr.mxu0 0.0
    %v1283 = vand.u32 %v202, 4294901760
    %1284 = vmatpush1.msra.mxu0 %v1283
    %1285 = vmatprep.subr.mxu0 0.0
    %v1286 = vand.u32 %v203, 4294901760
    %1287 = vmatpush1.msra.mxu0 %v1286
    %1288 = vmatprep.subr.mxu0 0.0
    %v1289 = vand.u32 %v204, 4294901760
    %1290 = vmatpush1.msra.mxu0 %v1289
    %1291 = vmatprep.subr.mxu0 0.0
    %v1292 = vand.u32 %v205, 4294901760
    %1293 = vmatpush1.msra.mxu0 %v1292
    %1294 = vmatprep.subr.mxu0 0.0
    %v1295 = vand.u32 %v206, 4294901760
    %1296 = vmatpush1.msra.mxu0 %v1295
    %1297 = vmatprep.subr.mxu0 0.0
    %v1298 = vand.u32 %v207, 4294901760
    %1299 = vmatpush1.msra.mxu0 %v1298
    %1300 = vmatprep.subr.mxu0 0.0
    %v1301 = vand.u32 %v208, 4294901760
    %1302 = vmatpush1.msra.mxu0 %v1301
    %1303 = vmatprep.subr.mxu0 0.0
    %v1304 = vand.u32 %v209, 4294901760
    %1305 = vmatpush1.msra.mxu0 %v1304
    %1306 = vmatprep.subr.mxu0 0.0
    %v1307 = vand.u32 %v210, 4294901760
    %1308 = vmatpush1.msra.mxu0 %v1307
    %1309 = vmatprep.subr.mxu0 0.0
    %v1310 = vand.u32 %v211, 4294901760
    %1311 = vmatpush1.msra.mxu0 %v1310
    %1312 = vmatprep.subr.mxu0 0.0
    %v1313 = vand.u32 %v212, 4294901760
    %1314 = vmatpush1.msra.mxu0 %v1313
    %1315 = vmatprep.subr.mxu0 0.0
    %v1316 = vand.u32 %v213, 4294901760
    %1317 = vmatpush1.msra.mxu0 %v1316
    %1318 = vmatprep.subr.mxu0 0.0
    %v1319 = vand.u32 %v214, 4294901760
    %1320 = vmatpush1.msra.mxu0 %v1319
    %1321 = vmatprep.subr.mxu0 0.0
    %v1322 = vand.u32 %v215, 4294901760
    %1323 = vmatpush1.msra.mxu0 %v1322
    %1324 = vmatprep.subr.mxu0 0.0
    %v1325 = vand.u32 %v216, 4294901760
    %1326 = vmatpush1.msra.mxu0 %v1325
    %1327 = vmatprep.subr.mxu0 0.0
    %v1328 = vand.u32 %v217, 4294901760
    %1329 = vmatpush1.msra.mxu0 %v1328
    %1330 = vmatprep.subr.mxu0 0.0
    %v1331 = vand.u32 %v218, 4294901760
    %1332 = vmatpush1.msra.mxu0 %v1331
    %1333 = vmatprep.subr.mxu0 0.0
    %v1334 = vand.u32 %v219, 4294901760
    %1335 = vmatpush1.msra.mxu0 %v1334
    %1336 = vmatprep.subr.mxu0 0.0
    %v1337 = vand.u32 %v220, 4294901760
    %1338 = vmatpush1.msra.mxu0 %v1337
    %1339 = vmatprep.subr.mxu0 0.0
    %v1340 = vand.u32 %v221, 4294901760
    %1341 = vmatpush1.msra.mxu0 %v1340
    %1342 = vmatprep.subr.mxu0 0.0
    %v1343 = vand.u32 %v222, 4294901760
    %1344 = vmatpush1.msra.mxu0 %v1343
    %1345 = vmatprep.subr.mxu0 0.0
    %v1346 = vand.u32 %v223, 4294901760
    %1347 = vmatpush1.msra.mxu0 %v1346
    %1348 = vmatprep.subr.mxu0 0.0
    %v1349 = vand.u32 %v224, 4294901760
    %1350 = vmatpush1.msra.mxu0 %v1349
    %1351 = vmatprep.subr.mxu0 0.0
    %1352 = vmatpush1.msra.mxu0 0.0
    %1353 = vmatprep.subr.mxu0 0.0
    %1354 = vmatpush1.msra.mxu0 0.0
    %1355 = vmatprep.subr.mxu0 0.0
    %1356 = vmatpush1.msra.mxu0 0.0
    %1357 = vmatprep.subr.mxu0 0.0
    %1358 = vmatpush1.msra.mxu0 0.0
    %1359 = vmatprep.subr.mxu0 0.0
    %1360 = vmatpush1.msra.mxu0 0.0
    %1361 = vmatprep.subr.mxu0 0.0
    %1362 = vmatpush1.msra.mxu0 0.0
    %1363 = vmatprep.subr.mxu0 0.0
    %1364 = vmatpush1.msra.mxu0 0.0
    %1365 = vmatprep.subr.mxu0 0.0
    %1366 = vmatpush1.msra.mxu0 0.0
    %v1367 = vand.u32 %v1256, 4294901760
    %v1368 = vsub.f32 %v1256, %v1367
    %v1369 = vand.u32 %v1368, 4294901760
    %v1370 = vsub.f32 %v1368, %v1369
    %v1371 = vand.u32 %v1370, 4294901760
    %1372 = vmatprep.mubr.f32.mxu0 %v1371
    %v1373 = vand.u32 %v1239, 4294901760
    %v1374 = vsub.f32 %v1239, %v1373
    %v1375 = vand.u32 %v1374, 4294901760
    %v1376 = vsub.f32 %v1374, %v1375
    %v1377 = vand.u32 %v1376, 4294901760
    %1378 = vmatmul.mubr.f32.gmra.mrb[0].mxu0 %v1377
    %v1379 = vpop.f32.mrb[0].mxu0
    %v1380 = vadd.f32 0.0, %v1379
    %v1381 = vpop.f32.mrb[0].mxu0
    %v1382 = vand.u32 %v1259, 4294901760
    %v1383 = vsub.f32 %v1259, %v1382
    %v1384 = vand.u32 %v1383, 4294901760
    %v1385 = vsub.f32 %v1383, %v1384
    %v1386 = vand.u32 %v1385, 4294901760
    %1387 = vmatprep.mubr.f32.mxu0 %v1386
    %v1388 = vand.u32 %v1241, 4294901760
    %v1389 = vsub.f32 %v1241, %v1388
    %v1390 = vand.u32 %v1389, 4294901760
    %v1391 = vsub.f32 %v1389, %v1390
    %v1392 = vand.u32 %v1391, 4294901760
    %1393 = vmatmul.mubr.f32.gmra.mrb[0].mxu0 %v1392
    %v1394 = vpop.f32.mrb[0].mxu0
    %v1395 = vadd.f32 0.0, %v1394
    %v1396 = vpop.f32.mrb[0].mxu0
    %v1397 = vand.u32 %v1262, 4294901760
    %v1398 = vsub.f32 %v1262, %v1397
    %v1399 = vand.u32 %v1398, 4294901760
    %v1400 = vsub.f32 %v1398, %v1399
    %v1401 = vand.u32 %v1400, 4294901760
    %1402 = vmatprep.mubr.f32.mxu0 %v1401
    %v1403 = vand.u32 %v1243, 4294901760
    %v1404 = vsub.f32 %v1243, %v1403
    %v1405 = vand.u32 %v1404, 4294901760
    %v1406 = vsub.f32 %v1404, %v1405
    %v1407 = vand.u32 %v1406, 4294901760
    %1408 = vmatmul.mubr.f32.gmra.mrb[0].mxu0 %v1407
    %v1409 = vpop.f32.mrb[0].mxu0
    %v1410 = vadd.f32 0.0, %v1409
    %v1411 = vpop.f32.mrb[0].mxu0
    %v1412 = vand.u32 %v1265, 4294901760
    %v1413 = vsub.f32 %v1265, %v1412
    %v1414 = vand.u32 %v1413, 4294901760
    %v1415 = vsub.f32 %v1413, %v1414
    %v1416 = vand.u32 %v1415, 4294901760
    %1417 = vmatprep.mubr.f32.mxu0 %v1416
    %v1418 = vand.u32 %v1245, 4294901760
    %v1419 = vsub.f32 %v1245, %v1418
    %v1420 = vand.u32 %v1419, 4294901760
    %v1421 = vsub.f32 %v1419, %v1420
    %v1422 = vand.u32 %v1421, 4294901760
    %1423 = vmatmul.mubr.f32.gmra.mrb[0].mxu0 %v1422
    %v1424 = vpop.f32.mrb[0].mxu0
    %v1425 = vadd.f32 0.0, %v1424
    %v1426 = vpop.f32.mrb[0].mxu0
    %v1427 = vand.u32 %v1268, 4294901760
    %v1428 = vsub.f32 %v1268, %v1427
    %v1429 = vand.u32 %v1428, 4294901760
    %v1430 = vsub.f32 %v1428, %v1429
    %v1431 = vand.u32 %v1430, 4294901760
    %1432 = vmatprep.mubr.f32.mxu0 %v1431
    %v1433 = vand.u32 %v1247, 4294901760
    %v1434 = vsub.f32 %v1247, %v1433
    %v1435 = vand.u32 %v1434, 4294901760
    %v1436 = vsub.f32 %v1434, %v1435
    %v1437 = vand.u32 %v1436, 4294901760
    %1438 = vmatmul.mubr.f32.gmra.mrb[0].mxu0 %v1437
    %v1439 = vpop.f32.mrb[0].mxu0
    %v1440 = vadd.f32 0.0, %v1439
    %v1441 = vpop.f32.mrb[0].mxu0
    %v1442 = vand.u32 %v1271, 4294901760
    %v1443 = vsub.f32 %v1271, %v1442
    %v1444 = vand.u32 %v1443, 4294901760
    %v1445 = vsub.f32 %v1443, %v1444
    %v1446 = vand.u32 %v1445, 4294901760
    %1447 = vmatprep.mubr.f32.mxu0 %v1446
    %v1448 = vand.u32 %v1249, 4294901760
    %v1449 = vsub.f32 %v1249, %v1448
    %v1450 = vand.u32 %v1449, 4294901760
    %v1451 = vsub.f32 %v1449, %v1450
    %v1452 = vand.u32 %v1451, 4294901760
    %1453 = vmatmul.mubr.f32.gmra.mrb[0].mxu0 %v1452
    %v1454 = vpop.f32.mrb[0].mxu0
    %v1455 = vadd.f32 0.0, %v1454
    %v1456 = vpop.f32.mrb[0].mxu0
    %v1457 = vand.u32 %v1274, 4294901760
    %v1458 = vsub.f32 %v1274, %v1457
    %v1459 = vand.u32 %v1458, 4294901760
    %v1460 = vsub.f32 %v1458, %v1459
    %v1461 = vand.u32 %v1460, 4294901760
    %1462 = vmatprep.mubr.f32.mxu0 %v1461
    %v1463 = vand.u32 %v1251, 4294901760
    %v1464 = vsub.f32 %v1251, %v1463
    %v1465 = vand.u32 %v1464, 4294901760
    %v1466 = vsub.f32 %v1464, %v1465
    %v1467 = vand.u32 %v1466, 4294901760
    %1468 = vmatmul.mubr.f32.gmra.mrb[0].mxu0 %v1467
    %v1469 = vpop.f32.mrb[0].mxu0
    %v1470 = vadd.f32 0.0, %v1469
    %v1471 = vpop.f32.mrb[0].mxu0
    %v1472 = vand.u32 %v1277, 4294901760
    %v1473 = vsub.f32 %v1277, %v1472
    %v1474 = vand.u32 %v1473, 4294901760
    %v1475 = vsub.f32 %v1473, %v1474
    %v1476 = vand.u32 %v1475, 4294901760
    %1477 = vmatprep.mubr.f32.mxu0 %v1476
    %v1478 = vand.u32 %v1253, 4294901760
    %v1479 = vsub.f32 %v1253, %v1478
    %v1480 = vand.u32 %v1479, 4294901760
    %v1481 = vsub.f32 %v1479, %v1480
    %v1482 = vand.u32 %v1481, 4294901760
    %1483 = vmatmul.mubr.f32.gmra.mrb[0].mxu0 %v1482
    %v1484 = vpop.f32.mrb[0].mxu0
    %v1485 = vadd.f32 0.0, %v1484
    %v1486 = vpop.f32.mrb[0].mxu0
    %1487 = vdwg.mxu0
    %1488 = vmatprep.subr.mxu0 0.0
    %v1489 = vand.u32 %v201, 4294901760
    %v1490 = vsub.f32 %v201, %v1489
    %v1491 = vand.u32 %v1490, 4294901760
    %v1492 = vsub.f32 %v1490, %v1491
    %v1493 = vand.u32 %v1492, 4294901760
    %1494 = vmatpush1.msra.mxu0 %v1493
    %1495 = vmatprep.subr.mxu0 0.0
    %v1496 = vand.u32 %v202, 4294901760
    %v1497 = vsub.f32 %v202, %v1496
    %v1498 = vand.u32 %v1497, 4294901760
    %v1499 = vsub.f32 %v1497, %v1498
    %v1500 = vand.u32 %v1499, 4294901760
    %1501 = vmatpush1.msra.mxu0 %v1500
    %1502 = vmatprep.subr.mxu0 0.0
    %v1503 = vand.u32 %v203, 4294901760
    %v1504 = vsub.f32 %v203, %v1503
    %v1505 = vand.u32 %v1504, 4294901760
    %v1506 = vsub.f32 %v1504, %v1505
    %v1507 = vand.u32 %v1506, 4294901760
    %1508 = vmatpush1.msra.mxu0 %v1507
    %1509 = vmatprep.subr.mxu0 0.0
    %v1510 = vand.u32 %v204, 4294901760
    %v1511 = vsub.f32 %v204, %v1510
    %v1512 = vand.u32 %v1511, 4294901760
    %v1513 = vsub.f32 %v1511, %v1512
    %v1514 = vand.u32 %v1513, 4294901760
    %1515 = vmatpush1.msra.mxu0 %v1514
    %1516 = vmatprep.subr.mxu0 0.0
    %v1517 = vand.u32 %v205, 4294901760
    %v1518 = vsub.f32 %v205, %v1517
    %v1519 = vand.u32 %v1518, 4294901760
    %v1520 = vsub.f32 %v1518, %v1519
    %v1521 = vand.u32 %v1520, 4294901760
    %1522 = vmatpush1.msra.mxu0 %v1521
    %1523 = vmatprep.subr.mxu0 0.0
    %v1524 = vand.u32 %v206, 4294901760
    %v1525 = vsub.f32 %v206, %v1524
    %v1526 = vand.u32 %v1525, 4294901760
    %v1527 = vsub.f32 %v1525, %v1526
    %v1528 = vand.u32 %v1527, 4294901760
    %1529 = vmatpush1.msra.mxu0 %v1528
    %1530 = vmatprep.subr.mxu0 0.0
    %v1531 = vand.u32 %v207, 4294901760
    %v1532 = vsub.f32 %v207, %v1531
    %v1533 = vand.u32 %v1532, 4294901760
    %v1534 = vsub.f32 %v1532, %v1533
    %v1535 = vand.u32 %v1534, 4294901760
    %1536 = vmatpush1.msra.mxu0 %v1535
    %1537 = vmatprep.subr.mxu0 0.0
    %v1538 = vand.u32 %v208, 4294901760
    %v1539 = vsub.f32 %v208, %v1538
    %v1540 = vand.u32 %v1539, 4294901760
    %v1541 = vsub.f32 %v1539, %v1540
    %v1542 = vand.u32 %v1541, 4294901760
    %1543 = vmatpush1.msra.mxu0 %v1542
    %1544 = vmatprep.subr.mxu0 0.0
    %v1545 = vand.u32 %v209, 4294901760
    %v1546 = vsub.f32 %v209, %v1545
    %v1547 = vand.u32 %v1546, 4294901760
    %v1548 = vsub.f32 %v1546, %v1547
    %v1549 = vand.u32 %v1548, 4294901760
    %1550 = vmatpush1.msra.mxu0 %v1549
    %1551 = vmatprep.subr.mxu0 0.0
    %v1552 = vand.u32 %v210, 4294901760
    %v1553 = vsub.f32 %v210, %v1552
    %v1554 = vand.u32 %v1553, 4294901760
    %v1555 = vsub.f32 %v1553, %v1554
    %v1556 = vand.u32 %v1555, 4294901760
    %1557 = vmatpush1.msra.mxu0 %v1556
    %1558 = vmatprep.subr.mxu0 0.0
    %v1559 = vand.u32 %v211, 4294901760
    %v1560 = vsub.f32 %v211, %v1559
    %v1561 = vand.u32 %v1560, 4294901760
    %v1562 = vsub.f32 %v1560, %v1561
    %v1563 = vand.u32 %v1562, 4294901760
    %1564 = vmatpush1.msra.mxu0 %v1563
    %1565 = vmatprep.subr.mxu0 0.0
    %v1566 = vand.u32 %v212, 4294901760
    %v1567 = vsub.f32 %v212, %v1566
    %v1568 = vand.u32 %v1567, 4294901760
    %v1569 = vsub.f32 %v1567, %v1568
    %v1570 = vand.u32 %v1569, 4294901760
    %1571 = vmatpush1.msra.mxu0 %v1570
    %1572 = vmatprep.subr.mxu0 0.0
    %v1573 = vand.u32 %v213, 4294901760
    %v1574 = vsub.f32 %v213, %v1573
    %v1575 = vand.u32 %v1574, 4294901760
    %v1576 = vsub.f32 %v1574, %v1575
    %v1577 = vand.u32 %v1576, 4294901760
    %1578 = vmatpush1.msra.mxu0 %v1577
    %1579 = vmatprep.subr.mxu0 0.0
    %v1580 = vand.u32 %v214, 4294901760
    %v1581 = vsub.f32 %v214, %v1580
    %v1582 = vand.u32 %v1581, 4294901760
    %v1583 = vsub.f32 %v1581, %v1582
    %v1584 = vand.u32 %v1583, 4294901760
    %1585 = vmatpush1.msra.mxu0 %v1584
    %1586 = vmatprep.subr.mxu0 0.0
    %v1587 = vand.u32 %v215, 4294901760
    %v1588 = vsub.f32 %v215, %v1587
    %v1589 = vand.u32 %v1588, 4294901760
    %v1590 = vsub.f32 %v1588, %v1589
    %v1591 = vand.u32 %v1590, 4294901760
    %1592 = vmatpush1.msra.mxu0 %v1591
    %1593 = vmatprep.subr.mxu0 0.0
    %v1594 = vand.u32 %v216, 4294901760
    %v1595 = vsub.f32 %v216, %v1594
    %v1596 = vand.u32 %v1595, 4294901760
    %v1597 = vsub.f32 %v1595, %v1596
    %v1598 = vand.u32 %v1597, 4294901760
    %1599 = vmatpush1.msra.mxu0 %v1598
    %1600 = vmatprep.subr.mxu0 0.0
    %v1601 = vand.u32 %v217, 4294901760
    %v1602 = vsub.f32 %v217, %v1601
    %v1603 = vand.u32 %v1602, 4294901760
    %v1604 = vsub.f32 %v1602, %v1603
    %v1605 = vand.u32 %v1604, 4294901760
    %1606 = vmatpush1.msra.mxu0 %v1605
    %1607 = vmatprep.subr.mxu0 0.0
    %v1608 = vand.u32 %v218, 4294901760
    %v1609 = vsub.f32 %v218, %v1608
    %v1610 = vand.u32 %v1609, 4294901760
    %v1611 = vsub.f32 %v1609, %v1610
    %v1612 = vand.u32 %v1611, 4294901760
    %1613 = vmatpush1.msra.mxu0 %v1612
    %1614 = vmatprep.subr.mxu0 0.0
    %v1615 = vand.u32 %v219, 4294901760
    %v1616 = vsub.f32 %v219, %v1615
    %v1617 = vand.u32 %v1616, 4294901760
    %v1618 = vsub.f32 %v1616, %v1617
    %v1619 = vand.u32 %v1618, 4294901760
    %1620 = vmatpush1.msra.mxu0 %v1619
    %1621 = vmatprep.subr.mxu0 0.0
    %v1622 = vand.u32 %v220, 4294901760
    %v1623 = vsub.f32 %v220, %v1622
    %v1624 = vand.u32 %v1623, 4294901760
    %v1625 = vsub.f32 %v1623, %v1624
    %v1626 = vand.u32 %v1625, 4294901760
    %1627 = vmatpush1.msra.mxu0 %v1626
    %1628 = vmatprep.subr.mxu0 0.0
    %v1629 = vand.u32 %v221, 4294901760
    %v1630 = vsub.f32 %v221, %v1629
    %v1631 = vand.u32 %v1630, 4294901760
    %v1632 = vsub.f32 %v1630, %v1631
    %v1633 = vand.u32 %v1632, 4294901760
    %1634 = vmatpush1.msra.mxu0 %v1633
    %1635 = vmatprep.subr.mxu0 0.0
    %v1636 = vand.u32 %v222, 4294901760
    %v1637 = vsub.f32 %v222, %v1636
    %v1638 = vand.u32 %v1637, 4294901760
    %v1639 = vsub.f32 %v1637, %v1638
    %v1640 = vand.u32 %v1639, 4294901760
    %1641 = vmatpush1.msra.mxu0 %v1640
    %1642 = vmatprep.subr.mxu0 0.0
    %v1643 = vand.u32 %v223, 4294901760
    %v1644 = vsub.f32 %v223, %v1643
    %v1645 = vand.u32 %v1644, 4294901760
    %v1646 = vsub.f32 %v1644, %v1645
    %v1647 = vand.u32 %v1646, 4294901760
    %1648 = vmatpush1.msra.mxu0 %v1647
    %1649 = vmatprep.subr.mxu0 0.0
    %v1650 = vand.u32 %v224, 4294901760
    %v1651 = vsub.f32 %v224, %v1650
    %v1652 = vand.u32 %v1651, 4294901760
    %v1653 = vsub.f32 %v1651, %v1652
    %v1654 = vand.u32 %v1653, 4294901760
    %1655 = vmatpush1.msra.mxu0 %v1654
    %1656 = vmatprep.subr.mxu0 0.0
    %1657 = vmatpush1.msra.mxu0 0.0
    %1658 = vmatprep.subr.mxu0 0.0
    %1659 = vmatpush1.msra.mxu0 0.0
    %1660 = vmatprep.subr.mxu0 0.0
    %1661 = vmatpush1.msra.mxu0 0.0
    %1662 = vmatprep.subr.mxu0 0.0
    %1663 = vmatpush1.msra.mxu0 0.0
    %1664 = vmatprep.subr.mxu0 0.0
    %1665 = vmatpush1.msra.mxu0 0.0
    %1666 = vmatprep.subr.mxu0 0.0
    %1667 = vmatpush1.msra.mxu0 0.0
    %1668 = vmatprep.subr.mxu0 0.0
    %1669 = vmatpush1.msra.mxu0 0.0
    %1670 = vmatprep.subr.mxu0 0.0
    %1671 = vmatpush1.msra.mxu0 0.0
    %v1672 = vand.u32 %v1256, 4294901760
    %1673 = vmatprep.mubr.f32.mxu0 %v1672
    %v1674 = vand.u32 %v1239, 4294901760
    %1675 = vmatmul.mubr.f32.gmra.mrb[0].mxu0 %v1674
    %v1676 = vpop.f32.mrb[0].mxu0
    %v1677 = vadd.f32 %v1380, %v1676
    %v1678 = vpop.f32.mrb[0].mxu0
    %v1679 = vand.u32 %v1259, 4294901760
    %1680 = vmatprep.mubr.f32.mxu0 %v1679
    %v1681 = vand.u32 %v1241, 4294901760
    %1682 = vmatmul.mubr.f32.gmra.mrb[0].mxu0 %v1681
    %v1683 = vpop.f32.mrb[0].mxu0
    %v1684 = vadd.f32 %v1395, %v1683
    %v1685 = vpop.f32.mrb[0].mxu0
    %v1686 = vand.u32 %v1262, 4294901760
    %1687 = vmatprep.mubr.f32.mxu0 %v1686
    %v1688 = vand.u32 %v1243, 4294901760
    %1689 = vmatmul.mubr.f32.gmra.mrb[0].mxu0 %v1688
    %v1690 = vpop.f32.mrb[0].mxu0
    %v1691 = vadd.f32 %v1410, %v1690
    %v1692 = vpop.f32.mrb[0].mxu0
    %v1693 = vand.u32 %v1265, 4294901760
    %1694 = vmatprep.mubr.f32.mxu0 %v1693
    %v1695 = vand.u32 %v1245, 4294901760
    %1696 = vmatmul.mubr.f32.gmra.mrb[0].mxu0 %v1695
    %v1697 = vpop.f32.mrb[0].mxu0
    %v1698 = vadd.f32 %v1425, %v1697
    %v1699 = vpop.f32.mrb[0].mxu0
    %v1700 = vand.u32 %v1268, 4294901760
    %1701 = vmatprep.mubr.f32.mxu0 %v1700
    %v1702 = vand.u32 %v1247, 4294901760
    %1703 = vmatmul.mubr.f32.gmra.mrb[0].mxu0 %v1702
    %v1704 = vpop.f32.mrb[0].mxu0
    %v1705 = vadd.f32 %v1440, %v1704
    %v1706 = vpop.f32.mrb[0].mxu0
    %v1707 = vand.u32 %v1271, 4294901760
    %1708 = vmatprep.mubr.f32.mxu0 %v1707
    %v1709 = vand.u32 %v1249, 4294901760
    %1710 = vmatmul.mubr.f32.gmra.mrb[0].mxu0 %v1709
    %v1711 = vpop.f32.mrb[0].mxu0
    %v1712 = vadd.f32 %v1455, %v1711
    %v1713 = vpop.f32.mrb[0].mxu0
    %v1714 = vand.u32 %v1274, 4294901760
    %1715 = vmatprep.mubr.f32.mxu0 %v1714
    %v1716 = vand.u32 %v1251, 4294901760
    %1717 = vmatmul.mubr.f32.gmra.mrb[0].mxu0 %v1716
    %v1718 = vpop.f32.mrb[0].mxu0
    %v1719 = vadd.f32 %v1470, %v1718
    %v1720 = vpop.f32.mrb[0].mxu0
    %v1721 = vand.u32 %v1277, 4294901760
    %1722 = vmatprep.mubr.f32.mxu0 %v1721
    %v1723 = vand.u32 %v1253, 4294901760
    %1724 = vmatmul.mubr.f32.gmra.mrb[0].mxu0 %v1723
    %v1725 = vpop.f32.mrb[0].mxu0
    %v1726 = vadd.f32 %v1485, %v1725
    %v1727 = vpop.f32.mrb[0].mxu0
    %1728 = vdwg.mxu0
    %1729 = vmatprep.subr.mxu0 0.0
    %v1730 = vand.u32 %v201, 4294901760
    %v1731 = vsub.f32 %v201, %v1730
    %1732 = vmatpush1.msra.mxu0 %v1731
    %1733 = vmatprep.subr.mxu0 0.0
    %v1734 = vand.u32 %v202, 4294901760
    %v1735 = vsub.f32 %v202, %v1734
    %1736 = vmatpush1.msra.mxu0 %v1735
    %1737 = vmatprep.subr.mxu0 0.0
    %v1738 = vand.u32 %v203, 4294901760
    %v1739 = vsub.f32 %v203, %v1738
    %1740 = vmatpush1.msra.mxu0 %v1739
    %1741 = vmatprep.subr.mxu0 0.0
    %v1742 = vand.u32 %v204, 4294901760
    %v1743 = vsub.f32 %v204, %v1742
    %1744 = vmatpush1.msra.mxu0 %v1743
    %1745 = vmatprep.subr.mxu0 0.0
    %v1746 = vand.u32 %v205, 4294901760
    %v1747 = vsub.f32 %v205, %v1746
    %1748 = vmatpush1.msra.mxu0 %v1747
    %1749 = vmatprep.subr.mxu0 0.0
    %v1750 = vand.u32 %v206, 4294901760
    %v1751 = vsub.f32 %v206, %v1750
    %1752 = vmatpush1.msra.mxu0 %v1751
    %1753 = vmatprep.subr.mxu0 0.0
    %v1754 = vand.u32 %v207, 4294901760
    %v1755 = vsub.f32 %v207, %v1754
    %1756 = vmatpush1.msra.mxu0 %v1755
    %1757 = vmatprep.subr.mxu0 0.0
    %v1758 = vand.u32 %v208, 4294901760
    %v1759 = vsub.f32 %v208, %v1758
    %1760 = vmatpush1.msra.mxu0 %v1759
    %1761 = vmatprep.subr.mxu0 0.0
    %v1762 = vand.u32 %v209, 4294901760
    %v1763 = vsub.f32 %v209, %v1762
    %1764 = vmatpush1.msra.mxu0 %v1763
    %1765 = vmatprep.subr.mxu0 0.0
    %v1766 = vand.u32 %v210, 4294901760
    %v1767 = vsub.f32 %v210, %v1766
    %1768 = vmatpush1.msra.mxu0 %v1767
    %1769 = vmatprep.subr.mxu0 0.0
    %v1770 = vand.u32 %v211, 4294901760
    %v1771 = vsub.f32 %v211, %v1770
    %1772 = vmatpush1.msra.mxu0 %v1771
    %1773 = vmatprep.subr.mxu0 0.0
    %v1774 = vand.u32 %v212, 4294901760
    %v1775 = vsub.f32 %v212, %v1774
    %1776 = vmatpush1.msra.mxu0 %v1775
    %1777 = vmatprep.subr.mxu0 0.0
    %v1778 = vand.u32 %v213, 4294901760
    %v1779 = vsub.f32 %v213, %v1778
    %1780 = vmatpush1.msra.mxu0 %v1779
    %1781 = vmatprep.subr.mxu0 0.0
    %v1782 = vand.u32 %v214, 4294901760
    %v1783 = vsub.f32 %v214, %v1782
    %1784 = vmatpush1.msra.mxu0 %v1783
    %1785 = vmatprep.subr.mxu0 0.0
    %v1786 = vand.u32 %v215, 4294901760
    %v1787 = vsub.f32 %v215, %v1786
    %1788 = vmatpush1.msra.mxu0 %v1787
    %1789 = vmatprep.subr.mxu0 0.0
    %v1790 = vand.u32 %v216, 4294901760
    %v1791 = vsub.f32 %v216, %v1790
    %1792 = vmatpush1.msra.mxu0 %v1791
    %1793 = vmatprep.subr.mxu0 0.0
    %v1794 = vand.u32 %v217, 4294901760
    %v1795 = vsub.f32 %v217, %v1794
    %1796 = vmatpush1.msra.mxu0 %v1795
    %1797 = vmatprep.subr.mxu0 0.0
    %v1798 = vand.u32 %v218, 4294901760
    %v1799 = vsub.f32 %v218, %v1798
    %1800 = vmatpush1.msra.mxu0 %v1799
    %1801 = vmatprep.subr.mxu0 0.0
    %v1802 = vand.u32 %v219, 4294901760
    %v1803 = vsub.f32 %v219, %v1802
    %1804 = vmatpush1.msra.mxu0 %v1803
    %1805 = vmatprep.subr.mxu0 0.0
    %v1806 = vand.u32 %v220, 4294901760
    %v1807 = vsub.f32 %v220, %v1806
    %1808 = vmatpush1.msra.mxu0 %v1807
    %1809 = vmatprep.subr.mxu0 0.0
    %v1810 = vand.u32 %v221, 4294901760
    %v1811 = vsub.f32 %v221, %v1810
    %1812 = vmatpush1.msra.mxu0 %v1811
    %1813 = vmatprep.subr.mxu0 0.0
    %v1814 = vand.u32 %v222, 4294901760
    %v1815 = vsub.f32 %v222, %v1814
    %1816 = vmatpush1.msra.mxu0 %v1815
    %1817 = vmatprep.subr.mxu0 0.0
    %v1818 = vand.u32 %v223, 4294901760
    %v1819 = vsub.f32 %v223, %v1818
    %1820 = vmatpush1.msra.mxu0 %v1819
    %1821 = vmatprep.subr.mxu0 0.0
    %v1822 = vand.u32 %v224, 4294901760
    %v1823 = vsub.f32 %v224, %v1822
    %1824 = vmatpush1.msra.mxu0 %v1823
    %1825 = vmatprep.subr.mxu0 0.0
    %1826 = vmatpush1.msra.mxu0 0.0
    %1827 = vmatprep.subr.mxu0 0.0
    %1828 = vmatpush1.msra.mxu0 0.0
    %1829 = vmatprep.subr.mxu0 0.0
    %1830 = vmatpush1.msra.mxu0 0.0
    %1831 = vmatprep.subr.mxu0 0.0
    %1832 = vmatpush1.msra.mxu0 0.0
    %1833 = vmatprep.subr.mxu0 0.0
    %1834 = vmatpush1.msra.mxu0 0.0
    %1835 = vmatprep.subr.mxu0 0.0
    %1836 = vmatpush1.msra.mxu0 0.0
    %1837 = vmatprep.subr.mxu0 0.0
    %1838 = vmatpush1.msra.mxu0 0.0
    %1839 = vmatprep.subr.mxu0 0.0
    %1840 = vmatpush1.msra.mxu0 0.0
    %v1841 = vand.u32 %v1256, 4294901760
    %v1842 = vsub.f32 %v1256, %v1841
    %1843 = vmatprep.mubr.f32.mxu0 %v1842
    %v1844 = vand.u32 %v1239, 4294901760
    %v1845 = vsub.f32 %v1239, %v1844
    %1846 = vmatmul.mubr.f32.gmra.mrb[0].mxu0 %v1845
    %v1847 = vpop.f32.mrb[0].mxu0
    %v1848 = vadd.f32 %v1677, %v1847
    %v1849 = vpop.f32.mrb[0].mxu0
    %v1850 = vand.u32 %v1259, 4294901760
    %v1851 = vsub.f32 %v1259, %v1850
    %1852 = vmatprep.mubr.f32.mxu0 %v1851
    %v1853 = vand.u32 %v1241, 4294901760
    %v1854 = vsub.f32 %v1241, %v1853
    %1855 = vmatmul.mubr.f32.gmra.mrb[0].mxu0 %v1854
    %v1856 = vpop.f32.mrb[0].mxu0
    %v1857 = vadd.f32 %v1684, %v1856
    %v1858 = vpop.f32.mrb[0].mxu0
    %v1859 = vand.u32 %v1262, 4294901760
    %v1860 = vsub.f32 %v1262, %v1859
    %1861 = vmatprep.mubr.f32.mxu0 %v1860
    %v1862 = vand.u32 %v1243, 4294901760
    %v1863 = vsub.f32 %v1243, %v1862
    %1864 = vmatmul.mubr.f32.gmra.mrb[0].mxu0 %v1863
    %v1865 = vpop.f32.mrb[0].mxu0
    %v1866 = vadd.f32 %v1691, %v1865
    %v1867 = vpop.f32.mrb[0].mxu0
    %v1868 = vand.u32 %v1265, 4294901760
    %v1869 = vsub.f32 %v1265, %v1868
    %1870 = vmatprep.mubr.f32.mxu0 %v1869
    %v1871 = vand.u32 %v1245, 4294901760
    %v1872 = vsub.f32 %v1245, %v1871
    %1873 = vmatmul.mubr.f32.gmra.mrb[0].mxu0 %v1872
    %v1874 = vpop.f32.mrb[0].mxu0
    %v1875 = vadd.f32 %v1698, %v1874
    %v1876 = vpop.f32.mrb[0].mxu0
    %v1877 = vand.u32 %v1268, 4294901760
    %v1878 = vsub.f32 %v1268, %v1877
    %1879 = vmatprep.mubr.f32.mxu0 %v1878
    %v1880 = vand.u32 %v1247, 4294901760
    %v1881 = vsub.f32 %v1247, %v1880
    %1882 = vmatmul.mubr.f32.gmra.mrb[0].mxu0 %v1881
    %v1883 = vpop.f32.mrb[0].mxu0
    %v1884 = vadd.f32 %v1705, %v1883
    %v1885 = vpop.f32.mrb[0].mxu0
    %v1886 = vand.u32 %v1271, 4294901760
    %v1887 = vsub.f32 %v1271, %v1886
    %1888 = vmatprep.mubr.f32.mxu0 %v1887
    %v1889 = vand.u32 %v1249, 4294901760
    %v1890 = vsub.f32 %v1249, %v1889
    %1891 = vmatmul.mubr.f32.gmra.mrb[0].mxu0 %v1890
    %v1892 = vpop.f32.mrb[0].mxu0
    %v1893 = vadd.f32 %v1712, %v1892
    %v1894 = vpop.f32.mrb[0].mxu0
    %v1895 = vand.u32 %v1274, 4294901760
    %v1896 = vsub.f32 %v1274, %v1895
    %1897 = vmatprep.mubr.f32.mxu0 %v1896
    %v1898 = vand.u32 %v1251, 4294901760
    %v1899 = vsub.f32 %v1251, %v1898
    %1900 = vmatmul.mubr.f32.gmra.mrb[0].mxu0 %v1899
    %v1901 = vpop.f32.mrb[0].mxu0
    %v1902 = vadd.f32 %v1719, %v1901
    %v1903 = vpop.f32.mrb[0].mxu0
    %v1904 = vand.u32 %v1277, 4294901760
    %v1905 = vsub.f32 %v1277, %v1904
    %1906 = vmatprep.mubr.f32.mxu0 %v1905
    %v1907 = vand.u32 %v1253, 4294901760
    %v1908 = vsub.f32 %v1253, %v1907
    %1909 = vmatmul.mubr.f32.gmra.mrb[0].mxu0 %v1908
    %v1910 = vpop.f32.mrb[0].mxu0
    %v1911 = vadd.f32 %v1726, %v1910
    %v1912 = vpop.f32.mrb[0].mxu0
    %1913 = vdwg.mxu0
    %1914 = vmatprep.subr.mxu0 0.0
    %v1915 = vand.u32 %v201, 4294901760
    %1916 = vmatpush1.msra.mxu0 %v1915
    %1917 = vmatprep.subr.mxu0 0.0
    %v1918 = vand.u32 %v202, 4294901760
    %1919 = vmatpush1.msra.mxu0 %v1918
    %1920 = vmatprep.subr.mxu0 0.0
    %v1921 = vand.u32 %v203, 4294901760
    %1922 = vmatpush1.msra.mxu0 %v1921
    %1923 = vmatprep.subr.mxu0 0.0
    %v1924 = vand.u32 %v204, 4294901760
    %1925 = vmatpush1.msra.mxu0 %v1924
    %1926 = vmatprep.subr.mxu0 0.0
    %v1927 = vand.u32 %v205, 4294901760
    %1928 = vmatpush1.msra.mxu0 %v1927
    %1929 = vmatprep.subr.mxu0 0.0
    %v1930 = vand.u32 %v206, 4294901760
    %1931 = vmatpush1.msra.mxu0 %v1930
    %1932 = vmatprep.subr.mxu0 0.0
    %v1933 = vand.u32 %v207, 4294901760
    %1934 = vmatpush1.msra.mxu0 %v1933
    %1935 = vmatprep.subr.mxu0 0.0
    %v1936 = vand.u32 %v208, 4294901760
    %1937 = vmatpush1.msra.mxu0 %v1936
    %1938 = vmatprep.subr.mxu0 0.0
    %v1939 = vand.u32 %v209, 4294901760
    %1940 = vmatpush1.msra.mxu0 %v1939
    %1941 = vmatprep.subr.mxu0 0.0
    %v1942 = vand.u32 %v210, 4294901760
    %1943 = vmatpush1.msra.mxu0 %v1942
    %1944 = vmatprep.subr.mxu0 0.0
    %v1945 = vand.u32 %v211, 4294901760
    %1946 = vmatpush1.msra.mxu0 %v1945
    %1947 = vmatprep.subr.mxu0 0.0
    %v1948 = vand.u32 %v212, 4294901760
    %1949 = vmatpush1.msra.mxu0 %v1948
    %1950 = vmatprep.subr.mxu0 0.0
    %v1951 = vand.u32 %v213, 4294901760
    %1952 = vmatpush1.msra.mxu0 %v1951
    %1953 = vmatprep.subr.mxu0 0.0
    %v1954 = vand.u32 %v214, 4294901760
    %1955 = vmatpush1.msra.mxu0 %v1954
    %1956 = vmatprep.subr.mxu0 0.0
    %v1957 = vand.u32 %v215, 4294901760
    %1958 = vmatpush1.msra.mxu0 %v1957
    %1959 = vmatprep.subr.mxu0 0.0
    %v1960 = vand.u32 %v216, 4294901760
    %1961 = vmatpush1.msra.mxu0 %v1960
    %1962 = vmatprep.subr.mxu0 0.0
    %v1963 = vand.u32 %v217, 4294901760
    %1964 = vmatpush1.msra.mxu0 %v1963
    %1965 = vmatprep.subr.mxu0 0.0
    %v1966 = vand.u32 %v218, 4294901760
    %1967 = vmatpush1.msra.mxu0 %v1966
    %1968 = vmatprep.subr.mxu0 0.0
    %v1969 = vand.u32 %v219, 4294901760
    %1970 = vmatpush1.msra.mxu0 %v1969
    %1971 = vmatprep.subr.mxu0 0.0
    %v1972 = vand.u32 %v220, 4294901760
    %1973 = vmatpush1.msra.mxu0 %v1972
    %1974 = vmatprep.subr.mxu0 0.0
    %v1975 = vand.u32 %v221, 4294901760
    %1976 = vmatpush1.msra.mxu0 %v1975
    %1977 = vmatprep.subr.mxu0 0.0
    %v1978 = vand.u32 %v222, 4294901760
    %1979 = vmatpush1.msra.mxu0 %v1978
    %1980 = vmatprep.subr.mxu0 0.0
    %v1981 = vand.u32 %v223, 4294901760
    %1982 = vmatpush1.msra.mxu0 %v1981
    %1983 = vmatprep.subr.mxu0 0.0
    %v1984 = vand.u32 %v224, 4294901760
    %1985 = vmatpush1.msra.mxu0 %v1984
    %1986 = vmatprep.subr.mxu0 0.0
    %1987 = vmatpush1.msra.mxu0 0.0
    %1988 = vmatprep.subr.mxu0 0.0
    %1989 = vmatpush1.msra.mxu0 0.0
    %1990 = vmatprep.subr.mxu0 0.0
    %1991 = vmatpush1.msra.mxu0 0.0
    %1992 = vmatprep.subr.mxu0 0.0
    %1993 = vmatpush1.msra.mxu0 0.0
    %1994 = vmatprep.subr.mxu0 0.0
    %1995 = vmatpush1.msra.mxu0 0.0
    %1996 = vmatprep.subr.mxu0 0.0
    %1997 = vmatpush1.msra.mxu0 0.0
    %1998 = vmatprep.subr.mxu0 0.0
    %1999 = vmatpush1.msra.mxu0 0.0
    %2000 = vmatprep.subr.mxu0 0.0
    %2001 = vmatpush1.msra.mxu0 0.0
    %v2002 = vand.u32 %v1256, 4294901760
    %v2003 = vsub.f32 %v1256, %v2002
    %v2004 = vand.u32 %v2003, 4294901760
    %2005 = vmatprep.mubr.f32.mxu0 %v2004
    %v2006 = vand.u32 %v1239, 4294901760
    %v2007 = vsub.f32 %v1239, %v2006
    %v2008 = vand.u32 %v2007, 4294901760
    %2009 = vmatmul.mubr.f32.gmra.mrb[0].mxu0 %v2008
    %v2010 = vpop.f32.mrb[0].mxu0
    %v2011 = vadd.f32 %v1848, %v2010
    %v2012 = vpop.f32.mrb[0].mxu0
    %v2013 = vand.u32 %v1259, 4294901760
    %v2014 = vsub.f32 %v1259, %v2013
    %v2015 = vand.u32 %v2014, 4294901760
    %2016 = vmatprep.mubr.f32.mxu0 %v2015
    %v2017 = vand.u32 %v1241, 4294901760
    %v2018 = vsub.f32 %v1241, %v2017
    %v2019 = vand.u32 %v2018, 4294901760
    %2020 = vmatmul.mubr.f32.gmra.mrb[0].mxu0 %v2019
    %v2021 = vpop.f32.mrb[0].mxu0
    %v2022 = vadd.f32 %v1857, %v2021
    %v2023 = vpop.f32.mrb[0].mxu0
    %v2024 = vand.u32 %v1262, 4294901760
    %v2025 = vsub.f32 %v1262, %v2024
    %v2026 = vand.u32 %v2025, 4294901760
    %2027 = vmatprep.mubr.f32.mxu0 %v2026
    %v2028 = vand.u32 %v1243, 4294901760
    %v2029 = vsub.f32 %v1243, %v2028
    %v2030 = vand.u32 %v2029, 4294901760
    %2031 = vmatmul.mubr.f32.gmra.mrb[0].mxu0 %v2030
    %v2032 = vpop.f32.mrb[0].mxu0
    %v2033 = vadd.f32 %v1866, %v2032
    %v2034 = vpop.f32.mrb[0].mxu0
    %v2035 = vand.u32 %v1265, 4294901760
    %v2036 = vsub.f32 %v1265, %v2035
    %v2037 = vand.u32 %v2036, 4294901760
    %2038 = vmatprep.mubr.f32.mxu0 %v2037
    %v2039 = vand.u32 %v1245, 4294901760
    %v2040 = vsub.f32 %v1245, %v2039
    %v2041 = vand.u32 %v2040, 4294901760
    %2042 = vmatmul.mubr.f32.gmra.mrb[0].mxu0 %v2041
    %v2043 = vpop.f32.mrb[0].mxu0
    %v2044 = vadd.f32 %v1875, %v2043
    %v2045 = vpop.f32.mrb[0].mxu0
    %v2046 = vand.u32 %v1268, 4294901760
    %v2047 = vsub.f32 %v1268, %v2046
    %v2048 = vand.u32 %v2047, 4294901760
    %2049 = vmatprep.mubr.f32.mxu0 %v2048
    %v2050 = vand.u32 %v1247, 4294901760
    %v2051 = vsub.f32 %v1247, %v2050
    %v2052 = vand.u32 %v2051, 4294901760
    %2053 = vmatmul.mubr.f32.gmra.mrb[0].mxu0 %v2052
    %v2054 = vpop.f32.mrb[0].mxu0
    %v2055 = vadd.f32 %v1884, %v2054
    %v2056 = vpop.f32.mrb[0].mxu0
    %v2057 = vand.u32 %v1271, 4294901760
    %v2058 = vsub.f32 %v1271, %v2057
    %v2059 = vand.u32 %v2058, 4294901760
    %2060 = vmatprep.mubr.f32.mxu0 %v2059
    %v2061 = vand.u32 %v1249, 4294901760
    %v2062 = vsub.f32 %v1249, %v2061
    %v2063 = vand.u32 %v2062, 4294901760
    %2064 = vmatmul.mubr.f32.gmra.mrb[0].mxu0 %v2063
    %v2065 = vpop.f32.mrb[0].mxu0
    %v2066 = vadd.f32 %v1893, %v2065
    %v2067 = vpop.f32.mrb[0].mxu0
    %v2068 = vand.u32 %v1274, 4294901760
    %v2069 = vsub.f32 %v1274, %v2068
    %v2070 = vand.u32 %v2069, 4294901760
    %2071 = vmatprep.mubr.f32.mxu0 %v2070
    %v2072 = vand.u32 %v1251, 4294901760
    %v2073 = vsub.f32 %v1251, %v2072
    %v2074 = vand.u32 %v2073, 4294901760
    %2075 = vmatmul.mubr.f32.gmra.mrb[0].mxu0 %v2074
    %v2076 = vpop.f32.mrb[0].mxu0
    %v2077 = vadd.f32 %v1902, %v2076
    %v2078 = vpop.f32.mrb[0].mxu0
    %v2079 = vand.u32 %v1277, 4294901760
    %v2080 = vsub.f32 %v1277, %v2079
    %v2081 = vand.u32 %v2080, 4294901760
    %2082 = vmatprep.mubr.f32.mxu0 %v2081
    %v2083 = vand.u32 %v1253, 4294901760
    %v2084 = vsub.f32 %v1253, %v2083
    %v2085 = vand.u32 %v2084, 4294901760
    %2086 = vmatmul.mubr.f32.gmra.mrb[0].mxu0 %v2085
    %v2087 = vpop.f32.mrb[0].mxu0
    %v2088 = vadd.f32 %v1911, %v2087
    %v2089 = vpop.f32.mrb[0].mxu0
    %2090 = vdwg.mxu0
    %2091 = vmatprep.subr.mxu0 0.0
    %v2092 = vand.u32 %v201, 4294901760
    %v2093 = vsub.f32 %v201, %v2092
    %v2094 = vand.u32 %v2093, 4294901760
    %2095 = vmatpush1.msra.mxu0 %v2094
    %2096 = vmatprep.subr.mxu0 0.0
    %v2097 = vand.u32 %v202, 4294901760
    %v2098 = vsub.f32 %v202, %v2097
    %v2099 = vand.u32 %v2098, 4294901760
    %2100 = vmatpush1.msra.mxu0 %v2099
    %2101 = vmatprep.subr.mxu0 0.0
    %v2102 = vand.u32 %v203, 4294901760
    %v2103 = vsub.f32 %v203, %v2102
    %v2104 = vand.u32 %v2103, 4294901760
    %2105 = vmatpush1.msra.mxu0 %v2104
    %2106 = vmatprep.subr.mxu0 0.0
    %v2107 = vand.u32 %v204, 4294901760
    %v2108 = vsub.f32 %v204, %v2107
    %v2109 = vand.u32 %v2108, 4294901760
    %2110 = vmatpush1.msra.mxu0 %v2109
    %2111 = vmatprep.subr.mxu0 0.0
    %v2112 = vand.u32 %v205, 4294901760
    %v2113 = vsub.f32 %v205, %v2112
    %v2114 = vand.u32 %v2113, 4294901760
    %2115 = vmatpush1.msra.mxu0 %v2114
    %2116 = vmatprep.subr.mxu0 0.0
    %v2117 = vand.u32 %v206, 4294901760
    %v2118 = vsub.f32 %v206, %v2117
    %v2119 = vand.u32 %v2118, 4294901760
    %2120 = vmatpush1.msra.mxu0 %v2119
    %2121 = vmatprep.subr.mxu0 0.0
    %v2122 = vand.u32 %v207, 4294901760
    %v2123 = vsub.f32 %v207, %v2122
    %v2124 = vand.u32 %v2123, 4294901760
    %2125 = vmatpush1.msra.mxu0 %v2124
    %2126 = vmatprep.subr.mxu0 0.0
    %v2127 = vand.u32 %v208, 4294901760
    %v2128 = vsub.f32 %v208, %v2127
    %v2129 = vand.u32 %v2128, 4294901760
    %2130 = vmatpush1.msra.mxu0 %v2129
    %2131 = vmatprep.subr.mxu0 0.0
    %v2132 = vand.u32 %v209, 4294901760
    %v2133 = vsub.f32 %v209, %v2132
    %v2134 = vand.u32 %v2133, 4294901760
    %2135 = vmatpush1.msra.mxu0 %v2134
    %2136 = vmatprep.subr.mxu0 0.0
    %v2137 = vand.u32 %v210, 4294901760
    %v2138 = vsub.f32 %v210, %v2137
    %v2139 = vand.u32 %v2138, 4294901760
    %2140 = vmatpush1.msra.mxu0 %v2139
    %2141 = vmatprep.subr.mxu0 0.0
    %v2142 = vand.u32 %v211, 4294901760
    %v2143 = vsub.f32 %v211, %v2142
    %v2144 = vand.u32 %v2143, 4294901760
    %2145 = vmatpush1.msra.mxu0 %v2144
    %2146 = vmatprep.subr.mxu0 0.0
    %v2147 = vand.u32 %v212, 4294901760
    %v2148 = vsub.f32 %v212, %v2147
    %v2149 = vand.u32 %v2148, 4294901760
    %2150 = vmatpush1.msra.mxu0 %v2149
    %2151 = vmatprep.subr.mxu0 0.0
    %v2152 = vand.u32 %v213, 4294901760
    %v2153 = vsub.f32 %v213, %v2152
    %v2154 = vand.u32 %v2153, 4294901760
    %2155 = vmatpush1.msra.mxu0 %v2154
    %2156 = vmatprep.subr.mxu0 0.0
    %v2157 = vand.u32 %v214, 4294901760
    %v2158 = vsub.f32 %v214, %v2157
    %v2159 = vand.u32 %v2158, 4294901760
    %2160 = vmatpush1.msra.mxu0 %v2159
    %2161 = vmatprep.subr.mxu0 0.0
    %v2162 = vand.u32 %v215, 4294901760
    %v2163 = vsub.f32 %v215, %v2162
    %v2164 = vand.u32 %v2163, 4294901760
    %2165 = vmatpush1.msra.mxu0 %v2164
    %2166 = vmatprep.subr.mxu0 0.0
    %v2167 = vand.u32 %v216, 4294901760
    %v2168 = vsub.f32 %v216, %v2167
    %v2169 = vand.u32 %v2168, 4294901760
    %2170 = vmatpush1.msra.mxu0 %v2169
    %2171 = vmatprep.subr.mxu0 0.0
    %v2172 = vand.u32 %v217, 4294901760
    %v2173 = vsub.f32 %v217, %v2172
    %v2174 = vand.u32 %v2173, 4294901760
    %2175 = vmatpush1.msra.mxu0 %v2174
    %2176 = vmatprep.subr.mxu0 0.0
    %v2177 = vand.u32 %v218, 4294901760
    %v2178 = vsub.f32 %v218, %v2177
    %v2179 = vand.u32 %v2178, 4294901760
    %2180 = vmatpush1.msra.mxu0 %v2179
    %2181 = vmatprep.subr.mxu0 0.0
    %v2182 = vand.u32 %v219, 4294901760
    %v2183 = vsub.f32 %v219, %v2182
    %v2184 = vand.u32 %v2183, 4294901760
    %2185 = vmatpush1.msra.mxu0 %v2184
    %2186 = vmatprep.subr.mxu0 0.0
    %v2187 = vand.u32 %v220, 4294901760
    %v2188 = vsub.f32 %v220, %v2187
    %v2189 = vand.u32 %v2188, 4294901760
    %2190 = vmatpush1.msra.mxu0 %v2189
    %2191 = vmatprep.subr.mxu0 0.0
    %v2192 = vand.u32 %v221, 4294901760
    %v2193 = vsub.f32 %v221, %v2192
    %v2194 = vand.u32 %v2193, 4294901760
    %2195 = vmatpush1.msra.mxu0 %v2194
    %2196 = vmatprep.subr.mxu0 0.0
    %v2197 = vand.u32 %v222, 4294901760
    %v2198 = vsub.f32 %v222, %v2197
    %v2199 = vand.u32 %v2198, 4294901760
    %2200 = vmatpush1.msra.mxu0 %v2199
    %2201 = vmatprep.subr.mxu0 0.0
    %v2202 = vand.u32 %v223, 4294901760
    %v2203 = vsub.f32 %v223, %v2202
    %v2204 = vand.u32 %v2203, 4294901760
    %2205 = vmatpush1.msra.mxu0 %v2204
    %2206 = vmatprep.subr.mxu0 0.0
    %v2207 = vand.u32 %v224, 4294901760
    %v2208 = vsub.f32 %v224, %v2207
    %v2209 = vand.u32 %v2208, 4294901760
    %2210 = vmatpush1.msra.mxu0 %v2209
    %2211 = vmatprep.subr.mxu0 0.0
    %2212 = vmatpush1.msra.mxu0 0.0
    %2213 = vmatprep.subr.mxu0 0.0
    %2214 = vmatpush1.msra.mxu0 0.0
    %2215 = vmatprep.subr.mxu0 0.0
    %2216 = vmatpush1.msra.mxu0 0.0
    %2217 = vmatprep.subr.mxu0 0.0
    %2218 = vmatpush1.msra.mxu0 0.0
    %2219 = vmatprep.subr.mxu0 0.0
    %2220 = vmatpush1.msra.mxu0 0.0
    %2221 = vmatprep.subr.mxu0 0.0
    %2222 = vmatpush1.msra.mxu0 0.0
    %2223 = vmatprep.subr.mxu0 0.0
    %2224 = vmatpush1.msra.mxu0 0.0
    %2225 = vmatprep.subr.mxu0 0.0
    %2226 = vmatpush1.msra.mxu0 0.0
    %v2227 = vand.u32 %v1256, 4294901760
    %2228 = vmatprep.mubr.f32.mxu0 %v2227
    %v2229 = vand.u32 %v1239, 4294901760
    %2230 = vmatmul.mubr.f32.gmra.mrb[0].mxu0 %v2229
    %v2231 = vpop.f32.mrb[0].mxu0
    %v2232 = vadd.f32 %v2011, %v2231
    %v2233 = vpop.f32.mrb[0].mxu0
    %v2234 = vand.u32 %v1259, 4294901760
    %2235 = vmatprep.mubr.f32.mxu0 %v2234
    %v2236 = vand.u32 %v1241, 4294901760
    %2237 = vmatmul.mubr.f32.gmra.mrb[0].mxu0 %v2236
    %v2238 = vpop.f32.mrb[0].mxu0
    %v2239 = vadd.f32 %v2022, %v2238
    %v2240 = vpop.f32.mrb[0].mxu0
    %v2241 = vand.u32 %v1262, 4294901760
    %2242 = vmatprep.mubr.f32.mxu0 %v2241
    %v2243 = vand.u32 %v1243, 4294901760
    %2244 = vmatmul.mubr.f32.gmra.mrb[0].mxu0 %v2243
    %v2245 = vpop.f32.mrb[0].mxu0
    %v2246 = vadd.f32 %v2033, %v2245
    %v2247 = vpop.f32.mrb[0].mxu0
    %v2248 = vand.u32 %v1265, 4294901760
    %2249 = vmatprep.mubr.f32.mxu0 %v2248
    %v2250 = vand.u32 %v1245, 4294901760
    %2251 = vmatmul.mubr.f32.gmra.mrb[0].mxu0 %v2250
    %v2252 = vpop.f32.mrb[0].mxu0
    %v2253 = vadd.f32 %v2044, %v2252
    %v2254 = vpop.f32.mrb[0].mxu0
    %v2255 = vand.u32 %v1268, 4294901760
    %2256 = vmatprep.mubr.f32.mxu0 %v2255
    %v2257 = vand.u32 %v1247, 4294901760
    %2258 = vmatmul.mubr.f32.gmra.mrb[0].mxu0 %v2257
    %v2259 = vpop.f32.mrb[0].mxu0
    %v2260 = vadd.f32 %v2055, %v2259
    %v2261 = vpop.f32.mrb[0].mxu0
    %v2262 = vand.u32 %v1271, 4294901760
    %2263 = vmatprep.mubr.f32.mxu0 %v2262
    %v2264 = vand.u32 %v1249, 4294901760
    %2265 = vmatmul.mubr.f32.gmra.mrb[0].mxu0 %v2264
    %v2266 = vpop.f32.mrb[0].mxu0
    %v2267 = vadd.f32 %v2066, %v2266
    %v2268 = vpop.f32.mrb[0].mxu0
    %v2269 = vand.u32 %v1274, 4294901760
    %2270 = vmatprep.mubr.f32.mxu0 %v2269
    %v2271 = vand.u32 %v1251, 4294901760
    %2272 = vmatmul.mubr.f32.gmra.mrb[0].mxu0 %v2271
    %v2273 = vpop.f32.mrb[0].mxu0
    %v2274 = vadd.f32 %v2077, %v2273
    %v2275 = vpop.f32.mrb[0].mxu0
    %v2276 = vand.u32 %v1277, 4294901760
    %2277 = vmatprep.mubr.f32.mxu0 %v2276
    %v2278 = vand.u32 %v1253, 4294901760
    %2279 = vmatmul.mubr.f32.gmra.mrb[0].mxu0 %v2278
    %v2280 = vpop.f32.mrb[0].mxu0
    %v2281 = vadd.f32 %v2088, %v2280
    %v2282 = vpop.f32.mrb[0].mxu0
    %2283 = vdwg.mxu0
    %2284 = vmatprep.subr.mxu0 0.0
    %v2285 = vand.u32 %v201, 4294901760
    %2286 = vmatpush1.msra.mxu0 %v2285
    %2287 = vmatprep.subr.mxu0 0.0
    %v2288 = vand.u32 %v202, 4294901760
    %2289 = vmatpush1.msra.mxu0 %v2288
    %2290 = vmatprep.subr.mxu0 0.0
    %v2291 = vand.u32 %v203, 4294901760
    %2292 = vmatpush1.msra.mxu0 %v2291
    %2293 = vmatprep.subr.mxu0 0.0
    %v2294 = vand.u32 %v204, 4294901760
    %2295 = vmatpush1.msra.mxu0 %v2294
    %2296 = vmatprep.subr.mxu0 0.0
    %v2297 = vand.u32 %v205, 4294901760
    %2298 = vmatpush1.msra.mxu0 %v2297
    %2299 = vmatprep.subr.mxu0 0.0
    %v2300 = vand.u32 %v206, 4294901760
    %2301 = vmatpush1.msra.mxu0 %v2300
    %2302 = vmatprep.subr.mxu0 0.0
    %v2303 = vand.u32 %v207, 4294901760
    %2304 = vmatpush1.msra.mxu0 %v2303
    %2305 = vmatprep.subr.mxu0 0.0
    %v2306 = vand.u32 %v208, 4294901760
    %2307 = vmatpush1.msra.mxu0 %v2306
    %2308 = vmatprep.subr.mxu0 0.0
    %v2309 = vand.u32 %v209, 4294901760
    %2310 = vmatpush1.msra.mxu0 %v2309
    %2311 = vmatprep.subr.mxu0 0.0
    %v2312 = vand.u32 %v210, 4294901760
    %2313 = vmatpush1.msra.mxu0 %v2312
    %2314 = vmatprep.subr.mxu0 0.0
    %v2315 = vand.u32 %v211, 4294901760
    %2316 = vmatpush1.msra.mxu0 %v2315
    %2317 = vmatprep.subr.mxu0 0.0
    %v2318 = vand.u32 %v212, 4294901760
    %2319 = vmatpush1.msra.mxu0 %v2318
    %2320 = vmatprep.subr.mxu0 0.0
    %v2321 = vand.u32 %v213, 4294901760
    %2322 = vmatpush1.msra.mxu0 %v2321
    %2323 = vmatprep.subr.mxu0 0.0
    %v2324 = vand.u32 %v214, 4294901760
    %2325 = vmatpush1.msra.mxu0 %v2324
    %2326 = vmatprep.subr.mxu0 0.0
    %v2327 = vand.u32 %v215, 4294901760
    %2328 = vmatpush1.msra.mxu0 %v2327
    %2329 = vmatprep.subr.mxu0 0.0
    %v2330 = vand.u32 %v216, 4294901760
    %2331 = vmatpush1.msra.mxu0 %v2330
    %2332 = vmatprep.subr.mxu0 0.0
    %v2333 = vand.u32 %v217, 4294901760
    %2334 = vmatpush1.msra.mxu0 %v2333
    %2335 = vmatprep.subr.mxu0 0.0
    %v2336 = vand.u32 %v218, 4294901760
    %2337 = vmatpush1.msra.mxu0 %v2336
    %2338 = vmatprep.subr.mxu0 0.0
    %v2339 = vand.u32 %v219, 4294901760
    %2340 = vmatpush1.msra.mxu0 %v2339
    %2341 = vmatprep.subr.mxu0 0.0
    %v2342 = vand.u32 %v220, 4294901760
    %2343 = vmatpush1.msra.mxu0 %v2342
    %2344 = vmatprep.subr.mxu0 0.0
    %v2345 = vand.u32 %v221, 4294901760
    %2346 = vmatpush1.msra.mxu0 %v2345
    %2347 = vmatprep.subr.mxu0 0.0
    %v2348 = vand.u32 %v222, 4294901760
    %2349 = vmatpush1.msra.mxu0 %v2348
    %2350 = vmatprep.subr.mxu0 0.0
    %v2351 = vand.u32 %v223, 4294901760
    %2352 = vmatpush1.msra.mxu0 %v2351
    %2353 = vmatprep.subr.mxu0 0.0
    %v2354 = vand.u32 %v224, 4294901760
    %2355 = vmatpush1.msra.mxu0 %v2354
    %2356 = vmatprep.subr.mxu0 0.0
    %2357 = vmatpush1.msra.mxu0 0.0
    %2358 = vmatprep.subr.mxu0 0.0
    %2359 = vmatpush1.msra.mxu0 0.0
    %2360 = vmatprep.subr.mxu0 0.0
    %2361 = vmatpush1.msra.mxu0 0.0
    %2362 = vmatprep.subr.mxu0 0.0
    %2363 = vmatpush1.msra.mxu0 0.0
    %2364 = vmatprep.subr.mxu0 0.0
    %2365 = vmatpush1.msra.mxu0 0.0
    %2366 = vmatprep.subr.mxu0 0.0
    %2367 = vmatpush1.msra.mxu0 0.0
    %2368 = vmatprep.subr.mxu0 0.0
    %2369 = vmatpush1.msra.mxu0 0.0
    %2370 = vmatprep.subr.mxu0 0.0
    %2371 = vmatpush1.msra.mxu0 0.0
    %v2372 = vand.u32 %v1256, 4294901760
    %2373 = vmatprep.mubr.f32.mxu0 %v2372
    %v2374 = vand.u32 %v1239, 4294901760
    %2375 = vmatmul.mubr.f32.gmra.mrb[0].mxu0 %v2374
    %v2376 = vpop.f32.mrb[0].mxu0
    %v2377 = vadd.f32 %v2232, %v2376
    %v2378 = vpop.f32.mrb[0].mxu0
    %v2379 = vand.u32 %v1259, 4294901760
    %2380 = vmatprep.mubr.f32.mxu0 %v2379
    %v2381 = vand.u32 %v1241, 4294901760
    %2382 = vmatmul.mubr.f32.gmra.mrb[0].mxu0 %v2381
    %v2383 = vpop.f32.mrb[0].mxu0
    %v2384 = vadd.f32 %v2239, %v2383
    %v2385 = vpop.f32.mrb[0].mxu0
    %v2386 = vand.u32 %v1262, 4294901760
    %2387 = vmatprep.mubr.f32.mxu0 %v2386
    %v2388 = vand.u32 %v1243, 4294901760
    %2389 = vmatmul.mubr.f32.gmra.mrb[0].mxu0 %v2388
    %v2390 = vpop.f32.mrb[0].mxu0
    %v2391 = vadd.f32 %v2246, %v2390
    %v2392 = vpop.f32.mrb[0].mxu0
    %v2393 = vand.u32 %v1265, 4294901760
    %2394 = vmatprep.mubr.f32.mxu0 %v2393
    %v2395 = vand.u32 %v1245, 4294901760
    %2396 = vmatmul.mubr.f32.gmra.mrb[0].mxu0 %v2395
    %v2397 = vpop.f32.mrb[0].mxu0
    %v2398 = vadd.f32 %v2253, %v2397
    %v2399 = vpop.f32.mrb[0].mxu0
    %v2400 = vand.u32 %v1268, 4294901760
    %2401 = vmatprep.mubr.f32.mxu0 %v2400
    %v2402 = vand.u32 %v1247, 4294901760
    %2403 = vmatmul.mubr.f32.gmra.mrb[0].mxu0 %v2402
    %v2404 = vpop.f32.mrb[0].mxu0
    %v2405 = vadd.f32 %v2260, %v2404
    %v2406 = vpop.f32.mrb[0].mxu0
    %v2407 = vand.u32 %v1271, 4294901760
    %2408 = vmatprep.mubr.f32.mxu0 %v2407
    %v2409 = vand.u32 %v1249, 4294901760
    %2410 = vmatmul.mubr.f32.gmra.mrb[0].mxu0 %v2409
    %v2411 = vpop.f32.mrb[0].mxu0
    %v2412 = vadd.f32 %v2267, %v2411
    %v2413 = vpop.f32.mrb[0].mxu0
    %v2414 = vand.u32 %v1274, 4294901760
    %2415 = vmatprep.mubr.f32.mxu0 %v2414
    %v2416 = vand.u32 %v1251, 4294901760
    %2417 = vmatmul.mubr.f32.gmra.mrb[0].mxu0 %v2416
    %v2418 = vpop.f32.mrb[0].mxu0
    %v2419 = vadd.f32 %v2274, %v2418
    %v2420 = vpop.f32.mrb[0].mxu0
    %v2421 = vand.u32 %v1277, 4294901760
    %2422 = vmatprep.mubr.f32.mxu0 %v2421
    %v2423 = vand.u32 %v1253, 4294901760
    %2424 = vmatmul.mubr.f32.gmra.mrb[0].mxu0 %v2423
    %v2425 = vpop.f32.mrb[0].mxu0
    %v2426 = vadd.f32 %v2281, %v2425
    %v2427 = vpop.f32.mrb[0].mxu0
    %2428 = vdwg.mxu0
    %s2429 = scalar_lea.vmem %s1, 64
    %v2430 = vld [vmem:[%s2429] sm:$0xff]
    %v2431 = vld [vmem:[%s2429 + $0x8] sm:$0xff]
    %v2432 = vld [vmem:[%s2429 + $0x10] sm:$0xff]
    %v2433 = vld [vmem:[%s2429 + $0x18] sm:$0xff]
    %s2434 = scalar_lea.vmem %s1, 96
    %v2435 = vld [vmem:[%s2434] sm:$0xff]
    %v2436 = vld [vmem:[%s2434 + $0x8] sm:$0xff]
    %v2437 = vld [vmem:[%s2434 + $0x10] sm:$0xff]
    %v2438 = vld [vmem:[%s2434 + $0x18] sm:$0xff]
    %v2439 = vsel %vm35, %v2377, 0.0
    %v2440 = vsel %vm35, %v2384, 0.0
    %v2441 = vadd.f32 %v2439, %v2440
    %v2442 = vsel %vm35, %v2391, 0.0
    %v2443 = vadd.f32 %v2441, %v2442
    %v2444 = vsel %vm35, %v2398, 0.0
    %v2445 = vadd.f32 %v2443, %v2444
    %v2446 = vrot.slane %v2445, 4
    %v2447 = vadd.f32 %v2445, %v2446
    %v2448 = vrot.slane %v2447, 2
    %v2449 = vadd.f32 %v2447, %v2448
    %v2450 = vrot.slane %v2449, 1
    %v2451 = vadd.f32 %v2449, %v2450
    %v2452 = vsel %vm35, %v2405, 0.0
    %v2453 = vsel %vm35, %v2412, 0.0
    %v2454 = vadd.f32 %v2452, %v2453
    %v2455 = vsel %vm35, %v2419, 0.0
    %v2456 = vadd.f32 %v2454, %v2455
    %v2457 = vsel %vm35, %v2426, 0.0
    %v2458 = vadd.f32 %v2456, %v2457
    %v2459 = vrot.slane %v2458, 4
    %v2460 = vadd.f32 %v2458, %v2459
    %v2461 = vrot.slane %v2460, 2
    %v2462 = vadd.f32 %v2460, %v2461
    %v2463 = vrot.slane %v2462, 1
    %v2464 = vadd.f32 %v2462, %v2463
    %v2465 = vmul.f32 %v2451, %v62
    %v2466 = vmul.f32 %v2464, %v62
    %v2467 = vsub.f32 %v2377, %v2465
    %v2468 = vsub.f32 %v2384, %v2465
    %v2469 = vsub.f32 %v2391, %v2465
    %v2470 = vsub.f32 %v2398, %v2465
    %v2471 = vsub.f32 %v2405, %v2466
    %v2472 = vsub.f32 %v2412, %v2466
    %v2473 = vsub.f32 %v2419, %v2466
    %v2474 = vsub.f32 %v2426, %v2466
    %v2475 = vmul.f32 %v2467, %v2467
    %v2476 = vmul.f32 %v2468, %v2468
    %v2477 = vmul.f32 %v2469, %v2469
    %v2478 = vmul.f32 %v2470, %v2470
    %v2479 = vmul.f32 %v2471, %v2471
    %v2480 = vmul.f32 %v2472, %v2472
    %v2481 = vmul.f32 %v2473, %v2473
    %v2482 = vmul.f32 %v2474, %v2474
    %v2483 = vsel %vm35, %v2475, 0.0
    %v2484 = vsel %vm35, %v2476, 0.0
    %v2485 = vadd.f32 %v2483, %v2484
    %v2486 = vsel %vm35, %v2477, 0.0
    %v2487 = vadd.f32 %v2485, %v2486
    %v2488 = vsel %vm35, %v2478, 0.0
    %v2489 = vadd.f32 %v2487, %v2488
    %v2490 = vrot.slane %v2489, 4
    %v2491 = vadd.f32 %v2489, %v2490
    %v2492 = vrot.slane %v2491, 2
    %v2493 = vadd.f32 %v2491, %v2492
    %v2494 = vrot.slane %v2493, 1
    %v2495 = vadd.f32 %v2493, %v2494
    %v2496 = vsel %vm35, %v2479, 0.0
    %v2497 = vsel %vm35, %v2480, 0.0
    %v2498 = vadd.f32 %v2496, %v2497
    %v2499 = vsel %vm35, %v2481, 0.0
    %v2500 = vadd.f32 %v2498, %v2499
    %v2501 = vsel %vm35, %v2482, 0.0
    %v2502 = vadd.f32 %v2500, %v2501
    %v2503 = vrot.slane %v2502, 4
    %v2504 = vadd.f32 %v2502, %v2503
    %v2505 = vrot.slane %v2504, 2
    %v2506 = vadd.f32 %v2504, %v2505
    %v2507 = vrot.slane %v2506, 1
    %v2508 = vadd.f32 %v2506, %v2507
    %v2509 = vmul.f32 %v2495, %v62
    %v2510 = vmul.f32 %v2508, %v62
    %v2511 = vadd.f32 %v2509, 1e-05
    %v2512 = vadd.f32 %v2510, 1e-05
    %v2513 = vrsqrt.pop %v2511
    %v2514 = vrsqrt.pop %v2512
    %v2515 = vmul.f32 %v2467, %v2513
    %v2516 = vmul.f32 %v2468, %v2513
    %v2517 = vmul.f32 %v2469, %v2513
    %v2518 = vmul.f32 %v2470, %v2513
    %v2519 = vmul.f32 %v2471, %v2514
    %v2520 = vmul.f32 %v2472, %v2514
    %v2521 = vmul.f32 %v2473, %v2514
    %v2522 = vmul.f32 %v2474, %v2514
    %2524 = vset.pattern.permute.xlu0 0
    %2525 = vperm.xlu0 %2524, %v2430
    %v2526 = vpop.permute.xlu0 %2525
    %2529 = vset.pattern.permute.xlu0 0
    %2530 = vperm.xlu0 %2529, %v2431
    %v2531 = vpop.permute.xlu0 %2530
    %2534 = vset.pattern.permute.xlu0 0
    %2535 = vperm.xlu0 %2534, %v2432
    %v2536 = vpop.permute.xlu0 %2535
    %2539 = vset.pattern.permute.xlu0 0
    %2540 = vperm.xlu0 %2539, %v2433
    %v2541 = vpop.permute.xlu0 %2540
    %v2543 = vmul.f32 %v2515, %v2526
    %v2544 = vmul.f32 %v2516, %v2531
    %v2545 = vmul.f32 %v2517, %v2536
    %v2546 = vmul.f32 %v2518, %v2541
    %v2547 = vmul.f32 %v2519, %v2526
    %v2548 = vmul.f32 %v2520, %v2531
    %v2549 = vmul.f32 %v2521, %v2536
    %v2550 = vmul.f32 %v2522, %v2541
    %2552 = vset.pattern.permute.xlu0 0
    %2553 = vperm.xlu0 %2552, %v2435
    %v2554 = vpop.permute.xlu0 %2553
    %2557 = vset.pattern.permute.xlu0 0
    %2558 = vperm.xlu0 %2557, %v2436
    %v2559 = vpop.permute.xlu0 %2558
    %2562 = vset.pattern.permute.xlu0 0
    %2563 = vperm.xlu0 %2562, %v2437
    %v2564 = vpop.permute.xlu0 %2563
    %2567 = vset.pattern.permute.xlu0 0
    %2568 = vperm.xlu0 %2567, %v2438
    %v2569 = vpop.permute.xlu0 %2568
    %v2571 = vadd.f32 %v2543, %v2554
    %v2572 = vadd.f32 %v2544, %v2559
    %v2573 = vadd.f32 %v2545, %v2564
    %v2574 = vadd.f32 %v2546, %v2569
    %v2575 = vadd.f32 %v2547, %v2554
    %v2576 = vadd.f32 %v2548, %v2559
    %v2577 = vadd.f32 %v2549, %v2564
    %v2578 = vadd.f32 %v2550, %v2569
    %v2579 = vadd.f32 %v18, %v2571
    %v2580 = vadd.f32 %v19, %v2572
    %v2581 = vadd.f32 %v20, %v2573
    %v2582 = vadd.f32 %v21, %v2574
    %v2583 = vadd.f32 %v22, %v2575
    %v2584 = vadd.f32 %v23, %v2576
    %v2585 = vadd.f32 %v24, %v2577
    %v2586 = vadd.f32 %v25, %v2578
    %v2587 = vsel %vm35, %v2579, 0.0
    %v2588 = vsel %vm35, %v2580, 0.0
    %v2589 = vadd.f32 %v2587, %v2588
    %v2590 = vsel %vm35, %v2581, 0.0
    %v2591 = vadd.f32 %v2589, %v2590
    %v2592 = vsel %vm35, %v2582, 0.0
    %v2593 = vadd.f32 %v2591, %v2592
    %v2594 = vrot.slane %v2593, 4
    %v2595 = vadd.f32 %v2593, %v2594
    %v2596 = vrot.slane %v2595, 2
    %v2597 = vadd.f32 %v2595, %v2596
    %v2598 = vrot.slane %v2597, 1
    %v2599 = vadd.f32 %v2597, %v2598
    %v2600 = vsel %vm35, %v2583, 0.0
    %v2601 = vsel %vm35, %v2584, 0.0
    %v2602 = vadd.f32 %v2600, %v2601
    %v2603 = vsel %vm35, %v2585, 0.0
    %v2604 = vadd.f32 %v2602, %v2603
    %v2605 = vsel %vm35, %v2586, 0.0
    %v2606 = vadd.f32 %v2604, %v2605
    %v2607 = vrot.slane %v2606, 4
    %v2608 = vadd.f32 %v2606, %v2607
    %v2609 = vrot.slane %v2608, 2
    %v2610 = vadd.f32 %v2608, %v2609
    %v2611 = vrot.slane %v2610, 1
    %v2612 = vadd.f32 %v2610, %v2611
    %v2613 = vmul.f32 %v2599, %v62
    %v2614 = vmul.f32 %v2612, %v62
    %v2615 = vld [vmem:[%s3 + $0xc0] sm:$0xff]
    %v2616 = vld [vmem:[%s3 + $0xc8] sm:$0xff]
    %v2617 = vld [vmem:[%s3 + $0xd0] sm:$0xff]
    %v2618 = vld [vmem:[%s3 + $0xd8] sm:$0xff]
    %v2619 = vld [vmem:[%s3 + $0xe0] sm:$0xff]
    %v2620 = vld [vmem:[%s3 + $0xe8] sm:$0xff]
    %v2621 = vld [vmem:[%s3 + $0xf0] sm:$0xff]
    %v2622 = vld [vmem:[%s3 + $0xf8] sm:$0xff]
    %v2623 = vld [vmem:[%s3 + $0x100] sm:$0x1]
    %v2624 = vld [vmem:[%s3 + $0x108] sm:$0xff]
    %v2625 = vld [vmem:[%s3 + $0x110] sm:$0xff]
    %v2626 = vld [vmem:[%s3 + $0x118] sm:$0x1]
    %v2627 = vlaneseq
    %v2628 = vshrl.u32 %v2627, 7
    %v2629 = vsub.s32 0, %v2628
    %v2630 = vrot.slane %v2623, %v2629
    %vm2633 = vcmask 1041409
    %v2634 = vsel %vm2633, %v2614, %v2613
    %v2635 = vsel %vm35, %v2634, 0
    %2637 = vmatprep.subr.mxu0 0.0
    %v2638 = vand.u32 %v2615, 4294901760
    %2639 = vmatpush1.msra.mxu0 %v2638
    %2640 = vmatprep.subr.mxu0 0.0
    %v2641 = vand.u32 %v2616, 4294901760
    %2642 = vmatpush1.msra.mxu0 %v2641
    %2643 = vmatprep.subr.mxu0 0.0
    %v2644 = vand.u32 %v2617, 4294901760
    %2645 = vmatpush1.msra.mxu0 %v2644
    %2646 = vmatprep.subr.mxu0 0.0
    %v2647 = vand.u32 %v2618, 4294901760
    %2648 = vmatpush1.msra.mxu0 %v2647
    %2649 = vmatprep.subr.mxu0 0.0
    %v2650 = vand.u32 %v2619, 4294901760
    %2651 = vmatpush1.msra.mxu0 %v2650
    %2652 = vmatprep.subr.mxu0 0.0
    %v2653 = vand.u32 %v2620, 4294901760
    %2654 = vmatpush1.msra.mxu0 %v2653
    %2655 = vmatprep.subr.mxu0 0.0
    %v2656 = vand.u32 %v2621, 4294901760
    %2657 = vmatpush1.msra.mxu0 %v2656
    %2658 = vmatprep.subr.mxu0 0.0
    %v2659 = vand.u32 %v2622, 4294901760
    %2660 = vmatpush1.msra.mxu0 %v2659
    %2661 = vmatprep.subr.mxu0 0.0
    %2662 = vmatpush1.msra.mxu0 0.0
    %2663 = vmatprep.subr.mxu0 0.0
    %2664 = vmatpush1.msra.mxu0 0.0
    %2665 = vmatprep.subr.mxu0 0.0
    %2666 = vmatpush1.msra.mxu0 0.0
    %2667 = vmatprep.subr.mxu0 0.0
    %2668 = vmatpush1.msra.mxu0 0.0
    %2669 = vmatprep.subr.mxu0 0.0
    %2670 = vmatpush1.msra.mxu0 0.0
    %2671 = vmatprep.subr.mxu0 0.0
    %2672 = vmatpush1.msra.mxu0 0.0
    %2673 = vmatprep.subr.mxu0 0.0
    %2674 = vmatpush1.msra.mxu0 0.0
    %2675 = vmatprep.subr.mxu0 0.0
    %2676 = vmatpush1.msra.mxu0 0.0
    %2677 = vmatprep.subr.mxu0 0.0
    %2678 = vmatpush1.msra.mxu0 0.0
    %2679 = vmatprep.subr.mxu0 0.0
    %2680 = vmatpush1.msra.mxu0 0.0
    %2681 = vmatprep.subr.mxu0 0.0
    %2682 = vmatpush1.msra.mxu0 0.0
    %2683 = vmatprep.subr.mxu0 0.0
    %2684 = vmatpush1.msra.mxu0 0.0
    %2685 = vmatprep.subr.mxu0 0.0
    %2686 = vmatpush1.msra.mxu0 0.0
    %2687 = vmatprep.subr.mxu0 0.0
    %2688 = vmatpush1.msra.mxu0 0.0
    %2689 = vmatprep.subr.mxu0 0.0
    %2690 = vmatpush1.msra.mxu0 0.0
    %2691 = vmatprep.subr.mxu0 0.0
    %2692 = vmatpush1.msra.mxu0 0.0
    %2693 = vmatprep.subr.mxu0 0.0
    %2694 = vmatpush1.msra.mxu0 0.0
    %2695 = vmatprep.subr.mxu0 0.0
    %2696 = vmatpush1.msra.mxu0 0.0
    %2697 = vmatprep.subr.mxu0 0.0
    %2698 = vmatpush1.msra.mxu0 0.0
    %2699 = vmatprep.subr.mxu0 0.0
    %2700 = vmatpush1.msra.mxu0 0.0
    %2701 = vmatprep.subr.mxu0 0.0
    %2702 = vmatpush1.msra.mxu0 0.0
    %2703 = vmatprep.subr.mxu0 0.0
    %2704 = vmatpush1.msra.mxu0 0.0
    %2705 = vmatprep.subr.mxu0 0.0
    %2706 = vmatpush1.msra.mxu0 0.0
    %2707 = vmatprep.subr.mxu0 0.0
    %2708 = vmatpush1.msra.mxu0 0.0
    %2709 = vmatprep.mubr.f32.mxu0 0.0
    %v2710 = vand.u32 %v2635, 4294901760
    %v2711 = vsub.f32 %v2635, %v2710
    %v2712 = vand.u32 %v2711, 4294901760
    %v2713 = vsub.f32 %v2711, %v2712
    %v2714 = vand.u32 %v2713, 4294901760
    %2715 = vmatmul.mubr.f32.gmra.mrb[0].mxu0 %v2714
    %v2716 = vpop.f32.mrb[0].mxu0
    %v2717 = vadd.f32 %v2630, %v2716
    %v2718 = vpop.f32.mrb[0].mxu0
    %2719 = vdwg.mxu0
    %2720 = vmatprep.subr.mxu0 0.0
    %v2721 = vand.u32 %v2615, 4294901760
    %v2722 = vsub.f32 %v2615, %v2721
    %v2723 = vand.u32 %v2722, 4294901760
    %v2724 = vsub.f32 %v2722, %v2723
    %v2725 = vand.u32 %v2724, 4294901760
    %2726 = vmatpush1.msra.mxu0 %v2725
    %2727 = vmatprep.subr.mxu0 0.0
    %v2728 = vand.u32 %v2616, 4294901760
    %v2729 = vsub.f32 %v2616, %v2728
    %v2730 = vand.u32 %v2729, 4294901760
    %v2731 = vsub.f32 %v2729, %v2730
    %v2732 = vand.u32 %v2731, 4294901760
    %2733 = vmatpush1.msra.mxu0 %v2732
    %2734 = vmatprep.subr.mxu0 0.0
    %v2735 = vand.u32 %v2617, 4294901760
    %v2736 = vsub.f32 %v2617, %v2735
    %v2737 = vand.u32 %v2736, 4294901760
    %v2738 = vsub.f32 %v2736, %v2737
    %v2739 = vand.u32 %v2738, 4294901760
    %2740 = vmatpush1.msra.mxu0 %v2739
    %2741 = vmatprep.subr.mxu0 0.0
    %v2742 = vand.u32 %v2618, 4294901760
    %v2743 = vsub.f32 %v2618, %v2742
    %v2744 = vand.u32 %v2743, 4294901760
    %v2745 = vsub.f32 %v2743, %v2744
    %v2746 = vand.u32 %v2745, 4294901760
    %2747 = vmatpush1.msra.mxu0 %v2746
    %2748 = vmatprep.subr.mxu0 0.0
    %v2749 = vand.u32 %v2619, 4294901760
    %v2750 = vsub.f32 %v2619, %v2749
    %v2751 = vand.u32 %v2750, 4294901760
    %v2752 = vsub.f32 %v2750, %v2751
    %v2753 = vand.u32 %v2752, 4294901760
    %2754 = vmatpush1.msra.mxu0 %v2753
    %2755 = vmatprep.subr.mxu0 0.0
    %v2756 = vand.u32 %v2620, 4294901760
    %v2757 = vsub.f32 %v2620, %v2756
    %v2758 = vand.u32 %v2757, 4294901760
    %v2759 = vsub.f32 %v2757, %v2758
    %v2760 = vand.u32 %v2759, 4294901760
    %2761 = vmatpush1.msra.mxu0 %v2760
    %2762 = vmatprep.subr.mxu0 0.0
    %v2763 = vand.u32 %v2621, 4294901760
    %v2764 = vsub.f32 %v2621, %v2763
    %v2765 = vand.u32 %v2764, 4294901760
    %v2766 = vsub.f32 %v2764, %v2765
    %v2767 = vand.u32 %v2766, 4294901760
    %2768 = vmatpush1.msra.mxu0 %v2767
    %2769 = vmatprep.subr.mxu0 0.0
    %v2770 = vand.u32 %v2622, 4294901760
    %v2771 = vsub.f32 %v2622, %v2770
    %v2772 = vand.u32 %v2771, 4294901760
    %v2773 = vsub.f32 %v2771, %v2772
    %v2774 = vand.u32 %v2773, 4294901760
    %2775 = vmatpush1.msra.mxu0 %v2774
    %2776 = vmatprep.subr.mxu0 0.0
    %2777 = vmatpush1.msra.mxu0 0.0
    %2778 = vmatprep.subr.mxu0 0.0
    %2779 = vmatpush1.msra.mxu0 0.0
    %2780 = vmatprep.subr.mxu0 0.0
    %2781 = vmatpush1.msra.mxu0 0.0
    %2782 = vmatprep.subr.mxu0 0.0
    %2783 = vmatpush1.msra.mxu0 0.0
    %2784 = vmatprep.subr.mxu0 0.0
    %2785 = vmatpush1.msra.mxu0 0.0
    %2786 = vmatprep.subr.mxu0 0.0
    %2787 = vmatpush1.msra.mxu0 0.0
    %2788 = vmatprep.subr.mxu0 0.0
    %2789 = vmatpush1.msra.mxu0 0.0
    %2790 = vmatprep.subr.mxu0 0.0
    %2791 = vmatpush1.msra.mxu0 0.0
    %2792 = vmatprep.subr.mxu0 0.0
    %2793 = vmatpush1.msra.mxu0 0.0
    %2794 = vmatprep.subr.mxu0 0.0
    %2795 = vmatpush1.msra.mxu0 0.0
    %2796 = vmatprep.subr.mxu0 0.0
    %2797 = vmatpush1.msra.mxu0 0.0
    %2798 = vmatprep.subr.mxu0 0.0
    %2799 = vmatpush1.msra.mxu0 0.0
    %2800 = vmatprep.subr.mxu0 0.0
    %2801 = vmatpush1.msra.mxu0 0.0
    %2802 = vmatprep.subr.mxu0 0.0
    %2803 = vmatpush1.msra.mxu0 0.0
    %2804 = vmatprep.subr.mxu0 0.0
    %2805 = vmatpush1.msra.mxu0 0.0
    %2806 = vmatprep.subr.mxu0 0.0
    %2807 = vmatpush1.msra.mxu0 0.0
    %2808 = vmatprep.subr.mxu0 0.0
    %2809 = vmatpush1.msra.mxu0 0.0
    %2810 = vmatprep.subr.mxu0 0.0
    %2811 = vmatpush1.msra.mxu0 0.0
    %2812 = vmatprep.subr.mxu0 0.0
    %2813 = vmatpush1.msra.mxu0 0.0
    %2814 = vmatprep.subr.mxu0 0.0
    %2815 = vmatpush1.msra.mxu0 0.0
    %2816 = vmatprep.subr.mxu0 0.0
    %2817 = vmatpush1.msra.mxu0 0.0
    %2818 = vmatprep.subr.mxu0 0.0
    %2819 = vmatpush1.msra.mxu0 0.0
    %2820 = vmatprep.subr.mxu0 0.0
    %2821 = vmatpush1.msra.mxu0 0.0
    %2822 = vmatprep.subr.mxu0 0.0
    %2823 = vmatpush1.msra.mxu0 0.0
    %2824 = vmatprep.mubr.f32.mxu0 0.0
    %v2825 = vand.u32 %v2635, 4294901760
    %2826 = vmatmul.mubr.f32.gmra.mrb[0].mxu0 %v2825
    %v2827 = vpop.f32.mrb[0].mxu0
    %v2828 = vadd.f32 %v2717, %v2827
    %v2829 = vpop.f32.mrb[0].mxu0
    %2830 = vdwg.mxu0
    %2831 = vmatprep.subr.mxu0 0.0
    %v2832 = vand.u32 %v2615, 4294901760
    %v2833 = vsub.f32 %v2615, %v2832
    %2834 = vmatpush1.msra.mxu0 %v2833
    %2835 = vmatprep.subr.mxu0 0.0
    %v2836 = vand.u32 %v2616, 4294901760
    %v2837 = vsub.f32 %v2616, %v2836
    %2838 = vmatpush1.msra.mxu0 %v2837
    %2839 = vmatprep.subr.mxu0 0.0
    %v2840 = vand.u32 %v2617, 4294901760
    %v2841 = vsub.f32 %v2617, %v2840
    %2842 = vmatpush1.msra.mxu0 %v2841
    %2843 = vmatprep.subr.mxu0 0.0
    %v2844 = vand.u32 %v2618, 4294901760
    %v2845 = vsub.f32 %v2618, %v2844
    %2846 = vmatpush1.msra.mxu0 %v2845
    %2847 = vmatprep.subr.mxu0 0.0
    %v2848 = vand.u32 %v2619, 4294901760
    %v2849 = vsub.f32 %v2619, %v2848
    %2850 = vmatpush1.msra.mxu0 %v2849
    %2851 = vmatprep.subr.mxu0 0.0
    %v2852 = vand.u32 %v2620, 4294901760
    %v2853 = vsub.f32 %v2620, %v2852
    %2854 = vmatpush1.msra.mxu0 %v2853
    %2855 = vmatprep.subr.mxu0 0.0
    %v2856 = vand.u32 %v2621, 4294901760
    %v2857 = vsub.f32 %v2621, %v2856
    %2858 = vmatpush1.msra.mxu0 %v2857
    %2859 = vmatprep.subr.mxu0 0.0
    %v2860 = vand.u32 %v2622, 4294901760
    %v2861 = vsub.f32 %v2622, %v2860
    %2862 = vmatpush1.msra.mxu0 %v2861
    %2863 = vmatprep.subr.mxu0 0.0
    %2864 = vmatpush1.msra.mxu0 0.0
    %2865 = vmatprep.subr.mxu0 0.0
    %2866 = vmatpush1.msra.mxu0 0.0
    %2867 = vmatprep.subr.mxu0 0.0
    %2868 = vmatpush1.msra.mxu0 0.0
    %2869 = vmatprep.subr.mxu0 0.0
    %2870 = vmatpush1.msra.mxu0 0.0
    %2871 = vmatprep.subr.mxu0 0.0
    %2872 = vmatpush1.msra.mxu0 0.0
    %2873 = vmatprep.subr.mxu0 0.0
    %2874 = vmatpush1.msra.mxu0 0.0
    %2875 = vmatprep.subr.mxu0 0.0
    %2876 = vmatpush1.msra.mxu0 0.0
    %2877 = vmatprep.subr.mxu0 0.0
    %2878 = vmatpush1.msra.mxu0 0.0
    %2879 = vmatprep.subr.mxu0 0.0
    %2880 = vmatpush1.msra.mxu0 0.0
    %2881 = vmatprep.subr.mxu0 0.0
    %2882 = vmatpush1.msra.mxu0 0.0
    %2883 = vmatprep.subr.mxu0 0.0
    %2884 = vmatpush1.msra.mxu0 0.0
    %2885 = vmatprep.subr.mxu0 0.0
    %2886 = vmatpush1.msra.mxu0 0.0
    %2887 = vmatprep.subr.mxu0 0.0
    %2888 = vmatpush1.msra.mxu0 0.0
    %2889 = vmatprep.subr.mxu0 0.0
    %2890 = vmatpush1.msra.mxu0 0.0
    %2891 = vmatprep.subr.mxu0 0.0
    %2892 = vmatpush1.msra.mxu0 0.0
    %2893 = vmatprep.subr.mxu0 0.0
    %2894 = vmatpush1.msra.mxu0 0.0
    %2895 = vmatprep.subr.mxu0 0.0
    %2896 = vmatpush1.msra.mxu0 0.0
    %2897 = vmatprep.subr.mxu0 0.0
    %2898 = vmatpush1.msra.mxu0 0.0
    %2899 = vmatprep.subr.mxu0 0.0
    %2900 = vmatpush1.msra.mxu0 0.0
    %2901 = vmatprep.subr.mxu0 0.0
    %2902 = vmatpush1.msra.mxu0 0.0
    %2903 = vmatprep.subr.mxu0 0.0
    %2904 = vmatpush1.msra.mxu0 0.0
    %2905 = vmatprep.subr.mxu0 0.0
    %2906 = vmatpush1.msra.mxu0 0.0
    %2907 = vmatprep.subr.mxu0 0.0
    %2908 = vmatpush1.msra.mxu0 0.0
    %2909 = vmatprep.subr.mxu0 0.0
    %2910 = vmatpush1.msra.mxu0 0.0
    %2911 = vmatprep.mubr.f32.mxu0 0.0
    %v2912 = vand.u32 %v2635, 4294901760
    %v2913 = vsub.f32 %v2635, %v2912
    %2914 = vmatmul.mubr.f32.gmra.mrb[0].mxu0 %v2913
    %v2915 = vpop.f32.mrb[0].mxu0
    %v2916 = vadd.f32 %v2828, %v2915
    %v2917 = vpop.f32.mrb[0].mxu0
    %2918 = vdwg.mxu0
    %2919 = vmatprep.subr.mxu0 0.0
    %v2920 = vand.u32 %v2615, 4294901760
    %2921 = vmatpush1.msra.mxu0 %v2920
    %2922 = vmatprep.subr.mxu0 0.0
    %v2923 = vand.u32 %v2616, 4294901760
    %2924 = vmatpush1.msra.mxu0 %v2923
    %2925 = vmatprep.subr.mxu0 0.0
    %v2926 = vand.u32 %v2617, 4294901760
    %2927 = vmatpush1.msra.mxu0 %v2926
    %2928 = vmatprep.subr.mxu0 0.0
    %v2929 = vand.u32 %v2618, 4294901760
    %2930 = vmatpush1.msra.mxu0 %v2929
    %2931 = vmatprep.subr.mxu0 0.0
    %v2932 = vand.u32 %v2619, 4294901760
    %2933 = vmatpush1.msra.mxu0 %v2932
    %2934 = vmatprep.subr.mxu0 0.0
    %v2935 = vand.u32 %v2620, 4294901760
    %2936 = vmatpush1.msra.mxu0 %v2935
    %2937 = vmatprep.subr.mxu0 0.0
    %v2938 = vand.u32 %v2621, 4294901760
    %2939 = vmatpush1.msra.mxu0 %v2938
    %2940 = vmatprep.subr.mxu0 0.0
    %v2941 = vand.u32 %v2622, 4294901760
    %2942 = vmatpush1.msra.mxu0 %v2941
    %2943 = vmatprep.subr.mxu0 0.0
    %2944 = vmatpush1.msra.mxu0 0.0
    %2945 = vmatprep.subr.mxu0 0.0
    %2946 = vmatpush1.msra.mxu0 0.0
    %2947 = vmatprep.subr.mxu0 0.0
    %2948 = vmatpush1.msra.mxu0 0.0
    %2949 = vmatprep.subr.mxu0 0.0
    %2950 = vmatpush1.msra.mxu0 0.0
    %2951 = vmatprep.subr.mxu0 0.0
    %2952 = vmatpush1.msra.mxu0 0.0
    %2953 = vmatprep.subr.mxu0 0.0
    %2954 = vmatpush1.msra.mxu0 0.0
    %2955 = vmatprep.subr.mxu0 0.0
    %2956 = vmatpush1.msra.mxu0 0.0
    %2957 = vmatprep.subr.mxu0 0.0
    %2958 = vmatpush1.msra.mxu0 0.0
    %2959 = vmatprep.subr.mxu0 0.0
    %2960 = vmatpush1.msra.mxu0 0.0
    %2961 = vmatprep.subr.mxu0 0.0
    %2962 = vmatpush1.msra.mxu0 0.0
    %2963 = vmatprep.subr.mxu0 0.0
    %2964 = vmatpush1.msra.mxu0 0.0
    %2965 = vmatprep.subr.mxu0 0.0
    %2966 = vmatpush1.msra.mxu0 0.0
    %2967 = vmatprep.subr.mxu0 0.0
    %2968 = vmatpush1.msra.mxu0 0.0
    %2969 = vmatprep.subr.mxu0 0.0
    %2970 = vmatpush1.msra.mxu0 0.0
    %2971 = vmatprep.subr.mxu0 0.0
    %2972 = vmatpush1.msra.mxu0 0.0
    %2973 = vmatprep.subr.mxu0 0.0
    %2974 = vmatpush1.msra.mxu0 0.0
    %2975 = vmatprep.subr.mxu0 0.0
    %2976 = vmatpush1.msra.mxu0 0.0
    %2977 = vmatprep.subr.mxu0 0.0
    %2978 = vmatpush1.msra.mxu0 0.0
    %2979 = vmatprep.subr.mxu0 0.0
    %2980 = vmatpush1.msra.mxu0 0.0
    %2981 = vmatprep.subr.mxu0 0.0
    %2982 = vmatpush1.msra.mxu0 0.0
    %2983 = vmatprep.subr.mxu0 0.0
    %2984 = vmatpush1.msra.mxu0 0.0
    %2985 = vmatprep.subr.mxu0 0.0
    %2986 = vmatpush1.msra.mxu0 0.0
    %2987 = vmatprep.subr.mxu0 0.0
    %2988 = vmatpush1.msra.mxu0 0.0
    %2989 = vmatprep.subr.mxu0 0.0
    %2990 = vmatpush1.msra.mxu0 0.0
    %2991 = vmatprep.mubr.f32.mxu0 0.0
    %v2992 = vand.u32 %v2635, 4294901760
    %v2993 = vsub.f32 %v2635, %v2992
    %v2994 = vand.u32 %v2993, 4294901760
    %2995 = vmatmul.mubr.f32.gmra.mrb[0].mxu0 %v2994
    %v2996 = vpop.f32.mrb[0].mxu0
    %v2997 = vadd.f32 %v2916, %v2996
    %v2998 = vpop.f32.mrb[0].mxu0
    %2999 = vdwg.mxu0
    %3000 = vmatprep.subr.mxu0 0.0
    %v3001 = vand.u32 %v2615, 4294901760
    %v3002 = vsub.f32 %v2615, %v3001
    %v3003 = vand.u32 %v3002, 4294901760
    %3004 = vmatpush1.msra.mxu0 %v3003
    %3005 = vmatprep.subr.mxu0 0.0
    %v3006 = vand.u32 %v2616, 4294901760
    %v3007 = vsub.f32 %v2616, %v3006
    %v3008 = vand.u32 %v3007, 4294901760
    %3009 = vmatpush1.msra.mxu0 %v3008
    %3010 = vmatprep.subr.mxu0 0.0
    %v3011 = vand.u32 %v2617, 4294901760
    %v3012 = vsub.f32 %v2617, %v3011
    %v3013 = vand.u32 %v3012, 4294901760
    %3014 = vmatpush1.msra.mxu0 %v3013
    %3015 = vmatprep.subr.mxu0 0.0
    %v3016 = vand.u32 %v2618, 4294901760
    %v3017 = vsub.f32 %v2618, %v3016
    %v3018 = vand.u32 %v3017, 4294901760
    %3019 = vmatpush1.msra.mxu0 %v3018
    %3020 = vmatprep.subr.mxu0 0.0
    %v3021 = vand.u32 %v2619, 4294901760
    %v3022 = vsub.f32 %v2619, %v3021
    %v3023 = vand.u32 %v3022, 4294901760
    %3024 = vmatpush1.msra.mxu0 %v3023
    %3025 = vmatprep.subr.mxu0 0.0
    %v3026 = vand.u32 %v2620, 4294901760
    %v3027 = vsub.f32 %v2620, %v3026
    %v3028 = vand.u32 %v3027, 4294901760
    %3029 = vmatpush1.msra.mxu0 %v3028
    %3030 = vmatprep.subr.mxu0 0.0
    %v3031 = vand.u32 %v2621, 4294901760
    %v3032 = vsub.f32 %v2621, %v3031
    %v3033 = vand.u32 %v3032, 4294901760
    %3034 = vmatpush1.msra.mxu0 %v3033
    %3035 = vmatprep.subr.mxu0 0.0
    %v3036 = vand.u32 %v2622, 4294901760
    %v3037 = vsub.f32 %v2622, %v3036
    %v3038 = vand.u32 %v3037, 4294901760
    %3039 = vmatpush1.msra.mxu0 %v3038
    %3040 = vmatprep.subr.mxu0 0.0
    %3041 = vmatpush1.msra.mxu0 0.0
    %3042 = vmatprep.subr.mxu0 0.0
    %3043 = vmatpush1.msra.mxu0 0.0
    %3044 = vmatprep.subr.mxu0 0.0
    %3045 = vmatpush1.msra.mxu0 0.0
    %3046 = vmatprep.subr.mxu0 0.0
    %3047 = vmatpush1.msra.mxu0 0.0
    %3048 = vmatprep.subr.mxu0 0.0
    %3049 = vmatpush1.msra.mxu0 0.0
    %3050 = vmatprep.subr.mxu0 0.0
    %3051 = vmatpush1.msra.mxu0 0.0
    %3052 = vmatprep.subr.mxu0 0.0
    %3053 = vmatpush1.msra.mxu0 0.0
    %3054 = vmatprep.subr.mxu0 0.0
    %3055 = vmatpush1.msra.mxu0 0.0
    %3056 = vmatprep.subr.mxu0 0.0
    %3057 = vmatpush1.msra.mxu0 0.0
    %3058 = vmatprep.subr.mxu0 0.0
    %3059 = vmatpush1.msra.mxu0 0.0
    %3060 = vmatprep.subr.mxu0 0.0
    %3061 = vmatpush1.msra.mxu0 0.0
    %3062 = vmatprep.subr.mxu0 0.0
    %3063 = vmatpush1.msra.mxu0 0.0
    %3064 = vmatprep.subr.mxu0 0.0
    %3065 = vmatpush1.msra.mxu0 0.0
    %3066 = vmatprep.subr.mxu0 0.0
    %3067 = vmatpush1.msra.mxu0 0.0
    %3068 = vmatprep.subr.mxu0 0.0
    %3069 = vmatpush1.msra.mxu0 0.0
    %3070 = vmatprep.subr.mxu0 0.0
    %3071 = vmatpush1.msra.mxu0 0.0
    %3072 = vmatprep.subr.mxu0 0.0
    %3073 = vmatpush1.msra.mxu0 0.0
    %3074 = vmatprep.subr.mxu0 0.0
    %3075 = vmatpush1.msra.mxu0 0.0
    %3076 = vmatprep.subr.mxu0 0.0
    %3077 = vmatpush1.msra.mxu0 0.0
    %3078 = vmatprep.subr.mxu0 0.0
    %3079 = vmatpush1.msra.mxu0 0.0
    %3080 = vmatprep.subr.mxu0 0.0
    %3081 = vmatpush1.msra.mxu0 0.0
    %3082 = vmatprep.subr.mxu0 0.0
    %3083 = vmatpush1.msra.mxu0 0.0
    %3084 = vmatprep.subr.mxu0 0.0
    %3085 = vmatpush1.msra.mxu0 0.0
    %3086 = vmatprep.subr.mxu0 0.0
    %3087 = vmatpush1.msra.mxu0 0.0
    %3088 = vmatprep.mubr.f32.mxu0 0.0
    %v3089 = vand.u32 %v2635, 4294901760
    %3090 = vmatmul.mubr.f32.gmra.mrb[0].mxu0 %v3089
    %v3091 = vpop.f32.mrb[0].mxu0
    %v3092 = vadd.f32 %v2997, %v3091
    %v3093 = vpop.f32.mrb[0].mxu0
    %3094 = vdwg.mxu0
    %3095 = vmatprep.subr.mxu0 0.0
    %v3096 = vand.u32 %v2615, 4294901760
    %3097 = vmatpush1.msra.mxu0 %v3096
    %3098 = vmatprep.subr.mxu0 0.0
    %v3099 = vand.u32 %v2616, 4294901760
    %3100 = vmatpush1.msra.mxu0 %v3099
    %3101 = vmatprep.subr.mxu0 0.0
    %v3102 = vand.u32 %v2617, 4294901760
    %3103 = vmatpush1.msra.mxu0 %v3102
    %3104 = vmatprep.subr.mxu0 0.0
    %v3105 = vand.u32 %v2618, 4294901760
    %3106 = vmatpush1.msra.mxu0 %v3105
    %3107 = vmatprep.subr.mxu0 0.0
    %v3108 = vand.u32 %v2619, 4294901760
    %3109 = vmatpush1.msra.mxu0 %v3108
    %3110 = vmatprep.subr.mxu0 0.0
    %v3111 = vand.u32 %v2620, 4294901760
    %3112 = vmatpush1.msra.mxu0 %v3111
    %3113 = vmatprep.subr.mxu0 0.0
    %v3114 = vand.u32 %v2621, 4294901760
    %3115 = vmatpush1.msra.mxu0 %v3114
    %3116 = vmatprep.subr.mxu0 0.0
    %v3117 = vand.u32 %v2622, 4294901760
    %3118 = vmatpush1.msra.mxu0 %v3117
    %3119 = vmatprep.subr.mxu0 0.0
    %3120 = vmatpush1.msra.mxu0 0.0
    %3121 = vmatprep.subr.mxu0 0.0
    %3122 = vmatpush1.msra.mxu0 0.0
    %3123 = vmatprep.subr.mxu0 0.0
    %3124 = vmatpush1.msra.mxu0 0.0
    %3125 = vmatprep.subr.mxu0 0.0
    %3126 = vmatpush1.msra.mxu0 0.0
    %3127 = vmatprep.subr.mxu0 0.0
    %3128 = vmatpush1.msra.mxu0 0.0
    %3129 = vmatprep.subr.mxu0 0.0
    %3130 = vmatpush1.msra.mxu0 0.0
    %3131 = vmatprep.subr.mxu0 0.0
    %3132 = vmatpush1.msra.mxu0 0.0
    %3133 = vmatprep.subr.mxu0 0.0
    %3134 = vmatpush1.msra.mxu0 0.0
    %3135 = vmatprep.subr.mxu0 0.0
    %3136 = vmatpush1.msra.mxu0 0.0
    %3137 = vmatprep.subr.mxu0 0.0
    %3138 = vmatpush1.msra.mxu0 0.0
    %3139 = vmatprep.subr.mxu0 0.0
    %3140 = vmatpush1.msra.mxu0 0.0
    %3141 = vmatprep.subr.mxu0 0.0
    %3142 = vmatpush1.msra.mxu0 0.0
    %3143 = vmatprep.subr.mxu0 0.0
    %3144 = vmatpush1.msra.mxu0 0.0
    %3145 = vmatprep.subr.mxu0 0.0
    %3146 = vmatpush1.msra.mxu0 0.0
    %3147 = vmatprep.subr.mxu0 0.0
    %3148 = vmatpush1.msra.mxu0 0.0
    %3149 = vmatprep.subr.mxu0 0.0
    %3150 = vmatpush1.msra.mxu0 0.0
    %3151 = vmatprep.subr.mxu0 0.0
    %3152 = vmatpush1.msra.mxu0 0.0
    %3153 = vmatprep.subr.mxu0 0.0
    %3154 = vmatpush1.msra.mxu0 0.0
    %3155 = vmatprep.subr.mxu0 0.0
    %3156 = vmatpush1.msra.mxu0 0.0
    %3157 = vmatprep.subr.mxu0 0.0
    %3158 = vmatpush1.msra.mxu0 0.0
    %3159 = vmatprep.subr.mxu0 0.0
    %3160 = vmatpush1.msra.mxu0 0.0
    %3161 = vmatprep.subr.mxu0 0.0
    %3162 = vmatpush1.msra.mxu0 0.0
    %3163 = vmatprep.subr.mxu0 0.0
    %3164 = vmatpush1.msra.mxu0 0.0
    %3165 = vmatprep.subr.mxu0 0.0
    %3166 = vmatpush1.msra.mxu0 0.0
    %3167 = vmatprep.mubr.f32.mxu0 0.0
    %v3168 = vand.u32 %v2635, 4294901760
    %3169 = vmatmul.mubr.f32.gmra.mrb[0].mxu0 %v3168
    %v3170 = vpop.f32.mrb[0].mxu0
    %v3171 = vadd.f32 %v3092, %v3170
    %v3172 = vpop.f32.mrb[0].mxu0
    %3173 = vdwg.mxu0
    %v3174 = vmul.f32 %v3171, 0.5
    %v3175 = vmul.f32 %v3171, 0.70710677
    %v3176 = vand.u32 2147483647, %v3175
    %v3177 = vmul.f32 %v3176, 0.3275911
    %v3178 = vadd.f32 %v3177, 1.0
    %v3179 = vrcp.pop %v3178
    %v3180 = vmul.f32 1.0, %v3179
    %v3181 = vmul.f32 %v3180, 1.0614054
    %v3182 = vadd.f32 %v3181, -1.4531521
    %v3183 = vmul.f32 %v3180, %v3182
    %v3184 = vadd.f32 %v3183, 1.4214138
    %v3185 = vmul.f32 %v3180, %v3184
    %v3186 = vadd.f32 %v3185, -0.28449672
    %v3187 = vmul.f32 %v3180, %v3186
    %v3188 = vadd.f32 %v3187, 0.2548296
    %v3189 = vmul.f32 %v3180, %v3188
    %v3190 = vsub.f32 0.0, %v3176
    %v3191 = vmul.f32 %v3190, %v3176
    %v3192 = vmul.f32 %v3191, 1.442695
    %v3193 = vpow.pop %v3192
    %v3194 = vmul.f32 %v3189, %v3193
    %v3195 = vsub.f32 1.0, %v3194
    %vm3196 = vcmp.ge.f32.partialorder %v3175, 0.0
    %v3197 = vsub.f32 0.0, %v3195
    %v3198 = vsel %vm3196, %v3195, %v3197
    %v3199 = vadd.f32 %v3198, 1.0
    %v3200 = vmul.f32 %v3174, %v3199
    %v3201 = vlaneseq
    %v3202 = vshrl.u32 %v3201, 7
    %v3203 = vsub.s32 0, %v3202
    %v3204 = vrot.slane %v2626, %v3203
    %vm3205 = vcmask 130048
    %v3207 = vsel %vm3205, %v3200, 0
    %3209 = vmatprep.subr.mxu0 0.0
    %v3210 = vand.u32 %v2624, 4294901760
    %3211 = vmatpush1.msra.mxu0 %v3210
    %3212 = vmatprep.subr.mxu0 0.0
    %v3213 = vand.u32 %v2625, 4294901760
    %3214 = vmatpush1.msra.mxu0 %v3213
    %3215 = vmatprep.subr.mxu0 0.0
    %3216 = vmatpush1.msra.mxu0 0.0
    %3217 = vmatprep.subr.mxu0 0.0
    %3218 = vmatpush1.msra.mxu0 0.0
    %3219 = vmatprep.subr.mxu0 0.0
    %3220 = vmatpush1.msra.mxu0 0.0
    %3221 = vmatprep.subr.mxu0 0.0
    %3222 = vmatpush1.msra.mxu0 0.0
    %3223 = vmatprep.subr.mxu0 0.0
    %3224 = vmatpush1.msra.mxu0 0.0
    %3225 = vmatprep.subr.mxu0 0.0
    %3226 = vmatpush1.msra.mxu0 0.0
    %3227 = vmatprep.subr.mxu0 0.0
    %3228 = vmatpush1.msra.mxu0 0.0
    %3229 = vmatprep.subr.mxu0 0.0
    %3230 = vmatpush1.msra.mxu0 0.0
    %3231 = vmatprep.subr.mxu0 0.0
    %3232 = vmatpush1.msra.mxu0 0.0
    %3233 = vmatprep.subr.mxu0 0.0
    %3234 = vmatpush1.msra.mxu0 0.0
    %3235 = vmatprep.subr.mxu0 0.0
    %3236 = vmatpush1.msra.mxu0 0.0
    %3237 = vmatprep.subr.mxu0 0.0
    %3238 = vmatpush1.msra.mxu0 0.0
    %3239 = vmatprep.subr.mxu0 0.0
    %3240 = vmatpush1.msra.mxu0 0.0
    %3241 = vmatprep.subr.mxu0 0.0
    %3242 = vmatpush1.msra.mxu0 0.0
    %3243 = vmatprep.subr.mxu0 0.0
    %3244 = vmatpush1.msra.mxu0 0.0
    %3245 = vmatprep.subr.mxu0 0.0
    %3246 = vmatpush1.msra.mxu0 0.0
    %3247 = vmatprep.subr.mxu0 0.0
    %3248 = vmatpush1.msra.mxu0 0.0
    %3249 = vmatprep.subr.mxu0 0.0
    %3250 = vmatpush1.msra.mxu0 0.0
    %3251 = vmatprep.subr.mxu0 0.0
    %3252 = vmatpush1.msra.mxu0 0.0
    %3253 = vmatprep.subr.mxu0 0.0
    %3254 = vmatpush1.msra.mxu0 0.0
    %3255 = vmatprep.subr.mxu0 0.0
    %3256 = vmatpush1.msra.mxu0 0.0
    %3257 = vmatprep.subr.mxu0 0.0
    %3258 = vmatpush1.msra.mxu0 0.0
    %3259 = vmatprep.subr.mxu0 0.0
    %3260 = vmatpush1.msra.mxu0 0.0
    %3261 = vmatprep.subr.mxu0 0.0
    %3262 = vmatpush1.msra.mxu0 0.0
    %3263 = vmatprep.subr.mxu0 0.0
    %3264 = vmatpush1.msra.mxu0 0.0
    %3265 = vmatprep.subr.mxu0 0.0
    %3266 = vmatpush1.msra.mxu0 0.0
    %3267 = vmatprep.subr.mxu0 0.0
    %3268 = vmatpush1.msra.mxu0 0.0
    %3269 = vmatprep.subr.mxu0 0.0
    %3270 = vmatpush1.msra.mxu0 0.0
    %3271 = vmatprep.subr.mxu0 0.0
    %3272 = vmatpush1.msra.mxu0 0.0
    %3273 = vmatprep.subr.mxu0 0.0
    %3274 = vmatpush1.msra.mxu0 0.0
    %3275 = vmatprep.mubr.f32.mxu0 0.0
    %v3276 = vand.u32 %v3207, 4294901760
    %v3277 = vsub.f32 %v3207, %v3276
    %v3278 = vand.u32 %v3277, 4294901760
    %v3279 = vsub.f32 %v3277, %v3278
    %v3280 = vand.u32 %v3279, 4294901760
    %3281 = vmatmul.mubr.f32.gmra.mrb[0].mxu0 %v3280
    %v3282 = vpop.f32.mrb[0].mxu0
    %v3283 = vadd.f32 %v3204, %v3282
    %v3284 = vpop.f32.mrb[0].mxu0
    %3285 = vdwg.mxu0
    %3286 = vmatprep.subr.mxu0 0.0
    %v3287 = vand.u32 %v2624, 4294901760
    %v3288 = vsub.f32 %v2624, %v3287
    %v3289 = vand.u32 %v3288, 4294901760
    %v3290 = vsub.f32 %v3288, %v3289
    %v3291 = vand.u32 %v3290, 4294901760
    %3292 = vmatpush1.msra.mxu0 %v3291
    %3293 = vmatprep.subr.mxu0 0.0
    %v3294 = vand.u32 %v2625, 4294901760
    %v3295 = vsub.f32 %v2625, %v3294
    %v3296 = vand.u32 %v3295, 4294901760
    %v3297 = vsub.f32 %v3295, %v3296
    %v3298 = vand.u32 %v3297, 4294901760
    %3299 = vmatpush1.msra.mxu0 %v3298
    %3300 = vmatprep.subr.mxu0 0.0
    %3301 = vmatpush1.msra.mxu0 0.0
    %3302 = vmatprep.subr.mxu0 0.0
    %3303 = vmatpush1.msra.mxu0 0.0
    %3304 = vmatprep.subr.mxu0 0.0
    %3305 = vmatpush1.msra.mxu0 0.0
    %3306 = vmatprep.subr.mxu0 0.0
    %3307 = vmatpush1.msra.mxu0 0.0
    %3308 = vmatprep.subr.mxu0 0.0
    %3309 = vmatpush1.msra.mxu0 0.0
    %3310 = vmatprep.subr.mxu0 0.0
    %3311 = vmatpush1.msra.mxu0 0.0
    %3312 = vmatprep.subr.mxu0 0.0
    %3313 = vmatpush1.msra.mxu0 0.0
    %3314 = vmatprep.subr.mxu0 0.0
    %3315 = vmatpush1.msra.mxu0 0.0
    %3316 = vmatprep.subr.mxu0 0.0
    %3317 = vmatpush1.msra.mxu0 0.0
    %3318 = vmatprep.subr.mxu0 0.0
    %3319 = vmatpush1.msra.mxu0 0.0
    %3320 = vmatprep.subr.mxu0 0.0
    %3321 = vmatpush1.msra.mxu0 0.0
    %3322 = vmatprep.subr.mxu0 0.0
    %3323 = vmatpush1.msra.mxu0 0.0
    %3324 = vmatprep.subr.mxu0 0.0
    %3325 = vmatpush1.msra.mxu0 0.0
    %3326 = vmatprep.subr.mxu0 0.0
    %3327 = vmatpush1.msra.mxu0 0.0
    %3328 = vmatprep.subr.mxu0 0.0
    %3329 = vmatpush1.msra.mxu0 0.0
    %3330 = vmatprep.subr.mxu0 0.0
    %3331 = vmatpush1.msra.mxu0 0.0
    %3332 = vmatprep.subr.mxu0 0.0
    %3333 = vmatpush1.msra.mxu0 0.0
    %3334 = vmatprep.subr.mxu0 0.0
    %3335 = vmatpush1.msra.mxu0 0.0
    %3336 = vmatprep.subr.mxu0 0.0
    %3337 = vmatpush1.msra.mxu0 0.0
    %3338 = vmatprep.subr.mxu0 0.0
    %3339 = vmatpush1.msra.mxu0 0.0
    %3340 = vmatprep.subr.mxu0 0.0
    %3341 = vmatpush1.msra.mxu0 0.0
    %3342 = vmatprep.subr.mxu0 0.0
    %3343 = vmatpush1.msra.mxu0 0.0
    %3344 = vmatprep.subr.mxu0 0.0
    %3345 = vmatpush1.msra.mxu0 0.0
    %3346 = vmatprep.subr.mxu0 0.0
    %3347 = vmatpush1.msra.mxu0 0.0
    %3348 = vmatprep.subr.mxu0 0.0
    %3349 = vmatpush1.msra.mxu0 0.0
    %3350 = vmatprep.subr.mxu0 0.0
    %3351 = vmatpush1.msra.mxu0 0.0
    %3352 = vmatprep.subr.mxu0 0.0
    %3353 = vmatpush1.msra.mxu0 0.0
    %3354 = vmatprep.subr.mxu0 0.0
    %3355 = vmatpush1.msra.mxu0 0.0
    %3356 = vmatprep.subr.mxu0 0.0
    %3357 = vmatpush1.msra.mxu0 0.0
    %3358 = vmatprep.subr.mxu0 0.0
    %3359 = vmatpush1.msra.mxu0 0.0
    %3360 = vmatprep.mubr.f32.mxu0 0.0
    %v3361 = vand.u32 %v3207, 4294901760
    %3362 = vmatmul.mubr.f32.gmra.mrb[0].mxu0 %v3361
    %v3363 = vpop.f32.mrb[0].mxu0
    %v3364 = vadd.f32 %v3283, %v3363
    %v3365 = vpop.f32.mrb[0].mxu0
    %3366 = vdwg.mxu0
    %3367 = vmatprep.subr.mxu0 0.0
    %v3368 = vand.u32 %v2624, 4294901760
    %v3369 = vsub.f32 %v2624, %v3368
    %3370 = vmatpush1.msra.mxu0 %v3369
    %3371 = vmatprep.subr.mxu0 0.0
    %v3372 = vand.u32 %v2625, 4294901760
    %v3373 = vsub.f32 %v2625, %v3372
    %3374 = vmatpush1.msra.mxu0 %v3373
    %3375 = vmatprep.subr.mxu0 0.0
    %3376 = vmatpush1.msra.mxu0 0.0
    %3377 = vmatprep.subr.mxu0 0.0
    %3378 = vmatpush1.msra.mxu0 0.0
    %3379 = vmatprep.subr.mxu0 0.0
    %3380 = vmatpush1.msra.mxu0 0.0
    %3381 = vmatprep.subr.mxu0 0.0
    %3382 = vmatpush1.msra.mxu0 0.0
    %3383 = vmatprep.subr.mxu0 0.0
    %3384 = vmatpush1.msra.mxu0 0.0
    %3385 = vmatprep.subr.mxu0 0.0
    %3386 = vmatpush1.msra.mxu0 0.0
    %3387 = vmatprep.subr.mxu0 0.0
    %3388 = vmatpush1.msra.mxu0 0.0
    %3389 = vmatprep.subr.mxu0 0.0
    %3390 = vmatpush1.msra.mxu0 0.0
    %3391 = vmatprep.subr.mxu0 0.0
    %3392 = vmatpush1.msra.mxu0 0.0
    %3393 = vmatprep.subr.mxu0 0.0
    %3394 = vmatpush1.msra.mxu0 0.0
    %3395 = vmatprep.subr.mxu0 0.0
    %3396 = vmatpush1.msra.mxu0 0.0
    %3397 = vmatprep.subr.mxu0 0.0
    %3398 = vmatpush1.msra.mxu0 0.0
    %3399 = vmatprep.subr.mxu0 0.0
    %3400 = vmatpush1.msra.mxu0 0.0
    %3401 = vmatprep.subr.mxu0 0.0
    %3402 = vmatpush1.msra.mxu0 0.0
    %3403 = vmatprep.subr.mxu0 0.0
    %3404 = vmatpush1.msra.mxu0 0.0
    %3405 = vmatprep.subr.mxu0 0.0
    %3406 = vmatpush1.msra.mxu0 0.0
    %3407 = vmatprep.subr.mxu0 0.0
    %3408 = vmatpush1.msra.mxu0 0.0
    %3409 = vmatprep.subr.mxu0 0.0
    %3410 = vmatpush1.msra.mxu0 0.0
    %3411 = vmatprep.subr.mxu0 0.0
    %3412 = vmatpush1.msra.mxu0 0.0
    %3413 = vmatprep.subr.mxu0 0.0
    %3414 = vmatpush1.msra.mxu0 0.0
    %3415 = vmatprep.subr.mxu0 0.0
    %3416 = vmatpush1.msra.mxu0 0.0
    %3417 = vmatprep.subr.mxu0 0.0
    %3418 = vmatpush1.msra.mxu0 0.0
    %3419 = vmatprep.subr.mxu0 0.0
    %3420 = vmatpush1.msra.mxu0 0.0
    %3421 = vmatprep.subr.mxu0 0.0
    %3422 = vmatpush1.msra.mxu0 0.0
    %3423 = vmatprep.subr.mxu0 0.0
    %3424 = vmatpush1.msra.mxu0 0.0
    %3425 = vmatprep.subr.mxu0 0.0
    %3426 = vmatpush1.msra.mxu0 0.0
    %3427 = vmatprep.subr.mxu0 0.0
    %3428 = vmatpush1.msra.mxu0 0.0
    %3429 = vmatprep.subr.mxu0 0.0
    %3430 = vmatpush1.msra.mxu0 0.0
    %3431 = vmatprep.subr.mxu0 0.0
    %3432 = vmatpush1.msra.mxu0 0.0
    %3433 = vmatprep.subr.mxu0 0.0
    %3434 = vmatpush1.msra.mxu0 0.0
    %3435 = vmatprep.mubr.f32.mxu0 0.0
    %v3436 = vand.u32 %v3207, 4294901760
    %v3437 = vsub.f32 %v3207, %v3436
    %3438 = vmatmul.mubr.f32.gmra.mrb[0].mxu0 %v3437
    %v3439 = vpop.f32.mrb[0].mxu0
    %v3440 = vadd.f32 %v3364, %v3439
    %v3441 = vpop.f32.mrb[0].mxu0
    %3442 = vdwg.mxu0
    %3443 = vmatprep.subr.mxu0 0.0
    %v3444 = vand.u32 %v2624, 4294901760
    %3445 = vmatpush1.msra.mxu0 %v3444
    %3446 = vmatprep.subr.mxu0 0.0
    %v3447 = vand.u32 %v2625, 4294901760
    %3448 = vmatpush1.msra.mxu0 %v3447
    %3449 = vmatprep.subr.mxu0 0.0
    %3450 = vmatpush1.msra.mxu0 0.0
    %3451 = vmatprep.subr.mxu0 0.0
    %3452 = vmatpush1.msra.mxu0 0.0
    %3453 = vmatprep.subr.mxu0 0.0
    %3454 = vmatpush1.msra.mxu0 0.0
    %3455 = vmatprep.subr.mxu0 0.0
    %3456 = vmatpush1.msra.mxu0 0.0
    %3457 = vmatprep.subr.mxu0 0.0
    %3458 = vmatpush1.msra.mxu0 0.0
    %3459 = vmatprep.subr.mxu0 0.0
    %3460 = vmatpush1.msra.mxu0 0.0
    %3461 = vmatprep.subr.mxu0 0.0
    %3462 = vmatpush1.msra.mxu0 0.0
    %3463 = vmatprep.subr.mxu0 0.0
    %3464 = vmatpush1.msra.mxu0 0.0
    %3465 = vmatprep.subr.mxu0 0.0
    %3466 = vmatpush1.msra.mxu0 0.0
    %3467 = vmatprep.subr.mxu0 0.0
    %3468 = vmatpush1.msra.mxu0 0.0
    %3469 = vmatprep.subr.mxu0 0.0
    %3470 = vmatpush1.msra.mxu0 0.0
    %3471 = vmatprep.subr.mxu0 0.0
    %3472 = vmatpush1.msra.mxu0 0.0
    %3473 = vmatprep.subr.mxu0 0.0
    %3474 = vmatpush1.msra.mxu0 0.0
    %3475 = vmatprep.subr.mxu0 0.0
    %3476 = vmatpush1.msra.mxu0 0.0
    %3477 = vmatprep.subr.mxu0 0.0
    %3478 = vmatpush1.msra.mxu0 0.0
    %3479 = vmatprep.subr.mxu0 0.0
    %3480 = vmatpush1.msra.mxu0 0.0
    %3481 = vmatprep.subr.mxu0 0.0
    %3482 = vmatpush1.msra.mxu0 0.0
    %3483 = vmatprep.subr.mxu0 0.0
    %3484 = vmatpush1.msra.mxu0 0.0
    %3485 = vmatprep.subr.mxu0 0.0
    %3486 = vmatpush1.msra.mxu0 0.0
    %3487 = vmatprep.subr.mxu0 0.0
    %3488 = vmatpush1.msra.mxu0 0.0
    %3489 = vmatprep.subr.mxu0 0.0
    %3490 = vmatpush1.msra.mxu0 0.0
    %3491 = vmatprep.subr.mxu0 0.0
    %3492 = vmatpush1.msra.mxu0 0.0
    %3493 = vmatprep.subr.mxu0 0.0
    %3494 = vmatpush1.msra.mxu0 0.0
    %3495 = vmatprep.subr.mxu0 0.0
    %3496 = vmatpush1.msra.mxu0 0.0
    %3497 = vmatprep.subr.mxu0 0.0
    %3498 = vmatpush1.msra.mxu0 0.0
    %3499 = vmatprep.subr.mxu0 0.0
    %3500 = vmatpush1.msra.mxu0 0.0
    %3501 = vmatprep.subr.mxu0 0.0
    %3502 = vmatpush1.msra.mxu0 0.0
    %3503 = vmatprep.subr.mxu0 0.0
    %3504 = vmatpush1.msra.mxu0 0.0
    %3505 = vmatprep.subr.mxu0 0.0
    %3506 = vmatpush1.msra.mxu0 0.0
    %3507 = vmatprep.subr.mxu0 0.0
    %3508 = vmatpush1.msra.mxu0 0.0
    %3509 = vmatprep.mubr.f32.mxu0 0.0
    %v3510 = vand.u32 %v3207, 4294901760
    %v3511 = vsub.f32 %v3207, %v3510
    %v3512 = vand.u32 %v3511, 4294901760
    %3513 = vmatmul.mubr.f32.gmra.mrb[0].mxu0 %v3512
    %v3514 = vpop.f32.mrb[0].mxu0
    %v3515 = vadd.f32 %v3440, %v3514
    %v3516 = vpop.f32.mrb[0].mxu0
    %3517 = vdwg.mxu0
    %3518 = vmatprep.subr.mxu0 0.0
    %v3519 = vand.u32 %v2624, 4294901760
    %v3520 = vsub.f32 %v2624, %v3519
    %v3521 = vand.u32 %v3520, 4294901760
    %3522 = vmatpush1.msra.mxu0 %v3521
    %3523 = vmatprep.subr.mxu0 0.0
    %v3524 = vand.u32 %v2625, 4294901760
    %v3525 = vsub.f32 %v2625, %v3524
    %v3526 = vand.u32 %v3525, 4294901760
    %3527 = vmatpush1.msra.mxu0 %v3526
    %3528 = vmatprep.subr.mxu0 0.0
    %3529 = vmatpush1.msra.mxu0 0.0
    %3530 = vmatprep.subr.mxu0 0.0
    %3531 = vmatpush1.msra.mxu0 0.0
    %3532 = vmatprep.subr.mxu0 0.0
    %3533 = vmatpush1.msra.mxu0 0.0
    %3534 = vmatprep.subr.mxu0 0.0
    %3535 = vmatpush1.msra.mxu0 0.0
    %3536 = vmatprep.subr.mxu0 0.0
    %3537 = vmatpush1.msra.mxu0 0.0
    %3538 = vmatprep.subr.mxu0 0.0
    %3539 = vmatpush1.msra.mxu0 0.0
    %3540 = vmatprep.subr.mxu0 0.0
    %3541 = vmatpush1.msra.mxu0 0.0
    %3542 = vmatprep.subr.mxu0 0.0
    %3543 = vmatpush1.msra.mxu0 0.0
    %3544 = vmatprep.subr.mxu0 0.0
    %3545 = vmatpush1.msra.mxu0 0.0
    %3546 = vmatprep.subr.mxu0 0.0
    %3547 = vmatpush1.msra.mxu0 0.0
    %3548 = vmatprep.subr.mxu0 0.0
    %3549 = vmatpush1.msra.mxu0 0.0
    %3550 = vmatprep.subr.mxu0 0.0
    %3551 = vmatpush1.msra.mxu0 0.0
    %3552 = vmatprep.subr.mxu0 0.0
    %3553 = vmatpush1.msra.mxu0 0.0
    %3554 = vmatprep.subr.mxu0 0.0
    %3555 = vmatpush1.msra.mxu0 0.0
    %3556 = vmatprep.subr.mxu0 0.0
    %3557 = vmatpush1.msra.mxu0 0.0
    %3558 = vmatprep.subr.mxu0 0.0
    %3559 = vmatpush1.msra.mxu0 0.0
    %3560 = vmatprep.subr.mxu0 0.0
    %3561 = vmatpush1.msra.mxu0 0.0
    %3562 = vmatprep.subr.mxu0 0.0
    %3563 = vmatpush1.msra.mxu0 0.0
    %3564 = vmatprep.subr.mxu0 0.0
    %3565 = vmatpush1.msra.mxu0 0.0
    %3566 = vmatprep.subr.mxu0 0.0
    %3567 = vmatpush1.msra.mxu0 0.0
    %3568 = vmatprep.subr.mxu0 0.0
    %3569 = vmatpush1.msra.mxu0 0.0
    %3570 = vmatprep.subr.mxu0 0.0
    %3571 = vmatpush1.msra.mxu0 0.0
    %3572 = vmatprep.subr.mxu0 0.0
    %3573 = vmatpush1.msra.mxu0 0.0
    %3574 = vmatprep.subr.mxu0 0.0
    %3575 = vmatpush1.msra.mxu0 0.0
    %3576 = vmatprep.subr.mxu0 0.0
    %3577 = vmatpush1.msra.mxu0 0.0
    %3578 = vmatprep.subr.mxu0 0.0
    %3579 = vmatpush1.msra.mxu0 0.0
    %3580 = vmatprep.subr.mxu0 0.0
    %3581 = vmatpush1.msra.mxu0 0.0
    %3582 = vmatprep.subr.mxu0 0.0
    %3583 = vmatpush1.msra.mxu0 0.0
    %3584 = vmatprep.subr.mxu0 0.0
    %3585 = vmatpush1.msra.mxu0 0.0
    %3586 = vmatprep.subr.mxu0 0.0
    %3587 = vmatpush1.msra.mxu0 0.0
    %3588 = vmatprep.mubr.f32.mxu0 0.0
    %v3589 = vand.u32 %v3207, 4294901760
    %3590 = vmatmul.mubr.f32.gmra.mrb[0].mxu0 %v3589
    %v3591 = vpop.f32.mrb[0].mxu0
    %v3592 = vadd.f32 %v3515, %v3591
    %v3593 = vpop.f32.mrb[0].mxu0
    %3594 = vdwg.mxu0
    %3595 = vmatprep.subr.mxu0 0.0
    %v3596 = vand.u32 %v2624, 4294901760
    %3597 = vmatpush1.msra.mxu0 %v3596
    %3598 = vmatprep.subr.mxu0 0.0
    %v3599 = vand.u32 %v2625, 4294901760
    %3600 = vmatpush1.msra.mxu0 %v3599
    %3601 = vmatprep.subr.mxu0 0.0
    %3602 = vmatpush1.msra.mxu0 0.0
    %3603 = vmatprep.subr.mxu0 0.0
    %3604 = vmatpush1.msra.mxu0 0.0
    %3605 = vmatprep.subr.mxu0 0.0
    %3606 = vmatpush1.msra.mxu0 0.0
    %3607 = vmatprep.subr.mxu0 0.0
    %3608 = vmatpush1.msra.mxu0 0.0
    %3609 = vmatprep.subr.mxu0 0.0
    %3610 = vmatpush1.msra.mxu0 0.0
    %3611 = vmatprep.subr.mxu0 0.0
    %3612 = vmatpush1.msra.mxu0 0.0
    %3613 = vmatprep.subr.mxu0 0.0
    %3614 = vmatpush1.msra.mxu0 0.0
    %3615 = vmatprep.subr.mxu0 0.0
    %3616 = vmatpush1.msra.mxu0 0.0
    %3617 = vmatprep.subr.mxu0 0.0
    %3618 = vmatpush1.msra.mxu0 0.0
    %3619 = vmatprep.subr.mxu0 0.0
    %3620 = vmatpush1.msra.mxu0 0.0
    %3621 = vmatprep.subr.mxu0 0.0
    %3622 = vmatpush1.msra.mxu0 0.0
    %3623 = vmatprep.subr.mxu0 0.0
    %3624 = vmatpush1.msra.mxu0 0.0
    %3625 = vmatprep.subr.mxu0 0.0
    %3626 = vmatpush1.msra.mxu0 0.0
    %3627 = vmatprep.subr.mxu0 0.0
    %3628 = vmatpush1.msra.mxu0 0.0
    %3629 = vmatprep.subr.mxu0 0.0
    %3630 = vmatpush1.msra.mxu0 0.0
    %3631 = vmatprep.subr.mxu0 0.0
    %3632 = vmatpush1.msra.mxu0 0.0
    %3633 = vmatprep.subr.mxu0 0.0
    %3634 = vmatpush1.msra.mxu0 0.0
    %3635 = vmatprep.subr.mxu0 0.0
    %3636 = vmatpush1.msra.mxu0 0.0
    %3637 = vmatprep.subr.mxu0 0.0
    %3638 = vmatpush1.msra.mxu0 0.0
    %3639 = vmatprep.subr.mxu0 0.0
    %3640 = vmatpush1.msra.mxu0 0.0
    %3641 = vmatprep.subr.mxu0 0.0
    %3642 = vmatpush1.msra.mxu0 0.0
    %3643 = vmatprep.subr.mxu0 0.0
    %3644 = vmatpush1.msra.mxu0 0.0
    %3645 = vmatprep.subr.mxu0 0.0
    %3646 = vmatpush1.msra.mxu0 0.0
    %3647 = vmatprep.subr.mxu0 0.0
    %3648 = vmatpush1.msra.mxu0 0.0
    %3649 = vmatprep.subr.mxu0 0.0
    %3650 = vmatpush1.msra.mxu0 0.0
    %3651 = vmatprep.subr.mxu0 0.0
    %3652 = vmatpush1.msra.mxu0 0.0
    %3653 = vmatprep.subr.mxu0 0.0
    %3654 = vmatpush1.msra.mxu0 0.0
    %3655 = vmatprep.subr.mxu0 0.0
    %3656 = vmatpush1.msra.mxu0 0.0
    %3657 = vmatprep.subr.mxu0 0.0
    %3658 = vmatpush1.msra.mxu0 0.0
    %3659 = vmatprep.subr.mxu0 0.0
    %3660 = vmatpush1.msra.mxu0 0.0
    %3661 = vmatprep.mubr.f32.mxu0 0.0
    %v3662 = vand.u32 %v3207, 4294901760
    %3663 = vmatmul.mubr.f32.gmra.mrb[0].mxu0 %v3662
    %v3664 = vpop.f32.mrb[0].mxu0
    %v3665 = vadd.f32 %v3592, %v3664
    %v3666 = vpop.f32.mrb[0].mxu0
    %3667 = vdwg.mxu0
    %vm3668 = vcmask 74752
    %3669 = vst.msk [vmem:[#allocation2] sm:$0x3] %vm3668, %v3665
    // Predicated region
    $region18: #{tpu_custom_call.1} parent=1 // pred_check
      _
    $region19: #{tpu_custom_call.1} parent=1 // pred_check_branch
      %3671 = sbr.rel (0) target = $region21
    $region20: #{tpu_custom_call.1} parent=1 // pred_region
      %s3673 = ssub.s32 32, 32
      %3674 = vsyncadd [#allocation3], %s3673
      %s3676 = sshll.u32 [#allocation2], 4
      %s3677 = int_to_ptr.vmem [resolvable:$true] %s3676
      %3679 = dma.vmem_to_hbm [thread:$0]  %s3677, 32, %s4, [#allocation3]
    $region21: #{tpu_custom_call.1} parent=1 // pred_fallthru
      _
    // Predicated region
    $region22: #{tpu_custom_call.1} parent=1 // pred_check
      _
    $region23: #{tpu_custom_call.1} parent=1 // pred_check_branch
      %3681 = sbr.rel (0) target = $region25
    $region24: #{tpu_custom_call.1} parent=1 // pred_region
      %3682 = dma.done [#allocation3], 32
    $region25: #{tpu_custom_call.1} parent=1 // pred_fallthru
      _
    %3683 = vsyncpa [#allocation3], 1

</llo_original>
